<compile_context>
chip_gen: v5e
topology: v5e:2x2
jax: 0.10.0
libtpu: 0.0.40
codegen_flags: <defaults>
</compile_context>

<pallas_src>
import functools

import jax
import jax.numpy as jnp
from jax import lax
from jax.experimental import pallas as pl
from jax.experimental.pallas import tpu as pltpu


def _round_up(x, m):
    return -(-x // m) * m


# ---------------------------------------------------------------------------
# Per-generation tuning knobs (trace-time Python, cached)
# ---------------------------------------------------------------------------
@functools.lru_cache(maxsize=None)
def _device_kind():
    try:
        return jax.devices()[0].device_kind.lower()
    except Exception:
        return ""


@functools.lru_cache(maxsize=None)
def _vmem_limit_bytes():
    # ~75% of physical per-core VMEM; leaves headroom for compiler scratch.
    try:
        cap = getattr(pltpu.get_tpu_info(), "vmem_capacity_bytes", None)
        if cap:
            return int(cap) * 3 // 4
    except Exception:
        pass
    kind = _device_kind()
    return (48 if "v7" in kind else 64) * 1024 * 1024


@functools.lru_cache(maxsize=None)
def _k_align():
    # v6e/v7x MXU is 256-deep; v5e and older are 128.
    kind = _device_kind()
    return 256 if ("v6" in kind or "v7" in kind) else 128


@functools.lru_cache(maxsize=None)
def _batch_align():
    # bf16 packs 16 rows per sublane group; 32 on v7x so the batch axis can be
    # split across the two TensorCores.
    return 32 if "v7" in _device_kind() else 16


@functools.lru_cache(maxsize=None)
def _batch_chunk(bp):
    if "v7" in _device_kind() and bp % 32 == 0:
        return bp // 2
    return bp


# ---------------------------------------------------------------------------
# Kernel 1: fused input-gate preamble  G = X @ W_ih_all + b_pre  (bf16 output)
#   X: (rows, EP) bf16, W: (EP, 3HP) bf16, b: (1, 3HP) f32 -> (rows, 3HP) bf16
# ---------------------------------------------------------------------------
def _gates_kernel(x_ref, w_ref, b_ref, o_ref):
    o_ref[...] = (
        jnp.dot(x_ref[...], w_ref[...], preferred_element_type=jnp.float32)
        + b_ref[...]
    ).astype(o_ref.dtype)


def _input_gates(x_tbe, wih_f, b_pre):
    """x_tbe: (Tp, BP, EP) bf16 -> (Tp, BP, 3HP) bf16 via one tiled matmul."""
    tp, bp, ep = x_tbe.shape
    n = wih_f.shape[1]
    rows = tp * bp                              # multiple of 16 (bp is)
    tile = min(512, rows)
    rows_p = _round_up(rows, tile)
    x_rows = jnp.pad(x_tbe.reshape(rows, ep), ((0, rows_p - rows), (0, 0)))
    out = pl.pallas_call(
        _gates_kernel,
        out_shape=jax.ShapeDtypeStruct((rows_p, n), jnp.bfloat16),
        grid_spec=pltpu.PrefetchScalarGridSpec(
            num_scalar_prefetch=0,
            grid=(rows_p // tile,),
            in_specs=[pl.BlockSpec((tile, ep), lambda i: (i, 0)),
                      pl.BlockSpec((ep, n), lambda i: (0, 0)),
                      pl.BlockSpec((1, n), lambda i: (0, 0))],
            out_specs=pl.BlockSpec((tile, n), lambda i: (i, 0))),
        compiler_params=pltpu.CompilerParams(
            dimension_semantics=("parallel",),
            vmem_limit_bytes=_vmem_limit_bytes()),
    )(x_rows, wih_f, b_pre)
    return out[:rows].reshape(tp, bp, n)


# ---------------------------------------------------------------------------
# Shared GRU cell (fused h @ W_hh_all, pre-folded biases, f32 elementwise)
# ---------------------------------------------------------------------------
def _gru_cell(gx, h, whh_ref, bhhn_ref, hp):
    gx = gx.astype(jnp.float32)                               # bf16 -> f32
    gh = jnp.dot(h.astype(whh_ref.dtype), whh_ref[...],
                 preferred_element_type=jnp.float32)          # (bc, 3HP) f32
    r = jax.nn.sigmoid(gx[:, :hp] + gh[:, :hp])
    z = jax.nn.sigmoid(gx[:, hp:2 * hp] + gh[:, hp:2 * hp])
    n = jnp.tanh(gx[:, 2 * hp:] + r * (gh[:, 2 * hp:] + bhhn_ref[...]))
    return (1.0 - z) * n + z * h


# ---------------------------------------------------------------------------
# Kernel 2: encoder recurrence. Grid = (batch blocks ["parallel"],
# time chunks ["arbitrary"]); hidden carried in the resident output block.
# encoder_outputs are never consumed downstream, so they are not computed.
# ---------------------------------------------------------------------------
def _encoder_rec_kernel(xg_ref, len_ref, whh_ref, bhhn_ref, h_ref):
    c = pl.program_id(1)
    tchunk = xg_ref.shape[0]
    hp = whh_ref.shape[0]

    @pl.when(c == 0)
    def _():
        h_ref[...] = jnp.zeros_like(h_ref)

    t0 = c * tchunk
    lens = len_ref[...]                                        # (bc, 1) int32

    def step(i, h):
        h_new = _gru_cell(xg_ref[i], h, whh_ref, bhhn_ref, hp)
        keep = lens > (t0 + i)                # freeze past sequence length
        return jnp.where(keep, h_new, h)

    h_ref[...] = lax.fori_loop(0, tchunk, step, h_ref[...], unroll=True)


def _run_encoder(xg, lengths_col, whh_f, bhh_n, tchunk):
    tp, bp, n3 = xg.shape
    hp = whh_f.shape[0]
    bc = _batch_chunk(bp)
    return pl.pallas_call(
        _encoder_rec_kernel,
        out_shape=jax.ShapeDtypeStruct((bp, hp), jnp.float32),
        grid_spec=pltpu.PrefetchScalarGridSpec(
            num_scalar_prefetch=0,
            grid=(bp // bc, tp // tchunk),
            in_specs=[pl.BlockSpec((tchunk, bc, n3), lambda b, c: (c, b, 0)),
                      pl.BlockSpec((bc, 1), lambda b, c: (b, 0)),
                      pl.BlockSpec((hp, n3), lambda b, c: (0, 0)),
                      pl.BlockSpec((1, hp), lambda b, c: (0, 0))],
            out_specs=pl.BlockSpec((bc, hp), lambda b, c: (b, 0))),
        compiler_params=pltpu.CompilerParams(
            dimension_semantics=("parallel", "arbitrary"),
            vmem_limit_bytes=_vmem_limit_bytes()),
    )(xg, lengths_col, whh_f, bhh_n)


# ---------------------------------------------------------------------------
# Kernel 3: decoder recurrence (teacher forcing). Writes all hidden states
# (bf16) for the batched projection kernel plus the final hidden (f32).
# ---------------------------------------------------------------------------
def _decoder_rec_kernel(yg_ref, h0_ref, whh_ref, bhhn_ref, hs_ref, hfin_ref,
                        *, t_valid):
    c = pl.program_id(1)
    tchunk = yg_ref.shape[0]
    hp = whh_ref.shape[0]

    @pl.when(c == 0)
    def _():
        hfin_ref[...] = h0_ref[...]

    t0 = c * tchunk

    def step(i, h):
        h_new = _gru_cell(yg_ref[i], h, whh_ref, bhhn_ref, hp)
        h_new = jnp.where(t0 + i < t_valid, h_new, h)   # guard time padding
        hs_ref[i] = h_new.astype(hs_ref.dtype)
        return h_new

    hfin_ref[...] = lax.fori_loop(0, tchunk, step, hfin_ref[...], unroll=True)


def _run_decoder(yg, h0, whh_f, bhh_n, tchunk, t_valid):
    tp, bp, n3 = yg.shape
    hp = whh_f.shape[0]
    bc = _batch_chunk(bp)
    kernel = functools.partial(_decoder_rec_kernel, t_valid=t_valid)
    return pl.pallas_call(
        kernel,
        out_shape=(jax.ShapeDtypeStruct((tp, bp, hp), jnp.bfloat16),
                   jax.ShapeDtypeStruct((bp, hp), jnp.float32)),
        grid_spec=pltpu.PrefetchScalarGridSpec(
            num_scalar_prefetch=0,
            grid=(bp // bc, tp // tchunk),
            in_specs=[pl.BlockSpec((tchunk, bc, n3), lambda b, c: (c, b, 0)),
                      pl.BlockSpec((bc, hp), lambda b, c: (b, 0)),
                      pl.BlockSpec((hp, n3), lambda b, c: (0, 0)),
                      pl.BlockSpec((1, hp), lambda b, c: (0, 0))],
            out_specs=(pl.BlockSpec((tchunk, bc, hp), lambda b, c: (c, b, 0)),
                       pl.BlockSpec((bc, hp), lambda b, c: (b, 0)))),
        compiler_params=pltpu.CompilerParams(
            dimension_semantics=("parallel", "arbitrary"),
            vmem_limit_bytes=_vmem_limit_bytes()),
    )(yg, h0, whh_f, bhh_n)


# ---------------------------------------------------------------------------
# Kernel 4: batched output projection + log-softmax, grid-tiled over rows.
# Padded vocab columns masked explicitly before the max/LSE.
# ---------------------------------------------------------------------------
def _proj_logsoftmax_kernel(h_ref, w_ref, b_ref, o_ref, *, v_valid):
    logits = jnp.dot(h_ref[...], w_ref[...],
                     preferred_element_type=jnp.float32) + b_ref[...]
    col = lax.broadcasted_iota(jnp.int32, logits.shape, 1)
    logits = jnp.where(col < v_valid, logits, -1e30)
    m = jnp.max(logits, axis=-1, keepdims=True)
    lse = jnp.log(jnp.sum(jnp.exp(logits - m), axis=-1, keepdims=True)) + m
    o_ref[...] = (logits - lse).astype(o_ref.dtype)


def _project_logsoftmax(h_rows, w_out_p, b_out_p, v_valid):
    rows, hp = h_rows.shape
    vp = w_out_p.shape[1]
    tile = min(512, rows)
    rows_p = _round_up(rows, tile)
    h_pad = jnp.pad(h_rows, ((0, rows_p - rows), (0, 0)))
    kernel = functools.partial(_proj_logsoftmax_kernel, v_valid=v_valid)
    out = pl.pallas_call(
        kernel,
        out_shape=jax.ShapeDtypeStruct((rows_p, vp), jnp.float32),
        grid_spec=pltpu.PrefetchScalarGridSpec(
            num_scalar_prefetch=0,
            grid=(rows_p // tile,),
            in_specs=[pl.BlockSpec((tile, hp), lambda i: (i, 0)),
                      pl.BlockSpec((hp, vp), lambda i: (0, 0)),
                      pl.BlockSpec((1, vp), lambda i: (0, 0))],
            out_specs=pl.BlockSpec((tile, vp), lambda i: (i, 0))),
        compiler_params=pltpu.CompilerParams(
            dimension_semantics=("parallel",),
            vmem_limit_bytes=_vmem_limit_bytes()),
    )(h_pad, w_out_p, b_out_p)
    return out[:rows]


# ---------------------------------------------------------------------------
# Parameter fusion / padding (trace-time glue, jit-folded)
# ---------------------------------------------------------------------------
def _fuse_gru_params(wih, whh, bih, bhh, ep, hp):
    # wih: (3, E, H), whh: (3, H, H), biases: (3, 1, H); gate order r, z, n
    e, h = wih.shape[1], wih.shape[2]
    wih_p = jnp.pad(wih, ((0, 0), (0, ep - e), (0, hp - h)))
    whh_p = jnp.pad(whh, ((0, 0), (0, hp - h), (0, hp - h)))
    bih_p = jnp.pad(bih, ((0, 0), (0, 0), (0, hp - h)))
    bhh_p = jnp.pad(bhh, ((0, 0), (0, 0), (0, hp - h)))
    wih_f = jnp.concatenate([wih_p[0], wih_p[1], wih_p[2]], axis=-1)  # (EP,3HP)
    whh_f = jnp.concatenate([whh_p[0], whh_p[1], whh_p[2]], axis=-1)  # (HP,3HP)
    # pre-folded x-path bias: r/z gates absorb b_hh; n keeps only b_ih
    b_pre = jnp.concatenate(
        [bih_p[0] + bhh_p[0], bih_p[1] + bhh_p[1], bih_p[2]], axis=-1)  # (1,3HP)
    bhh_n = bhh_p[2]                                                    # (1,HP)
    return (wih_f.astype(jnp.bfloat16), whh_f.astype(jnp.bfloat16),
            b_pre.astype(jnp.float32), bhh_n.astype(jnp.float32))


# ---------------------------------------------------------------------------
# Forward pass
# ---------------------------------------------------------------------------
@jax.jit
def seq2seq_forward(params, input_vars, input_lengths, targets):
    B, Ts = input_vars.shape
    _, Tt = targets.shape
    E = params["enc_emb"].shape[1]
    H = params["enc_whh"].shape[2]
    V = params["w_out"].shape[1]

    ka = _k_align()
    BP = _round_up(B, _batch_align())
    EP = _round_up(E, ka)
    HP = _round_up(H, ka)
    VP = _round_up(V, 128)

    enc_wih_f, enc_whh_f, enc_bpre, enc_bhhn = _fuse_gru_params(
        params["enc_wih"], params["enc_whh"],
        params["enc_bih"], params["enc_bhh"], EP, HP)
    dec_wih_f, dec_whh_f, dec_bpre, dec_bhhn = _fuse_gru_params(
        params["dec_wih"], params["dec_whh"],
        params["dec_bih"], params["dec_bhh"], EP, HP)

    # Pad embedding tables once (gather then yields already-padded E columns).
    enc_emb_p = jnp.pad(params["enc_emb"],
                        ((0, 0), (0, EP - E))).astype(jnp.bfloat16)
    dec_emb_p = jnp.pad(params["dec_emb"],
                        ((0, 0), (0, EP - E))).astype(jnp.bfloat16)

    # --- encoder ---
    tchunk_e = min(Ts, 16)
    tsp = _round_up(Ts, tchunk_e)
    x_emb = jnp.take(enc_emb_p, input_vars.T, axis=0)            # (Ts, B, EP)
    x_emb = jnp.pad(x_emb, ((0, tsp - Ts), (0, BP - B), (0, 0)))
    xg = _input_gates(x_emb, enc_wih_f, enc_bpre)                # (tsp,BP,3HP) bf16
    lengths_col = jnp.pad(input_lengths.astype(jnp.int32),
                          (0, BP - B)).reshape(BP, 1)
    enc_hidden_p = _run_encoder(xg, lengths_col, enc_whh_f, enc_bhhn,
                                tchunk_e)                        # (BP, HP) f32

    # --- decoder recurrence (teacher forcing) ---
    tchunk_d = min(Tt, 16)
    ttp = _round_up(Tt, tchunk_d)
    y_emb = jnp.take(dec_emb_p, targets.T, axis=0)               # (Tt, B, EP)
    y_emb = jnp.pad(y_emb, ((0, ttp - Tt), (0, BP - B), (0, 0)))
    yg = _input_gates(y_emb, dec_wih_f, dec_bpre)                # (ttp,BP,3HP) bf16
    hs_p, dec_hidden_p = _run_decoder(yg, enc_hidden_p, dec_whh_f, dec_bhhn,
                                      tchunk_d, Tt)

    # --- output projection + log-softmax (batched, MXU-bound) ---
    w_out_p = jnp.pad(params["w_out"],
                      ((0, HP - H), (0, VP - V))).astype(jnp.bfloat16)
    b_out_p = jnp.pad(params["b_out"], ((0, 0), (0, VP - V)))
    h_rows = hs_p[:Tt].reshape(Tt * BP, HP)                      # bf16
    logp = _project_logsoftmax(h_rows, w_out_p, b_out_p, V)      # (Tt*BP, VP)
    logp = logp.reshape(Tt, BP, VP)[:, :B, :V]
    decoder_outputs = jnp.transpose(logp, (1, 0, 2))             # (B, Tt, V)
    decoder_hidden = dec_hidden_p[:B, :H]
    return decoder_outputs, decoder_hidden


# ---------------------------------------------------------------------------
# Pure-JAX reference (same math, bf16 matmul operands) for cross-check.
# ---------------------------------------------------------------------------
def seq2seq_forward_ref(params, input_vars, input_lengths, targets):
    B, Ts = input_vars.shape
    _, Tt = targets.shape
    H = params["enc_whh"].shape[2]

    def mm(a, w):
        return jnp.dot(a.astype(jnp.bfloat16), w.astype(jnp.bfloat16),
                       preferred_element_type=jnp.float32)

    def gru_step(x_t, h, wih, whh, bih, bhh):
        r = jax.nn.sigmoid(mm(x_t, wih[0]) + bih[0] + mm(h, whh[0]) + bhh[0])
        z = jax.nn.sigmoid(mm(x_t, wih[1]) + bih[1] + mm(h, whh[1]) + bhh[1])
        n = jnp.tanh(mm(x_t, wih[2]) + bih[2] + r * (mm(h, whh[2]) + bhh[2]))
        return (1.0 - z) * n + z * h

    x_emb = jnp.take(params["enc_emb"], input_vars, axis=0).astype(jnp.float32)
    h = jnp.zeros((B, H), jnp.float32)
    for t in range(Ts):
        m = (t < input_lengths).astype(jnp.float32)[:, None]
        h_new = gru_step(x_emb[:, t], h, params["enc_wih"], params["enc_whh"],
                         params["enc_bih"], params["enc_bhh"])
        h = m * h_new + (1.0 - m) * h

    y_emb = jnp.take(params["dec_emb"], targets, axis=0).astype(jnp.float32)
    outs = []
    for t in range(Tt):
        h = gru_step(y_emb[:, t], h, params["dec_wih"], params["dec_whh"],
                     params["dec_bih"], params["dec_bhh"])
        logits = mm(h, params["w_out"]) + params["b_out"]
        outs.append(jax.nn.log_softmax(logits, axis=-1))
    return jnp.stack(outs, axis=1), h


# ---------------------------------------------------------------------------
def make_params(key, vocab, embed, hidden):
    ks = jax.random.split(key, 12)
    s = 0.1
    return {
        "enc_emb": s * jax.random.normal(ks[0], (vocab, embed), jnp.float32),
        "enc_wih": s * jax.random.normal(ks[1], (3, embed, hidden), jnp.float32),
        "enc_whh": s * jax.random.normal(ks[2], (3, hidden, hidden), jnp.float32),
        "enc_bih": s * jax.random.normal(ks[3], (3, 1, hidden), jnp.float32),
        "enc_bhh": s * jax.random.normal(ks[4], (3, 1, hidden), jnp.float32),
        "dec_emb": s * jax.random.normal(ks[5], (vocab, embed), jnp.float32),
        "dec_wih": s * jax.random.normal(ks[6], (3, embed, hidden), jnp.float32),
        "dec_whh": s * jax.random.normal(ks[7], (3, hidden, hidden), jnp.float32),
        "dec_bih": s * jax.random.normal(ks[8], (3, 1, hidden), jnp.float32),
        "dec_bhh": s * jax.random.normal(ks[9], (3, 1, hidden), jnp.float32),
        "w_out":   s * jax.random.normal(ks[10], (hidden, vocab), jnp.float32),
        "b_out":   s * jax.random.normal(ks[11], (1, vocab), jnp.float32),
    }


if __name__ == "__main__":
    VOCAB, EMBED, HIDDEN = 32, 16, 32
    B, TS, TT = 2, 8, 6

    key = jax.random.PRNGKey(0)
    kp, ki, kt = jax.random.split(key, 3)
    params = make_params(kp, VOCAB, EMBED, HIDDEN)

    input_vars = jax.random.randint(ki, (B, TS), 0, VOCAB, dtype=jnp.int32)
    input_lengths = jnp.array([TS, 5], dtype=jnp.int32)
    targets = jax.random.randint(kt, (B, TT), 0, VOCAB, dtype=jnp.int32)

    dec_out, dec_hidden = seq2seq_forward(params, input_vars, input_lengths,
                                          targets)
    jax.block_until_ready((dec_out, dec_hidden))

    ref_out, ref_hidden = seq2seq_forward_ref(params, input_vars,
                                              input_lengths, targets)
    assert dec_out.shape == (B, TT, VOCAB) and dec_hidden.shape == (B, HIDDEN)
    # Tolerance covers bf16 storage of the hoisted gate pre-activations.
    assert jnp.allclose(dec_out, ref_out, atol=5e-3, rtol=5e-3), \
        float(jnp.max(jnp.abs(dec_out - ref_out)))
    assert jnp.allclose(dec_hidden, ref_hidden, atol=5e-3, rtol=5e-3), \
        float(jnp.max(jnp.abs(dec_hidden - ref_hidden)))

    print("KERNEL_OK")
</pallas_src>

<mosaic_0001>
module attributes {stable_mosaic.version = 11 : i64} {
  func.func @_gates_kernel(%arg0: i32, %arg1: memref<128x128xbf16, #tpu.memory_space<vmem>>, %arg2: memref<128x384xbf16, #tpu.memory_space<vmem>>, %arg3: memref<1x384xf32, #tpu.memory_space<vmem>>, %arg4: memref<128x384xbf16, #tpu.memory_space<vmem>>) attributes {dimension_semantics = [#tpu.dimension_semantics<parallel>], iteration_bounds = array<i64: 1>, scalar_prefetch = 0 : i64, scratch_operands = 0 : i64, tpu.core_type = #tpu.core_type<tc>, window_params = [{transform_indices = @transform_0, window_bounds = array<i64: 128, 128>}, {pipeline_mode = #tpu.pipeline_mode<synchronous>, transform_indices = @transform_1, window_bounds = array<i64: 128, 384>}, {pipeline_mode = #tpu.pipeline_mode<synchronous>, transform_indices = @transform_2, window_bounds = array<i64: 1, 384>}, {transform_indices = @transform_3, window_bounds = array<i64: 128, 384>}]} {
    %c0 = arith.constant 0 : index
    %c0_0 = arith.constant 0 : index
    %0 = vector.load %arg1[%c0, %c0_0] : memref<128x128xbf16, #tpu.memory_space<vmem>>, vector<128x128xbf16>
    %c0_1 = arith.constant 0 : index
    %c0_2 = arith.constant 0 : index
    %1 = vector.load %arg2[%c0_1, %c0_2] : memref<128x384xbf16, #tpu.memory_space<vmem>>, vector<128x384xbf16>
    %cst = arith.constant dense<0.000000e+00> : vector<128x384xf32>
    %2 = tpu.matmul %0, %1, %cst {dimension_numbers = #tpu.dot_dimension_numbers<[1], [0], [0], [1], [0, 0, 1, 1], [], []>} : vector<128x128xbf16>, vector<128x384xbf16>, vector<128x384xf32> -> vector<128x384xf32>
    %c0_3 = arith.constant 0 : index
    %c0_4 = arith.constant 0 : index
    %3 = vector.load %arg3[%c0_3, %c0_4] : memref<1x384xf32, #tpu.memory_space<vmem>>, vector<1x384xf32>
    %4 = vector.broadcast %3 : vector<1x384xf32> to vector<128x384xf32>
    %5 = arith.addf %2, %4 : vector<128x384xf32>
    %6 = arith.truncf %5 : vector<128x384xf32> to vector<128x384xbf16>
    %c0_5 = arith.constant 0 : index
    %c0_6 = arith.constant 0 : index
    %7 = vector.load %arg4[%c0_5, %c0_6] : memref<128x384xbf16, #tpu.memory_space<vmem>>, vector<128x384xbf16>
    tpu.vector_store %arg4[%c0_5, %c0_6], %6 {strides = array<i32>} : memref<128x384xbf16, #tpu.memory_space<vmem>>, vector<128x384xbf16>,
    return
  }
  func.func @transform_0(%arg0: i32) -> (i32, i32) {
    %c0_i32 = arith.constant 0 : i32
    %c0_i32_0 = arith.constant 0 : i32
    return %arg0, %c0_i32 : i32, i32
  }
  func.func @transform_1(%arg0: i32) -> (i32, i32) {
    %c0_i32 = arith.constant 0 : i32
    %c0_i32_0 = arith.constant 0 : i32
    %c0_i32_1 = arith.constant 0 : i32
    return %c0_i32, %c0_i32_0 : i32, i32
  }
  func.func @transform_2(%arg0: i32) -> (i32, i32) {
    %c0_i32 = arith.constant 0 : i32
    %c0_i32_0 = arith.constant 0 : i32
    %c0_i32_1 = arith.constant 0 : i32
    return %c0_i32, %c0_i32_0 : i32, i32
  }
  func.func @transform_3(%arg0: i32) -> (i32, i32) {
    %c0_i32 = arith.constant 0 : i32
    %c0_i32_0 = arith.constant 0 : i32
    return %arg0, %c0_i32 : i32, i32
  }
}

module attributes {stable_mosaic.version = 11 : i64} {
  func.func @_encoder_rec_kernel(%arg0: i32, %arg1: i32, %arg2: memref<8x16x384xbf16, #tpu.memory_space<vmem>>, %arg3: memref<16x1xi32, #tpu.memory_space<vmem>>, %arg4: memref<128x384xbf16, #tpu.memory_space<vmem>>, %arg5: memref<1x128xf32, #tpu.memory_space<vmem>>, %arg6: memref<16x128xf32, #tpu.memory_space<vmem>>) attributes {dimension_semantics = [#tpu.dimension_semantics<parallel>, #tpu.dimension_semantics<arbitrary>], iteration_bounds = array<i64: 1, 1>, scalar_prefetch = 0 : i64, scratch_operands = 0 : i64, tpu.core_type = #tpu.core_type<tc>, window_params = [{transform_indices = @transform_0, window_bounds = array<i64: 8, 16, 384>}, {transform_indices = @transform_1, window_bounds = array<i64: 16, 1>}, {pipeline_mode = #tpu.pipeline_mode<synchronous>, transform_indices = @transform_2, window_bounds = array<i64: 128, 384>}, {pipeline_mode = #tpu.pipeline_mode<synchronous>, transform_indices = @transform_3, window_bounds = array<i64: 1, 128>}, {transform_indices = @transform_4, window_bounds = array<i64: 16, 128>}]} {
    %c0_i32 = arith.constant 0 : i32
    %0 = arith.cmpi eq, %arg1, %c0_i32 : i32
    %1 = arith.extui %0 : i1 to i32
    %c0_i32_0 = arith.constant 0 : i32
    %2 = arith.cmpi ne, %1, %c0_i32_0 : i32
    scf.if %2 {
      %cst_87 = arith.constant 0.000000e+00 : f32
      %343 = vector.broadcast %cst_87 : f32 to vector<16x128xf32>
      %c0_88 = arith.constant 0 : index
      %c0_89 = arith.constant 0 : index
      %344 = vector.load %arg6[%c0_88, %c0_89] : memref<16x128xf32, #tpu.memory_space<vmem>>, vector<16x128xf32>
      tpu.vector_store %arg6[%c0_88, %c0_89], %343 {strides = array<i32>} : memref<16x128xf32, #tpu.memory_space<vmem>>, vector<16x128xf32>,
    } else {
    }
    %c8_i32 = arith.constant 8 : i32
    %3 = arith.muli %arg1, %c8_i32 : i32
    %c0 = arith.constant 0 : index
    %c0_1 = arith.constant 0 : index
    %4 = vector.load %arg3[%c0, %c0_1] : memref<16x1xi32, #tpu.memory_space<vmem>>, vector<16x1xi32>
    %c0_2 = arith.constant 0 : index
    %c0_3 = arith.constant 0 : index
    %5 = vector.load %arg6[%c0_2, %c0_3] : memref<16x128xf32, #tpu.memory_space<vmem>>, vector<16x128xf32>
    %c0_i32_4 = arith.constant 0 : i32
    %6 = arith.index_cast %c0_i32_4 : i32 to index
    %c0_5 = arith.constant 0 : index
    %c0_6 = arith.constant 0 : index
    %7 = vector.load %arg2[%6, %c0_5, %c0_6] : memref<8x16x384xbf16, #tpu.memory_space<vmem>>, vector<1x16x384xbf16>
    %8 = vector.shape_cast %7 : vector<1x16x384xbf16> to vector<16x384xbf16>
    %9 = arith.extf %8 : vector<16x384xbf16> to vector<16x384xf32>
    %10 = arith.truncf %5 : vector<16x128xf32> to vector<16x128xbf16>
    %c0_7 = arith.constant 0 : index
    %c0_8 = arith.constant 0 : index
    %11 = vector.load %arg4[%c0_7, %c0_8] : memref<128x384xbf16, #tpu.memory_space<vmem>>, vector<128x384xbf16>
    %cst = arith.constant dense<0.000000e+00> : vector<16x384xf32>
    %12 = tpu.matmul %10, %11, %cst {dimension_numbers = #tpu.dot_dimension_numbers<[1], [0], [0], [1], [0, 0, 1, 1], [], []>} : vector<16x128xbf16>, vector<128x384xbf16>, vector<16x384xf32> -> vector<16x384xf32>
    %13 = vector.extract_strided_slice %9 {offsets = [0, 0], sizes = [16, 128], strides = [1, 1]} : vector<16x384xf32> to vector<16x128xf32>
    %14 = vector.extract_strided_slice %12 {offsets = [0, 0], sizes = [16, 128], strides = [1, 1]} : vector<16x384xf32> to vector<16x128xf32>
    %15 = arith.addf %13, %14 : vector<16x128xf32>
    %16 = arith.negf %15 : vector<16x128xf32>
    %17 = math.exp %16 : vector<16x128xf32>
    %cst_9 = arith.constant 1.000000e+00 : f32
    %18 = vector.broadcast %cst_9 : f32 to vector<16x128xf32>
    %19 = arith.addf %18, %17 : vector<16x128xf32>
    %20 = arith.divf %18, %19 : vector<16x128xf32>
    %21 = vector.extract_strided_slice %9 {offsets = [0, 128], sizes = [16, 128], strides = [1, 1]} : vector<16x384xf32> to vector<16x128xf32>
    %22 = vector.extract_strided_slice %12 {offsets = [0, 128], sizes = [16, 128], strides = [1, 1]} : vector<16x384xf32> to vector<16x128xf32>
    %23 = arith.addf %21, %22 : vector<16x128xf32>
    %24 = arith.negf %23 : vector<16x128xf32>
    %25 = math.exp %24 : vector<16x128xf32>
    %cst_10 = arith.constant 1.000000e+00 : f32
    %26 = vector.broadcast %cst_10 : f32 to vector<16x128xf32>
    %27 = arith.addf %26, %25 : vector<16x128xf32>
    %28 = arith.divf %26, %27 : vector<16x128xf32>
    %29 = vector.extract_strided_slice %9 {offsets = [0, 256], sizes = [16, 128], strides = [1, 1]} : vector<16x384xf32> to vector<16x128xf32>
    %30 = vector.extract_strided_slice %12 {offsets = [0, 256], sizes = [16, 128], strides = [1, 1]} : vector<16x384xf32> to vector<16x128xf32>
    %c0_11 = arith.constant 0 : index
    %c0_12 = arith.constant 0 : index
    %31 = vector.load %arg5[%c0_11, %c0_12] : memref<1x128xf32, #tpu.memory_space<vmem>>, vector<1x128xf32>
    %32 = vector.broadcast %31 : vector<1x128xf32> to vector<16x128xf32>
    %33 = arith.addf %30, %32 : vector<16x128xf32>
    %34 = arith.mulf %20, %33 : vector<16x128xf32>
    %35 = arith.addf %29, %34 : vector<16x128xf32>
    %36 = math.tanh %35 : vector<16x128xf32>
    %cst_13 = arith.constant 1.000000e+00 : f32
    %37 = vector.broadcast %cst_13 : f32 to vector<16x128xf32>
    %38 = arith.subf %37, %28 : vector<16x128xf32>
    %39 = arith.mulf %38, %36 : vector<16x128xf32>
    %40 = arith.mulf %28, %5 : vector<16x128xf32>
    %41 = arith.addf %39, %40 : vector<16x128xf32>
    %42 = arith.addi %3, %c0_i32_4 : i32
    %43 = vector.broadcast %42 : i32 to vector<16x1xi32>
    %44 = arith.cmpi sgt, %4, %43 : vector<16x1xi32>
    %45 = vector.shape_cast %44 : vector<16x1xi1> to vector<16x1xi1>
    %46 = vector.broadcast %45 : vector<16x1xi1> to vector<16x128xi1>
    %47 = arith.select %46, %41, %5 : vector<16x128xi1>, vector<16x128xf32>
    %c1_i32 = arith.constant 1 : i32
    %48 = arith.index_cast %c1_i32 : i32 to index
    %c0_14 = arith.constant 0 : index
    %c0_15 = arith.constant 0 : index
    %49 = vector.load %arg2[%48, %c0_14, %c0_15] : memref<8x16x384xbf16, #tpu.memory_space<vmem>>, vector<1x16x384xbf16>
    %50 = vector.shape_cast %49 : vector<1x16x384xbf16> to vector<16x384xbf16>
    %51 = arith.extf %50 : vector<16x384xbf16> to vector<16x384xf32>
    %52 = arith.truncf %47 : vector<16x128xf32> to vector<16x128xbf16>
    %c0_16 = arith.constant 0 : index
    %c0_17 = arith.constant 0 : index
    %53 = vector.load %arg4[%c0_16, %c0_17] : memref<128x384xbf16, #tpu.memory_space<vmem>>, vector<128x384xbf16>
    %cst_18 = arith.constant dense<0.000000e+00> : vector<16x384xf32>
    %54 = tpu.matmul %52, %53, %cst_18 {dimension_numbers = #tpu.dot_dimension_numbers<[1], [0], [0], [1], [0, 0, 1, 1], [], []>} : vector<16x128xbf16>, vector<128x384xbf16>, vector<16x384xf32> -> vector<16x384xf32>
    %55 = vector.extract_strided_slice %51 {offsets = [0, 0], sizes = [16, 128], strides = [1, 1]} : vector<16x384xf32> to vector<16x128xf32>
    %56 = vector.extract_strided_slice %54 {offsets = [0, 0], sizes = [16, 128], strides = [1, 1]} : vector<16x384xf32> to vector<16x128xf32>
    %57 = arith.addf %55, %56 : vector<16x128xf32>
    %58 = arith.negf %57 : vector<16x128xf32>
    %59 = math.exp %58 : vector<16x128xf32>
    %cst_19 = arith.constant 1.000000e+00 : f32
    %60 = vector.broadcast %cst_19 : f32 to vector<16x128xf32>
    %61 = arith.addf %60, %59 : vector<16x128xf32>
    %62 = arith.divf %60, %61 : vector<16x128xf32>
    %63 = vector.extract_strided_slice %51 {offsets = [0, 128], sizes = [16, 128], strides = [1, 1]} : vector<16x384xf32> to vector<16x128xf32>
    %64 = vector.extract_strided_slice %54 {offsets = [0, 128], sizes = [16, 128], strides = [1, 1]} : vector<16x384xf32> to vector<16x128xf32>
    %65 = arith.addf %63, %64 : vector<16x128xf32>
    %66 = arith.negf %65 : vector<16x128xf32>
    %67 = math.exp %66 : vector<16x128xf32>
    %cst_20 = arith.constant 1.000000e+00 : f32
    %68 = vector.broadcast %cst_20 : f32 to vector<16x128xf32>
    %69 = arith.addf %68, %67 : vector<16x128xf32>
    %70 = arith.divf %68, %69 : vector<16x128xf32>
    %71 = vector.extract_strided_slice %51 {offsets = [0, 256], sizes = [16, 128], strides = [1, 1]} : vector<16x384xf32> to vector<16x128xf32>
    %72 = vector.extract_strided_slice %54 {offsets = [0, 256], sizes = [16, 128], strides = [1, 1]} : vector<16x384xf32> to vector<16x128xf32>
    %c0_21 = arith.constant 0 : index
    %c0_22 = arith.constant 0 : index
    %73 = vector.load %arg5[%c0_21, %c0_22] : memref<1x128xf32, #tpu.memory_space<vmem>>, vector<1x128xf32>
    %74 = vector.broadcast %73 : vector<1x128xf32> to vector<16x128xf32>
    %75 = arith.addf %72, %74 : vector<16x128xf32>
    %76 = arith.mulf %62, %75 : vector<16x128xf32>
    %77 = arith.addf %71, %76 : vector<16x128xf32>
    %78 = math.tanh %77 : vector<16x128xf32>
    %cst_23 = arith.constant 1.000000e+00 : f32
    %79 = vector.broadcast %cst_23 : f32 to vector<16x128xf32>
    %80 = arith.subf %79, %70 : vector<16x128xf32>
    %81 = arith.mulf %80, %78 : vector<16x128xf32>
    %82 = arith.mulf %70, %47 : vector<16x128xf32>
    %83 = arith.addf %81, %82 : vector<16x128xf32>
    %84 = arith.addi %3, %c1_i32 : i32
    %85 = vector.broadcast %84 : i32 to vector<16x1xi32>
    %86 = arith.cmpi sgt, %4, %85 : vector<16x1xi32>
    %87 = vector.shape_cast %86 : vector<16x1xi1> to vector<16x1xi1>
    %88 = vector.broadcast %87 : vector<16x1xi1> to vector<16x128xi1>
    %89 = arith.select %88, %83, %47 : vector<16x128xi1>, vector<16x128xf32>
    %c2_i32 = arith.constant 2 : i32
    %90 = arith.index_cast %c2_i32 : i32 to index
    %c0_24 = arith.constant 0 : index
    %c0_25 = arith.constant 0 : index
    %91 = vector.load %arg2[%90, %c0_24, %c0_25] : memref<8x16x384xbf16, #tpu.memory_space<vmem>>, vector<1x16x384xbf16>
    %92 = vector.shape_cast %91 : vector<1x16x384xbf16> to vector<16x384xbf16>
    %93 = arith.extf %92 : vector<16x384xbf16> to vector<16x384xf32>
    %94 = arith.truncf %89 : vector<16x128xf32> to vector<16x128xbf16>
    %c0_26 = arith.constant 0 : index
    %c0_27 = arith.constant 0 : index
    %95 = vector.load %arg4[%c0_26, %c0_27] : memref<128x384xbf16, #tpu.memory_space<vmem>>, vector<128x384xbf16>
    %cst_28 = arith.constant dense<0.000000e+00> : vector<16x384xf32>
    %96 = tpu.matmul %94, %95, %cst_28 {dimension_numbers = #tpu.dot_dimension_numbers<[1], [0], [0], [1], [0, 0, 1, 1], [], []>} : vector<16x128xbf16>, vector<128x384xbf16>, vector<16x384xf32> -> vector<16x384xf32>
    %97 = vector.extract_strided_slice %93 {offsets = [0, 0], sizes = [16, 128], strides = [1, 1]} : vector<16x384xf32> to vector<16x128xf32>
    %98 = vector.extract_strided_slice %96 {offsets = [0, 0], sizes = [16, 128], strides = [1, 1]} : vector<16x384xf32> to vector<16x128xf32>
    %99 = arith.addf %97, %98 : vector<16x128xf32>
    %100 = arith.negf %99 : vector<16x128xf32>
    %101 = math.exp %100 : vector<16x128xf32>
    %cst_29 = arith.constant 1.000000e+00 : f32
    %102 = vector.broadcast %cst_29 : f32 to vector<16x128xf32>
    %103 = arith.addf %102, %101 : vector<16x128xf32>
    %104 = arith.divf %102, %103 : vector<16x128xf32>
    %105 = vector.extract_strided_slice %93 {offsets = [0, 128], sizes = [16, 128], strides = [1, 1]} : vector<16x384xf32> to vector<16x128xf32>
    %106 = vector.extract_strided_slice %96 {offsets = [0, 128], sizes = [16, 128], strides = [1, 1]} : vector<16x384xf32> to vector<16x128xf32>
    %107 = arith.addf %105, %106 : vector<16x128xf32>
    %108 = arith.negf %107 : vector<16x128xf32>
    %109 = math.exp %108 : vector<16x128xf32>
    %cst_30 = arith.constant 1.000000e+00 : f32
    %110 = vector.broadcast %cst_30 : f32 to vector<16x128xf32>
    %111 = arith.addf %110, %109 : vector<16x128xf32>
    %112 = arith.divf %110, %111 : vector<16x128xf32>
    %113 = vector.extract_strided_slice %93 {offsets = [0, 256], sizes = [16, 128], strides = [1, 1]} : vector<16x384xf32> to vector<16x128xf32>
    %114 = vector.extract_strided_slice %96 {offsets = [0, 256], sizes = [16, 128], strides = [1, 1]} : vector<16x384xf32> to vector<16x128xf32>
    %c0_31 = arith.constant 0 : index
    %c0_32 = arith.constant 0 : index
    %115 = vector.load %arg5[%c0_31, %c0_32] : memref<1x128xf32, #tpu.memory_space<vmem>>, vector<1x128xf32>
    %116 = vector.broadcast %115 : vector<1x128xf32> to vector<16x128xf32>
    %117 = arith.addf %114, %116 : vector<16x128xf32>
    %118 = arith.mulf %104, %117 : vector<16x128xf32>
    %119 = arith.addf %113, %118 : vector<16x128xf32>
    %120 = math.tanh %119 : vector<16x128xf32>
    %cst_33 = arith.constant 1.000000e+00 : f32
    %121 = vector.broadcast %cst_33 : f32 to vector<16x128xf32>
    %122 = arith.subf %121, %112 : vector<16x128xf32>
    %123 = arith.mulf %122, %120 : vector<16x128xf32>
    %124 = arith.mulf %112, %89 : vector<16x128xf32>
    %125 = arith.addf %123, %124 : vector<16x128xf32>
    %126 = arith.addi %3, %c2_i32 : i32
    %127 = vector.broadcast %126 : i32 to vector<16x1xi32>
    %128 = arith.cmpi sgt, %4, %127 : vector<16x1xi32>
    %129 = vector.shape_cast %128 : vector<16x1xi1> to vector<16x1xi1>
    %130 = vector.broadcast %129 : vector<16x1xi1> to vector<16x128xi1>
    %131 = arith.select %130, %125, %89 : vector<16x128xi1>, vector<16x128xf32>
    %c3_i32 = arith.constant 3 : i32
    %132 = arith.index_cast %c3_i32 : i32 to index
    %c0_34 = arith.constant 0 : index
    %c0_35 = arith.constant 0 : index
    %133 = vector.load %arg2[%132, %c0_34, %c0_35] : memref<8x16x384xbf16, #tpu.memory_space<vmem>>, vector<1x16x384xbf16>
    %134 = vector.shape_cast %133 : vector<1x16x384xbf16> to vector<16x384xbf16>
    %135 = arith.extf %134 : vector<16x384xbf16> to vector<16x384xf32>
    %136 = arith.truncf %131 : vector<16x128xf32> to vector<16x128xbf16>
    %c0_36 = arith.constant 0 : index
    %c0_37 = arith.constant 0 : index
    %137 = vector.load %arg4[%c0_36, %c0_37] : memref<128x384xbf16, #tpu.memory_space<vmem>>, vector<128x384xbf16>
    %cst_38 = arith.constant dense<0.000000e+00> : vector<16x384xf32>
    %138 = tpu.matmul %136, %137, %cst_38 {dimension_numbers = #tpu.dot_dimension_numbers<[1], [0], [0], [1], [0, 0, 1, 1], [], []>} : vector<16x128xbf16>, vector<128x384xbf16>, vector<16x384xf32> -> vector<16x384xf32>
    %139 = vector.extract_strided_slice %135 {offsets = [0, 0], sizes = [16, 128], strides = [1, 1]} : vector<16x384xf32> to vector<16x128xf32>
    %140 = vector.extract_strided_slice %138 {offsets = [0, 0], sizes = [16, 128], strides = [1, 1]} : vector<16x384xf32> to vector<16x128xf32>
    %141 = arith.addf %139, %140 : vector<16x128xf32>
    %142 = arith.negf %141 : vector<16x128xf32>
    %143 = math.exp %142 : vector<16x128xf32>
    %cst_39 = arith.constant 1.000000e+00 : f32
    %144 = vector.broadcast %cst_39 : f32 to vector<16x128xf32>
    %145 = arith.addf %144, %143 : vector<16x128xf32>
    %146 = arith.divf %144, %145 : vector<16x128xf32>
    %147 = vector.extract_strided_slice %135 {offsets = [0, 128], sizes = [16, 128], strides = [1, 1]} : vector<16x384xf32> to vector<16x128xf32>
    %148 = vector.extract_strided_slice %138 {offsets = [0, 128], sizes = [16, 128], strides = [1, 1]} : vector<16x384xf32> to vector<16x128xf32>
    %149 = arith.addf %147, %148 : vector<16x128xf32>
    %150 = arith.negf %149 : vector<16x128xf32>
    %151 = math.exp %150 : vector<16x128xf32>
    %cst_40 = arith.constant 1.000000e+00 : f32
    %152 = vector.broadcast %cst_40 : f32 to vector<16x128xf32>
    %153 = arith.addf %152, %151 : vector<16x128xf32>
    %154 = arith.divf %152, %153 : vector<16x128xf32>
    %155 = vector.extract_strided_slice %135 {offsets = [0, 256], sizes = [16, 128], strides = [1, 1]} : vector<16x384xf32> to vector<16x128xf32>
    %156 = vector.extract_strided_slice %138 {offsets = [0, 256], sizes = [16, 128], strides = [1, 1]} : vector<16x384xf32> to vector<16x128xf32>
    %c0_41 = arith.constant 0 : index
    %c0_42 = arith.constant 0 : index
    %157 = vector.load %arg5[%c0_41, %c0_42] : memref<1x128xf32, #tpu.memory_space<vmem>>, vector<1x128xf32>
    %158 = vector.broadcast %157 : vector<1x128xf32> to vector<16x128xf32>
    %159 = arith.addf %156, %158 : vector<16x128xf32>
    %160 = arith.mulf %146, %159 : vector<16x128xf32>
    %161 = arith.addf %155, %160 : vector<16x128xf32>
    %162 = math.tanh %161 : vector<16x128xf32>
    %cst_43 = arith.constant 1.000000e+00 : f32
    %163 = vector.broadcast %cst_43 : f32 to vector<16x128xf32>
    %164 = arith.subf %163, %154 : vector<16x128xf32>
    %165 = arith.mulf %164, %162 : vector<16x128xf32>
    %166 = arith.mulf %154, %131 : vector<16x128xf32>
    %167 = arith.addf %165, %166 : vector<16x128xf32>
    %168 = arith.addi %3, %c3_i32 : i32
    %169 = vector.broadcast %168 : i32 to vector<16x1xi32>
    %170 = arith.cmpi sgt, %4, %169 : vector<16x1xi32>
    %171 = vector.shape_cast %170 : vector<16x1xi1> to vector<16x1xi1>
    %172 = vector.broadcast %171 : vector<16x1xi1> to vector<16x128xi1>
    %173 = arith.select %172, %167, %131 : vector<16x128xi1>, vector<16x128xf32>
    %c4_i32 = arith.constant 4 : i32
    %174 = arith.index_cast %c4_i32 : i32 to index
    %c0_44 = arith.constant 0 : index
    %c0_45 = arith.constant 0 : index
    %175 = vector.load %arg2[%174, %c0_44, %c0_45] : memref<8x16x384xbf16, #tpu.memory_space<vmem>>, vector<1x16x384xbf16>
    %176 = vector.shape_cast %175 : vector<1x16x384xbf16> to vector<16x384xbf16>
    %177 = arith.extf %176 : vector<16x384xbf16> to vector<16x384xf32>
    %178 = arith.truncf %173 : vector<16x128xf32> to vector<16x128xbf16>
    %c0_46 = arith.constant 0 : index
    %c0_47 = arith.constant 0 : index
    %179 = vector.load %arg4[%c0_46, %c0_47] : memref<128x384xbf16, #tpu.memory_space<vmem>>, vector<128x384xbf16>
    %cst_48 = arith.constant dense<0.000000e+00> : vector<16x384xf32>
    %180 = tpu.matmul %178, %179, %cst_48 {dimension_numbers = #tpu.dot_dimension_numbers<[1], [0], [0], [1], [0, 0, 1, 1], [], []>} : vector<16x128xbf16>, vector<128x384xbf16>, vector<16x384xf32> -> vector<16x384xf32>
    %181 = vector.extract_strided_slice %177 {offsets = [0, 0], sizes = [16, 128], strides = [1, 1]} : vector<16x384xf32> to vector<16x128xf32>
    %182 = vector.extract_strided_slice %180 {offsets = [0, 0], sizes = [16, 128], strides = [1, 1]} : vector<16x384xf32> to vector<16x128xf32>
    %183 = arith.addf %181, %182 : vector<16x128xf32>
    %184 = arith.negf %183 : vector<16x128xf32>
    %185 = math.exp %184 : vector<16x128xf32>
    %cst_49 = arith.constant 1.000000e+00 : f32
    %186 = vector.broadcast %cst_49 : f32 to vector<16x128xf32>
    %187 = arith.addf %186, %185 : vector<16x128xf32>
    %188 = arith.divf %186, %187 : vector<16x128xf32>
    %189 = vector.extract_strided_slice %177 {offsets = [0, 128], sizes = [16, 128], strides = [1, 1]} : vector<16x384xf32> to vector<16x128xf32>
    %190 = vector.extract_strided_slice %180 {offsets = [0, 128], sizes = [16, 128], strides = [1, 1]} : vector<16x384xf32> to vector<16x128xf32>
    %191 = arith.addf %189, %190 : vector<16x128xf32>
    %192 = arith.negf %191 : vector<16x128xf32>
    %193 = math.exp %192 : vector<16x128xf32>
    %cst_50 = arith.constant 1.000000e+00 : f32
    %194 = vector.broadcast %cst_50 : f32 to vector<16x128xf32>
    %195 = arith.addf %194, %193 : vector<16x128xf32>
    %196 = arith.divf %194, %195 : vector<16x128xf32>
    %197 = vector.extract_strided_slice %177 {offsets = [0, 256], sizes = [16, 128], strides = [1, 1]} : vector<16x384xf32> to vector<16x128xf32>
    %198 = vector.extract_strided_slice %180 {offsets = [0, 256], sizes = [16, 128], strides = [1, 1]} : vector<16x384xf32> to vector<16x128xf32>
    %c0_51 = arith.constant 0 : index
    %c0_52 = arith.constant 0 : index
    %199 = vector.load %arg5[%c0_51, %c0_52] : memref<1x128xf32, #tpu.memory_space<vmem>>, vector<1x128xf32>
    %200 = vector.broadcast %199 : vector<1x128xf32> to vector<16x128xf32>
    %201 = arith.addf %198, %200 : vector<16x128xf32>
    %202 = arith.mulf %188, %201 : vector<16x128xf32>
    %203 = arith.addf %197, %202 : vector<16x128xf32>
    %204 = math.tanh %203 : vector<16x128xf32>
    %cst_53 = arith.constant 1.000000e+00 : f32
    %205 = vector.broadcast %cst_53 : f32 to vector<16x128xf32>
    %206 = arith.subf %205, %196 : vector<16x128xf32>
    %207 = arith.mulf %206, %204 : vector<16x128xf32>
    %208 = arith.mulf %196, %173 : vector<16x128xf32>
    %209 = arith.addf %207, %208 : vector<16x128xf32>
    %210 = arith.addi %3, %c4_i32 : i32
    %211 = vector.broadcast %210 : i32 to vector<16x1xi32>
    %212 = arith.cmpi sgt, %4, %211 : vector<16x1xi32>
    %213 = vector.shape_cast %212 : vector<16x1xi1> to vector<16x1xi1>
    %214 = vector.broadcast %213 : vector<16x1xi1> to vector<16x128xi1>
    %215 = arith.select %214, %209, %173 : vector<16x128xi1>, vector<16x128xf32>
    %c5_i32 = arith.constant 5 : i32
    %216 = arith.index_cast %c5_i32 : i32 to index
    %c0_54 = arith.constant 0 : index
    %c0_55 = arith.constant 0 : index
    %217 = vector.load %arg2[%216, %c0_54, %c0_55] : memref<8x16x384xbf16, #tpu.memory_space<vmem>>, vector<1x16x384xbf16>
    %218 = vector.shape_cast %217 : vector<1x16x384xbf16> to vector<16x384xbf16>
    %219 = arith.extf %218 : vector<16x384xbf16> to vector<16x384xf32>
    %220 = arith.truncf %215 : vector<16x128xf32> to vector<16x128xbf16>
    %c0_56 = arith.constant 0 : index
    %c0_57 = arith.constant 0 : index
    %221 = vector.load %arg4[%c0_56, %c0_57] : memref<128x384xbf16, #tpu.memory_space<vmem>>, vector<128x384xbf16>
    %cst_58 = arith.constant dense<0.000000e+00> : vector<16x384xf32>
    %222 = tpu.matmul %220, %221, %cst_58 {dimension_numbers = #tpu.dot_dimension_numbers<[1], [0], [0], [1], [0, 0, 1, 1], [], []>} : vector<16x128xbf16>, vector<128x384xbf16>, vector<16x384xf32> -> vector<16x384xf32>
    %223 = vector.extract_strided_slice %219 {offsets = [0, 0], sizes = [16, 128], strides = [1, 1]} : vector<16x384xf32> to vector<16x128xf32>
    %224 = vector.extract_strided_slice %222 {offsets = [0, 0], sizes = [16, 128], strides = [1, 1]} : vector<16x384xf32> to vector<16x128xf32>
    %225 = arith.addf %223, %224 : vector<16x128xf32>
    %226 = arith.negf %225 : vector<16x128xf32>
    %227 = math.exp %226 : vector<16x128xf32>
    %cst_59 = arith.constant 1.000000e+00 : f32
    %228 = vector.broadcast %cst_59 : f32 to vector<16x128xf32>
    %229 = arith.addf %228, %227 : vector<16x128xf32>
    %230 = arith.divf %228, %229 : vector<16x128xf32>
    %231 = vector.extract_strided_slice %219 {offsets = [0, 128], sizes = [16, 128], strides = [1, 1]} : vector<16x384xf32> to vector<16x128xf32>
    %232 = vector.extract_strided_slice %222 {offsets = [0, 128], sizes = [16, 128], strides = [1, 1]} : vector<16x384xf32> to vector<16x128xf32>
    %233 = arith.addf %231, %232 : vector<16x128xf32>
    %234 = arith.negf %233 : vector<16x128xf32>
    %235 = math.exp %234 : vector<16x128xf32>
    %cst_60 = arith.constant 1.000000e+00 : f32
    %236 = vector.broadcast %cst_60 : f32 to vector<16x128xf32>
    %237 = arith.addf %236, %235 : vector<16x128xf32>
    %238 = arith.divf %236, %237 : vector<16x128xf32>
    %239 = vector.extract_strided_slice %219 {offsets = [0, 256], sizes = [16, 128], strides = [1, 1]} : vector<16x384xf32> to vector<16x128xf32>
    %240 = vector.extract_strided_slice %222 {offsets = [0, 256], sizes = [16, 128], strides = [1, 1]} : vector<16x384xf32> to vector<16x128xf32>
    %c0_61 = arith.constant 0 : index
    %c0_62 = arith.constant 0 : index
    %241 = vector.load %arg5[%c0_61, %c0_62] : memref<1x128xf32, #tpu.memory_space<vmem>>, vector<1x128xf32>
    %242 = vector.broadcast %241 : vector<1x128xf32> to vector<16x128xf32>
    %243 = arith.addf %240, %242 : vector<16x128xf32>
    %244 = arith.mulf %230, %243 : vector<16x128xf32>
    %245 = arith.addf %239, %244 : vector<16x128xf32>
    %246 = math.tanh %245 : vector<16x128xf32>
    %cst_63 = arith.constant 1.000000e+00 : f32
    %247 = vector.broadcast %cst_63 : f32 to vector<16x128xf32>
    %248 = arith.subf %247, %238 : vector<16x128xf32>
    %249 = arith.mulf %248, %246 : vector<16x128xf32>
    %250 = arith.mulf %238, %215 : vector<16x128xf32>
    %251 = arith.addf %249, %250 : vector<16x128xf32>
    %252 = arith.addi %3, %c5_i32 : i32
    %253 = vector.broadcast %252 : i32 to vector<16x1xi32>
    %254 = arith.cmpi sgt, %4, %253 : vector<16x1xi32>
    %255 = vector.shape_cast %254 : vector<16x1xi1> to vector<16x1xi1>
    %256 = vector.broadcast %255 : vector<16x1xi1> to vector<16x128xi1>
    %257 = arith.select %256, %251, %215 : vector<16x128xi1>, vector<16x128xf32>
    %c6_i32 = arith.constant 6 : i32
    %258 = arith.index_cast %c6_i32 : i32 to index
    %c0_64 = arith.constant 0 : index
    %c0_65 = arith.constant 0 : index
    %259 = vector.load %arg2[%258, %c0_64, %c0_65] : memref<8x16x384xbf16, #tpu.memory_space<vmem>>, vector<1x16x384xbf16>
    %260 = vector.shape_cast %259 : vector<1x16x384xbf16> to vector<16x384xbf16>
    %261 = arith.extf %260 : vector<16x384xbf16> to vector<16x384xf32>
    %262 = arith.truncf %257 : vector<16x128xf32> to vector<16x128xbf16>
    %c0_66 = arith.constant 0 : index
    %c0_67 = arith.constant 0 : index
    %263 = vector.load %arg4[%c0_66, %c0_67] : memref<128x384xbf16, #tpu.memory_space<vmem>>, vector<128x384xbf16>
    %cst_68 = arith.constant dense<0.000000e+00> : vector<16x384xf32>
    %264 = tpu.matmul %262, %263, %cst_68 {dimension_numbers = #tpu.dot_dimension_numbers<[1], [0], [0], [1], [0, 0, 1, 1], [], []>} : vector<16x128xbf16>, vector<128x384xbf16>, vector<16x384xf32> -> vector<16x384xf32>
    %265 = vector.extract_strided_slice %261 {offsets = [0, 0], sizes = [16, 128], strides = [1, 1]} : vector<16x384xf32> to vector<16x128xf32>
    %266 = vector.extract_strided_slice %264 {offsets = [0, 0], sizes = [16, 128], strides = [1, 1]} : vector<16x384xf32> to vector<16x128xf32>
    %267 = arith.addf %265, %266 : vector<16x128xf32>
    %268 = arith.negf %267 : vector<16x128xf32>
    %269 = math.exp %268 : vector<16x128xf32>
    %cst_69 = arith.constant 1.000000e+00 : f32
    %270 = vector.broadcast %cst_69 : f32 to vector<16x128xf32>
    %271 = arith.addf %270, %269 : vector<16x128xf32>
    %272 = arith.divf %270, %271 : vector<16x128xf32>
    %273 = vector.extract_strided_slice %261 {offsets = [0, 128], sizes = [16, 128], strides = [1, 1]} : vector<16x384xf32> to vector<16x128xf32>
    %274 = vector.extract_strided_slice %264 {offsets = [0, 128], sizes = [16, 128], strides = [1, 1]} : vector<16x384xf32> to vector<16x128xf32>
    %275 = arith.addf %273, %274 : vector<16x128xf32>
    %276 = arith.negf %275 : vector<16x128xf32>
    %277 = math.exp %276 : vector<16x128xf32>
    %cst_70 = arith.constant 1.000000e+00 : f32
    %278 = vector.broadcast %cst_70 : f32 to vector<16x128xf32>
    %279 = arith.addf %278, %277 : vector<16x128xf32>
    %280 = arith.divf %278, %279 : vector<16x128xf32>
    %281 = vector.extract_strided_slice %261 {offsets = [0, 256], sizes = [16, 128], strides = [1, 1]} : vector<16x384xf32> to vector<16x128xf32>
    %282 = vector.extract_strided_slice %264 {offsets = [0, 256], sizes = [16, 128], strides = [1, 1]} : vector<16x384xf32> to vector<16x128xf32>
    %c0_71 = arith.constant 0 : index
    %c0_72 = arith.constant 0 : index
    %283 = vector.load %arg5[%c0_71, %c0_72] : memref<1x128xf32, #tpu.memory_space<vmem>>, vector<1x128xf32>
    %284 = vector.broadcast %283 : vector<1x128xf32> to vector<16x128xf32>
    %285 = arith.addf %282, %284 : vector<16x128xf32>
    %286 = arith.mulf %272, %285 : vector<16x128xf32>
    %287 = arith.addf %281, %286 : vector<16x128xf32>
    %288 = math.tanh %287 : vector<16x128xf32>
    %cst_73 = arith.constant 1.000000e+00 : f32
    %289 = vector.broadcast %cst_73 : f32 to vector<16x128xf32>
    %290 = arith.subf %289, %280 : vector<16x128xf32>
    %291 = arith.mulf %290, %288 : vector<16x128xf32>
    %292 = arith.mulf %280, %257 : vector<16x128xf32>
    %293 = arith.addf %291, %292 : vector<16x128xf32>
    %294 = arith.addi %3, %c6_i32 : i32
    %295 = vector.broadcast %294 : i32 to vector<16x1xi32>
    %296 = arith.cmpi sgt, %4, %295 : vector<16x1xi32>
    %297 = vector.shape_cast %296 : vector<16x1xi1> to vector<16x1xi1>
    %298 = vector.broadcast %297 : vector<16x1xi1> to vector<16x128xi1>
    %299 = arith.select %298, %293, %257 : vector<16x128xi1>, vector<16x128xf32>
    %c7_i32 = arith.constant 7 : i32
    %300 = arith.index_cast %c7_i32 : i32 to index
    %c0_74 = arith.constant 0 : index
    %c0_75 = arith.constant 0 : index
    %301 = vector.load %arg2[%300, %c0_74, %c0_75] : memref<8x16x384xbf16, #tpu.memory_space<vmem>>, vector<1x16x384xbf16>
    %302 = vector.shape_cast %301 : vector<1x16x384xbf16> to vector<16x384xbf16>
    %303 = arith.extf %302 : vector<16x384xbf16> to vector<16x384xf32>
    %304 = arith.truncf %299 : vector<16x128xf32> to vector<16x128xbf16>
    %c0_76 = arith.constant 0 : index
    %c0_77 = arith.constant 0 : index
    %305 = vector.load %arg4[%c0_76, %c0_77] : memref<128x384xbf16, #tpu.memory_space<vmem>>, vector<128x384xbf16>
    %cst_78 = arith.constant dense<0.000000e+00> : vector<16x384xf32>
    %306 = tpu.matmul %304, %305, %cst_78 {dimension_numbers = #tpu.dot_dimension_numbers<[1], [0], [0], [1], [0, 0, 1, 1], [], []>} : vector<16x128xbf16>, vector<128x384xbf16>, vector<16x384xf32> -> vector<16x384xf32>
    %307 = vector.extract_strided_slice %303 {offsets = [0, 0], sizes = [16, 128], strides = [1, 1]} : vector<16x384xf32> to vector<16x128xf32>
    %308 = vector.extract_strided_slice %306 {offsets = [0, 0], sizes = [16, 128], strides = [1, 1]} : vector<16x384xf32> to vector<16x128xf32>
    %309 = arith.addf %307, %308 : vector<16x128xf32>
    %310 = arith.negf %309 : vector<16x128xf32>
    %311 = math.exp %310 : vector<16x128xf32>
    %cst_79 = arith.constant 1.000000e+00 : f32
    %312 = vector.broadcast %cst_79 : f32 to vector<16x128xf32>
    %313 = arith.addf %312, %311 : vector<16x128xf32>
    %314 = arith.divf %312, %313 : vector<16x128xf32>
    %315 = vector.extract_strided_slice %303 {offsets = [0, 128], sizes = [16, 128], strides = [1, 1]} : vector<16x384xf32> to vector<16x128xf32>
    %316 = vector.extract_strided_slice %306 {offsets = [0, 128], sizes = [16, 128], strides = [1, 1]} : vector<16x384xf32> to vector<16x128xf32>
    %317 = arith.addf %315, %316 : vector<16x128xf32>
    %318 = arith.negf %317 : vector<16x128xf32>
    %319 = math.exp %318 : vector<16x128xf32>
    %cst_80 = arith.constant 1.000000e+00 : f32
    %320 = vector.broadcast %cst_80 : f32 to vector<16x128xf32>
    %321 = arith.addf %320, %319 : vector<16x128xf32>
    %322 = arith.divf %320, %321 : vector<16x128xf32>
    %323 = vector.extract_strided_slice %303 {offsets = [0, 256], sizes = [16, 128], strides = [1, 1]} : vector<16x384xf32> to vector<16x128xf32>
    %324 = vector.extract_strided_slice %306 {offsets = [0, 256], sizes = [16, 128], strides = [1, 1]} : vector<16x384xf32> to vector<16x128xf32>
    %c0_81 = arith.constant 0 : index
    %c0_82 = arith.constant 0 : index
    %325 = vector.load %arg5[%c0_81, %c0_82] : memref<1x128xf32, #tpu.memory_space<vmem>>, vector<1x128xf32>
    %326 = vector.broadcast %325 : vector<1x128xf32> to vector<16x128xf32>
    %327 = arith.addf %324, %326 : vector<16x128xf32>
    %328 = arith.mulf %314, %327 : vector<16x128xf32>
    %329 = arith.addf %323, %328 : vector<16x128xf32>
    %330 = math.tanh %329 : vector<16x128xf32>
    %cst_83 = arith.constant 1.000000e+00 : f32
    %331 = vector.broadcast %cst_83 : f32 to vector<16x128xf32>
    %332 = arith.subf %331, %322 : vector<16x128xf32>
    %333 = arith.mulf %332, %330 : vector<16x128xf32>
    %334 = arith.mulf %322, %299 : vector<16x128xf32>
    %335 = arith.addf %333, %334 : vector<16x128xf32>
    %336 = arith.addi %3, %c7_i32 : i32
    %337 = vector.broadcast %336 : i32 to vector<16x1xi32>
    %338 = arith.cmpi sgt, %4, %337 : vector<16x1xi32>
    %339 = vector.shape_cast %338 : vector<16x1xi1> to vector<16x1xi1>
    %340 = vector.broadcast %339 : vector<16x1xi1> to vector<16x128xi1>
    %341 = arith.select %340, %335, %299 : vector<16x128xi1>, vector<16x128xf32>
    %c8_i32_84 = arith.constant 8 : i32
    %c0_85 = arith.constant 0 : index
    %c0_86 = arith.constant 0 : index
    %342 = vector.load %arg6[%c0_85, %c0_86] : memref<16x128xf32, #tpu.memory_space<vmem>>, vector<16x128xf32>
    tpu.vector_store %arg6[%c0_85, %c0_86], %341 {strides = array<i32>} : memref<16x128xf32, #tpu.memory_space<vmem>>, vector<16x128xf32>,
    return
  }
  func.func @transform_0(%arg0: i32, %arg1: i32) -> (i32, i32, i32) {
    %c0_i32 = arith.constant 0 : i32
    %c0_i32_0 = arith.constant 0 : i32
    return %arg1, %arg0, %c0_i32 : i32, i32, i32
  }
  func.func @transform_1(%arg0: i32, %arg1: i32) -> (i32, i32) {
    %c0_i32 = arith.constant 0 : i32
    %c0_i32_0 = arith.constant 0 : i32
    return %arg0, %c0_i32 : i32, i32
  }
  func.func @transform_2(%arg0: i32, %arg1: i32) -> (i32, i32) {
    %c0_i32 = arith.constant 0 : i32
    %c0_i32_0 = arith.constant 0 : i32
    %c0_i32_1 = arith.constant 0 : i32
    return %c0_i32, %c0_i32_0 : i32, i32
  }
  func.func @transform_3(%arg0: i32, %arg1: i32) -> (i32, i32) {
    %c0_i32 = arith.constant 0 : i32
    %c0_i32_0 = arith.constant 0 : i32
    %c0_i32_1 = arith.constant 0 : i32
    return %c0_i32, %c0_i32_0 : i32, i32
  }
  func.func @transform_4(%arg0: i32, %arg1: i32) -> (i32, i32) {
    %c0_i32 = arith.constant 0 : i32
    %c0_i32_0 = arith.constant 0 : i32
    return %arg0, %c0_i32 : i32, i32
  }
}

module attributes {stable_mosaic.version = 11 : i64} {
  func.func @_gates_kernel(%arg0: i32, %arg1: memref<96x128xbf16, #tpu.memory_space<vmem>>, %arg2: memref<128x384xbf16, #tpu.memory_space<vmem>>, %arg3: memref<1x384xf32, #tpu.memory_space<vmem>>, %arg4: memref<96x384xbf16, #tpu.memory_space<vmem>>) attributes {dimension_semantics = [#tpu.dimension_semantics<parallel>], iteration_bounds = array<i64: 1>, scalar_prefetch = 0 : i64, scratch_operands = 0 : i64, tpu.core_type = #tpu.core_type<tc>, window_params = [{transform_indices = @transform_0, window_bounds = array<i64: 96, 128>}, {pipeline_mode = #tpu.pipeline_mode<synchronous>, transform_indices = @transform_1, window_bounds = array<i64: 128, 384>}, {pipeline_mode = #tpu.pipeline_mode<synchronous>, transform_indices = @transform_2, window_bounds = array<i64: 1, 384>}, {transform_indices = @transform_3, window_bounds = array<i64: 96, 384>}]} {
    %c0 = arith.constant 0 : index
    %c0_0 = arith.constant 0 : index
    %0 = vector.load %arg1[%c0, %c0_0] : memref<96x128xbf16, #tpu.memory_space<vmem>>, vector<96x128xbf16>
    %c0_1 = arith.constant 0 : index
    %c0_2 = arith.constant 0 : index
    %1 = vector.load %arg2[%c0_1, %c0_2] : memref<128x384xbf16, #tpu.memory_space<vmem>>, vector<128x384xbf16>
    %cst = arith.constant dense<0.000000e+00> : vector<96x384xf32>
    %2 = tpu.matmul %0, %1, %cst {dimension_numbers = #tpu.dot_dimension_numbers<[1], [0], [0], [1], [0, 0, 1, 1], [], []>} : vector<96x128xbf16>, vector<128x384xbf16>, vector<96x384xf32> -> vector<96x384xf32>
    %c0_3 = arith.constant 0 : index
    %c0_4 = arith.constant 0 : index
    %3 = vector.load %arg3[%c0_3, %c0_4] : memref<1x384xf32, #tpu.memory_space<vmem>>, vector<1x384xf32>
    %4 = vector.broadcast %3 : vector<1x384xf32> to vector<96x384xf32>
    %5 = arith.addf %2, %4 : vector<96x384xf32>
    %6 = arith.truncf %5 : vector<96x384xf32> to vector<96x384xbf16>
    %c0_5 = arith.constant 0 : index
    %c0_6 = arith.constant 0 : index
    %7 = vector.load %arg4[%c0_5, %c0_6] : memref<96x384xbf16, #tpu.memory_space<vmem>>, vector<96x384xbf16>
    tpu.vector_store %arg4[%c0_5, %c0_6], %6 {strides = array<i32>} : memref<96x384xbf16, #tpu.memory_space<vmem>>, vector<96x384xbf16>,
    return
  }
  func.func @transform_0(%arg0: i32) -> (i32, i32) {
    %c0_i32 = arith.constant 0 : i32
    %c0_i32_0 = arith.constant 0 : i32
    return %arg0, %c0_i32 : i32, i32
  }
  func.func @transform_1(%arg0: i32) -> (i32, i32) {
    %c0_i32 = arith.constant 0 : i32
    %c0_i32_0 = arith.constant 0 : i32
    %c0_i32_1 = arith.constant 0 : i32
    return %c0_i32, %c0_i32_0 : i32, i32
  }
  func.func @transform_2(%arg0: i32) -> (i32, i32) {
    %c0_i32 = arith.constant 0 : i32
    %c0_i32_0 = arith.constant 0 : i32
    %c0_i32_1 = arith.constant 0 : i32
    return %c0_i32, %c0_i32_0 : i32, i32
  }
  func.func @transform_3(%arg0: i32) -> (i32, i32) {
    %c0_i32 = arith.constant 0 : i32
    %c0_i32_0 = arith.constant 0 : i32
    return %arg0, %c0_i32 : i32, i32
  }
}

module attributes {stable_mosaic.version = 11 : i64} {
  func.func @_decoder_rec_kernel(%arg0: i32, %arg1: i32, %arg2: memref<6x16x384xbf16, #tpu.memory_space<vmem>>, %arg3: memref<16x128xf32, #tpu.memory_space<vmem>>, %arg4: memref<128x384xbf16, #tpu.memory_space<vmem>>, %arg5: memref<1x128xf32, #tpu.memory_space<vmem>>, %arg6: memref<6x16x128xbf16, #tpu.memory_space<vmem>>, %arg7: memref<16x128xf32, #tpu.memory_space<vmem>>) attributes {dimension_semantics = [#tpu.dimension_semantics<parallel>, #tpu.dimension_semantics<arbitrary>], iteration_bounds = array<i64: 1, 1>, scalar_prefetch = 0 : i64, scratch_operands = 0 : i64, tpu.core_type = #tpu.core_type<tc>, window_params = [{transform_indices = @transform_0, window_bounds = array<i64: 6, 16, 384>}, {transform_indices = @transform_1, window_bounds = array<i64: 16, 128>}, {pipeline_mode = #tpu.pipeline_mode<synchronous>, transform_indices = @transform_2, window_bounds = array<i64: 128, 384>}, {pipeline_mode = #tpu.pipeline_mode<synchronous>, transform_indices = @transform_3, window_bounds = array<i64: 1, 128>}, {transform_indices = @transform_4, window_bounds = array<i64: 6, 16, 128>}, {transform_indices = @transform_5, window_bounds = array<i64: 16, 128>}]} {
    %c0_i32 = arith.constant 0 : i32
    %0 = arith.cmpi eq, %arg1, %c0_i32 : i32
    %1 = arith.extui %0 : i1 to i32
    %c0_i32_0 = arith.constant 0 : i32
    %2 = arith.cmpi ne, %1, %c0_i32_0 : i32
    scf.if %2 {
      %c0_83 = arith.constant 0 : index
      %c0_84 = arith.constant 0 : index
      %270 = vector.load %arg3[%c0_83, %c0_84] : memref<16x128xf32, #tpu.memory_space<vmem>>, vector<16x128xf32>
      %c0_85 = arith.constant 0 : index
      %c0_86 = arith.constant 0 : index
      %271 = vector.load %arg7[%c0_85, %c0_86] : memref<16x128xf32, #tpu.memory_space<vmem>>, vector<16x128xf32>
      tpu.vector_store %arg7[%c0_85, %c0_86], %270 {strides = array<i32>} : memref<16x128xf32, #tpu.memory_space<vmem>>, vector<16x128xf32>,
    } else {
    }
    %c6_i32 = arith.constant 6 : i32
    %3 = arith.muli %arg1, %c6_i32 : i32
    %c0 = arith.constant 0 : index
    %c0_1 = arith.constant 0 : index
    %4 = vector.load %arg7[%c0, %c0_1] : memref<16x128xf32, #tpu.memory_space<vmem>>, vector<16x128xf32>
    %c0_i32_2 = arith.constant 0 : i32
    %5 = arith.index_cast %c0_i32_2 : i32 to index
    %c0_3 = arith.constant 0 : index
    %c0_4 = arith.constant 0 : index
    %6 = vector.load %arg2[%5, %c0_3, %c0_4] : memref<6x16x384xbf16, #tpu.memory_space<vmem>>, vector<1x16x384xbf16>
    %7 = vector.shape_cast %6 : vector<1x16x384xbf16> to vector<16x384xbf16>
    %8 = arith.extf %7 : vector<16x384xbf16> to vector<16x384xf32>
    %9 = arith.truncf %4 : vector<16x128xf32> to vector<16x128xbf16>
    %c0_5 = arith.constant 0 : index
    %c0_6 = arith.constant 0 : index
    %10 = vector.load %arg4[%c0_5, %c0_6] : memref<128x384xbf16, #tpu.memory_space<vmem>>, vector<128x384xbf16>
    %cst = arith.constant dense<0.000000e+00> : vector<16x384xf32>
    %11 = tpu.matmul %9, %10, %cst {dimension_numbers = #tpu.dot_dimension_numbers<[1], [0], [0], [1], [0, 0, 1, 1], [], []>} : vector<16x128xbf16>, vector<128x384xbf16>, vector<16x384xf32> -> vector<16x384xf32>
    %12 = vector.extract_strided_slice %8 {offsets = [0, 0], sizes = [16, 128], strides = [1, 1]} : vector<16x384xf32> to vector<16x128xf32>
    %13 = vector.extract_strided_slice %11 {offsets = [0, 0], sizes = [16, 128], strides = [1, 1]} : vector<16x384xf32> to vector<16x128xf32>
    %14 = arith.addf %12, %13 : vector<16x128xf32>
    %15 = arith.negf %14 : vector<16x128xf32>
    %16 = math.exp %15 : vector<16x128xf32>
    %cst_7 = arith.constant 1.000000e+00 : f32
    %17 = vector.broadcast %cst_7 : f32 to vector<16x128xf32>
    %18 = arith.addf %17, %16 : vector<16x128xf32>
    %19 = arith.divf %17, %18 : vector<16x128xf32>
    %20 = vector.extract_strided_slice %8 {offsets = [0, 128], sizes = [16, 128], strides = [1, 1]} : vector<16x384xf32> to vector<16x128xf32>
    %21 = vector.extract_strided_slice %11 {offsets = [0, 128], sizes = [16, 128], strides = [1, 1]} : vector<16x384xf32> to vector<16x128xf32>
    %22 = arith.addf %20, %21 : vector<16x128xf32>
    %23 = arith.negf %22 : vector<16x128xf32>
    %24 = math.exp %23 : vector<16x128xf32>
    %cst_8 = arith.constant 1.000000e+00 : f32
    %25 = vector.broadcast %cst_8 : f32 to vector<16x128xf32>
    %26 = arith.addf %25, %24 : vector<16x128xf32>
    %27 = arith.divf %25, %26 : vector<16x128xf32>
    %28 = vector.extract_strided_slice %8 {offsets = [0, 256], sizes = [16, 128], strides = [1, 1]} : vector<16x384xf32> to vector<16x128xf32>
    %29 = vector.extract_strided_slice %11 {offsets = [0, 256], sizes = [16, 128], strides = [1, 1]} : vector<16x384xf32> to vector<16x128xf32>
    %c0_9 = arith.constant 0 : index
    %c0_10 = arith.constant 0 : index
    %30 = vector.load %arg5[%c0_9, %c0_10] : memref<1x128xf32, #tpu.memory_space<vmem>>, vector<1x128xf32>
    %31 = vector.broadcast %30 : vector<1x128xf32> to vector<16x128xf32>
    %32 = arith.addf %29, %31 : vector<16x128xf32>
    %33 = arith.mulf %19, %32 : vector<16x128xf32>
    %34 = arith.addf %28, %33 : vector<16x128xf32>
    %35 = math.tanh %34 : vector<16x128xf32>
    %cst_11 = arith.constant 1.000000e+00 : f32
    %36 = vector.broadcast %cst_11 : f32 to vector<16x128xf32>
    %37 = arith.subf %36, %27 : vector<16x128xf32>
    %38 = arith.mulf %37, %35 : vector<16x128xf32>
    %39 = arith.mulf %27, %4 : vector<16x128xf32>
    %40 = arith.addf %38, %39 : vector<16x128xf32>
    %41 = arith.addi %3, %c0_i32_2 : i32
    %c6_i32_12 = arith.constant 6 : i32
    %42 = arith.cmpi slt, %41, %c6_i32_12 : i32
    %43 = arith.select %42, %40, %4 : vector<16x128xf32>
    %44 = arith.truncf %43 : vector<16x128xf32> to vector<16x128xbf16>
    %45 = arith.index_cast %c0_i32_2 : i32 to index
    %c0_13 = arith.constant 0 : index
    %c0_14 = arith.constant 0 : index
    %46 = vector.load %arg6[%45, %c0_13, %c0_14] : memref<6x16x128xbf16, #tpu.memory_space<vmem>>, vector<1x16x128xbf16>
    %47 = vector.shape_cast %46 : vector<1x16x128xbf16> to vector<16x128xbf16>
    %48 = vector.shape_cast %44 : vector<16x128xbf16> to vector<1x16x128xbf16>
    tpu.vector_store %arg6[%45, %c0_13, %c0_14], %48 {strides = array<i32>} : memref<6x16x128xbf16, #tpu.memory_space<vmem>>, vector<1x16x128xbf16>,
    %c1_i32 = arith.constant 1 : i32
    %49 = arith.index_cast %c1_i32 : i32 to index
    %c0_15 = arith.constant 0 : index
    %c0_16 = arith.constant 0 : index
    %50 = vector.load %arg2[%49, %c0_15, %c0_16] : memref<6x16x384xbf16, #tpu.memory_space<vmem>>, vector<1x16x384xbf16>
    %51 = vector.shape_cast %50 : vector<1x16x384xbf16> to vector<16x384xbf16>
    %52 = arith.extf %51 : vector<16x384xbf16> to vector<16x384xf32>
    %53 = arith.truncf %43 : vector<16x128xf32> to vector<16x128xbf16>
    %c0_17 = arith.constant 0 : index
    %c0_18 = arith.constant 0 : index
    %54 = vector.load %arg4[%c0_17, %c0_18] : memref<128x384xbf16, #tpu.memory_space<vmem>>, vector<128x384xbf16>
    %cst_19 = arith.constant dense<0.000000e+00> : vector<16x384xf32>
    %55 = tpu.matmul %53, %54, %cst_19 {dimension_numbers = #tpu.dot_dimension_numbers<[1], [0], [0], [1], [0, 0, 1, 1], [], []>} : vector<16x128xbf16>, vector<128x384xbf16>, vector<16x384xf32> -> vector<16x384xf32>
    %56 = vector.extract_strided_slice %52 {offsets = [0, 0], sizes = [16, 128], strides = [1, 1]} : vector<16x384xf32> to vector<16x128xf32>
    %57 = vector.extract_strided_slice %55 {offsets = [0, 0], sizes = [16, 128], strides = [1, 1]} : vector<16x384xf32> to vector<16x128xf32>
    %58 = arith.addf %56, %57 : vector<16x128xf32>
    %59 = arith.negf %58 : vector<16x128xf32>
    %60 = math.exp %59 : vector<16x128xf32>
    %cst_20 = arith.constant 1.000000e+00 : f32
    %61 = vector.broadcast %cst_20 : f32 to vector<16x128xf32>
    %62 = arith.addf %61, %60 : vector<16x128xf32>
    %63 = arith.divf %61, %62 : vector<16x128xf32>
    %64 = vector.extract_strided_slice %52 {offsets = [0, 128], sizes = [16, 128], strides = [1, 1]} : vector<16x384xf32> to vector<16x128xf32>
    %65 = vector.extract_strided_slice %55 {offsets = [0, 128], sizes = [16, 128], strides = [1, 1]} : vector<16x384xf32> to vector<16x128xf32>
    %66 = arith.addf %64, %65 : vector<16x128xf32>
    %67 = arith.negf %66 : vector<16x128xf32>
    %68 = math.exp %67 : vector<16x128xf32>
    %cst_21 = arith.constant 1.000000e+00 : f32
    %69 = vector.broadcast %cst_21 : f32 to vector<16x128xf32>
    %70 = arith.addf %69, %68 : vector<16x128xf32>
    %71 = arith.divf %69, %70 : vector<16x128xf32>
    %72 = vector.extract_strided_slice %52 {offsets = [0, 256], sizes = [16, 128], strides = [1, 1]} : vector<16x384xf32> to vector<16x128xf32>
    %73 = vector.extract_strided_slice %55 {offsets = [0, 256], sizes = [16, 128], strides = [1, 1]} : vector<16x384xf32> to vector<16x128xf32>
    %c0_22 = arith.constant 0 : index
    %c0_23 = arith.constant 0 : index
    %74 = vector.load %arg5[%c0_22, %c0_23] : memref<1x128xf32, #tpu.memory_space<vmem>>, vector<1x128xf32>
    %75 = vector.broadcast %74 : vector<1x128xf32> to vector<16x128xf32>
    %76 = arith.addf %73, %75 : vector<16x128xf32>
    %77 = arith.mulf %63, %76 : vector<16x128xf32>
    %78 = arith.addf %72, %77 : vector<16x128xf32>
    %79 = math.tanh %78 : vector<16x128xf32>
    %cst_24 = arith.constant 1.000000e+00 : f32
    %80 = vector.broadcast %cst_24 : f32 to vector<16x128xf32>
    %81 = arith.subf %80, %71 : vector<16x128xf32>
    %82 = arith.mulf %81, %79 : vector<16x128xf32>
    %83 = arith.mulf %71, %43 : vector<16x128xf32>
    %84 = arith.addf %82, %83 : vector<16x128xf32>
    %85 = arith.addi %3, %c1_i32 : i32
    %c6_i32_25 = arith.constant 6 : i32
    %86 = arith.cmpi slt, %85, %c6_i32_25 : i32
    %87 = arith.select %86, %84, %43 : vector<16x128xf32>
    %88 = arith.truncf %87 : vector<16x128xf32> to vector<16x128xbf16>
    %89 = arith.index_cast %c1_i32 : i32 to index
    %c0_26 = arith.constant 0 : index
    %c0_27 = arith.constant 0 : index
    %90 = vector.load %arg6[%89, %c0_26, %c0_27] : memref<6x16x128xbf16, #tpu.memory_space<vmem>>, vector<1x16x128xbf16>
    %91 = vector.shape_cast %90 : vector<1x16x128xbf16> to vector<16x128xbf16>
    %92 = vector.shape_cast %88 : vector<16x128xbf16> to vector<1x16x128xbf16>
    tpu.vector_store %arg6[%89, %c0_26, %c0_27], %92 {strides = array<i32>} : memref<6x16x128xbf16, #tpu.memory_space<vmem>>, vector<1x16x128xbf16>,
    %c2_i32 = arith.constant 2 : i32
    %93 = arith.index_cast %c2_i32 : i32 to index
    %c0_28 = arith.constant 0 : index
    %c0_29 = arith.constant 0 : index
    %94 = vector.load %arg2[%93, %c0_28, %c0_29] : memref<6x16x384xbf16, #tpu.memory_space<vmem>>, vector<1x16x384xbf16>
    %95 = vector.shape_cast %94 : vector<1x16x384xbf16> to vector<16x384xbf16>
    %96 = arith.extf %95 : vector<16x384xbf16> to vector<16x384xf32>
    %97 = arith.truncf %87 : vector<16x128xf32> to vector<16x128xbf16>
    %c0_30 = arith.constant 0 : index
    %c0_31 = arith.constant 0 : index
    %98 = vector.load %arg4[%c0_30, %c0_31] : memref<128x384xbf16, #tpu.memory_space<vmem>>, vector<128x384xbf16>
    %cst_32 = arith.constant dense<0.000000e+00> : vector<16x384xf32>
    %99 = tpu.matmul %97, %98, %cst_32 {dimension_numbers = #tpu.dot_dimension_numbers<[1], [0], [0], [1], [0, 0, 1, 1], [], []>} : vector<16x128xbf16>, vector<128x384xbf16>, vector<16x384xf32> -> vector<16x384xf32>
    %100 = vector.extract_strided_slice %96 {offsets = [0, 0], sizes = [16, 128], strides = [1, 1]} : vector<16x384xf32> to vector<16x128xf32>
    %101 = vector.extract_strided_slice %99 {offsets = [0, 0], sizes = [16, 128], strides = [1, 1]} : vector<16x384xf32> to vector<16x128xf32>
    %102 = arith.addf %100, %101 : vector<16x128xf32>
    %103 = arith.negf %102 : vector<16x128xf32>
    %104 = math.exp %103 : vector<16x128xf32>
    %cst_33 = arith.constant 1.000000e+00 : f32
    %105 = vector.broadcast %cst_33 : f32 to vector<16x128xf32>
    %106 = arith.addf %105, %104 : vector<16x128xf32>
    %107 = arith.divf %105, %106 : vector<16x128xf32>
    %108 = vector.extract_strided_slice %96 {offsets = [0, 128], sizes = [16, 128], strides = [1, 1]} : vector<16x384xf32> to vector<16x128xf32>
    %109 = vector.extract_strided_slice %99 {offsets = [0, 128], sizes = [16, 128], strides = [1, 1]} : vector<16x384xf32> to vector<16x128xf32>
    %110 = arith.addf %108, %109 : vector<16x128xf32>
    %111 = arith.negf %110 : vector<16x128xf32>
    %112 = math.exp %111 : vector<16x128xf32>
    %cst_34 = arith.constant 1.000000e+00 : f32
    %113 = vector.broadcast %cst_34 : f32 to vector<16x128xf32>
    %114 = arith.addf %113, %112 : vector<16x128xf32>
    %115 = arith.divf %113, %114 : vector<16x128xf32>
    %116 = vector.extract_strided_slice %96 {offsets = [0, 256], sizes = [16, 128], strides = [1, 1]} : vector<16x384xf32> to vector<16x128xf32>
    %117 = vector.extract_strided_slice %99 {offsets = [0, 256], sizes = [16, 128], strides = [1, 1]} : vector<16x384xf32> to vector<16x128xf32>
    %c0_35 = arith.constant 0 : index
    %c0_36 = arith.constant 0 : index
    %118 = vector.load %arg5[%c0_35, %c0_36] : memref<1x128xf32, #tpu.memory_space<vmem>>, vector<1x128xf32>
    %119 = vector.broadcast %118 : vector<1x128xf32> to vector<16x128xf32>
    %120 = arith.addf %117, %119 : vector<16x128xf32>
    %121 = arith.mulf %107, %120 : vector<16x128xf32>
    %122 = arith.addf %116, %121 : vector<16x128xf32>
    %123 = math.tanh %122 : vector<16x128xf32>
    %cst_37 = arith.constant 1.000000e+00 : f32
    %124 = vector.broadcast %cst_37 : f32 to vector<16x128xf32>
    %125 = arith.subf %124, %115 : vector<16x128xf32>
    %126 = arith.mulf %125, %123 : vector<16x128xf32>
    %127 = arith.mulf %115, %87 : vector<16x128xf32>
    %128 = arith.addf %126, %127 : vector<16x128xf32>
    %129 = arith.addi %3, %c2_i32 : i32
    %c6_i32_38 = arith.constant 6 : i32
    %130 = arith.cmpi slt, %129, %c6_i32_38 : i32
    %131 = arith.select %130, %128, %87 : vector<16x128xf32>
    %132 = arith.truncf %131 : vector<16x128xf32> to vector<16x128xbf16>
    %133 = arith.index_cast %c2_i32 : i32 to index
    %c0_39 = arith.constant 0 : index
    %c0_40 = arith.constant 0 : index
    %134 = vector.load %arg6[%133, %c0_39, %c0_40] : memref<6x16x128xbf16, #tpu.memory_space<vmem>>, vector<1x16x128xbf16>
    %135 = vector.shape_cast %134 : vector<1x16x128xbf16> to vector<16x128xbf16>
    %136 = vector.shape_cast %132 : vector<16x128xbf16> to vector<1x16x128xbf16>
    tpu.vector_store %arg6[%133, %c0_39, %c0_40], %136 {strides = array<i32>} : memref<6x16x128xbf16, #tpu.memory_space<vmem>>, vector<1x16x128xbf16>,
    %c3_i32 = arith.constant 3 : i32
    %137 = arith.index_cast %c3_i32 : i32 to index
    %c0_41 = arith.constant 0 : index
    %c0_42 = arith.constant 0 : index
    %138 = vector.load %arg2[%137, %c0_41, %c0_42] : memref<6x16x384xbf16, #tpu.memory_space<vmem>>, vector<1x16x384xbf16>
    %139 = vector.shape_cast %138 : vector<1x16x384xbf16> to vector<16x384xbf16>
    %140 = arith.extf %139 : vector<16x384xbf16> to vector<16x384xf32>
    %141 = arith.truncf %131 : vector<16x128xf32> to vector<16x128xbf16>
    %c0_43 = arith.constant 0 : index
    %c0_44 = arith.constant 0 : index
    %142 = vector.load %arg4[%c0_43, %c0_44] : memref<128x384xbf16, #tpu.memory_space<vmem>>, vector<128x384xbf16>
    %cst_45 = arith.constant dense<0.000000e+00> : vector<16x384xf32>
    %143 = tpu.matmul %141, %142, %cst_45 {dimension_numbers = #tpu.dot_dimension_numbers<[1], [0], [0], [1], [0, 0, 1, 1], [], []>} : vector<16x128xbf16>, vector<128x384xbf16>, vector<16x384xf32> -> vector<16x384xf32>
    %144 = vector.extract_strided_slice %140 {offsets = [0, 0], sizes = [16, 128], strides = [1, 1]} : vector<16x384xf32> to vector<16x128xf32>
    %145 = vector.extract_strided_slice %143 {offsets = [0, 0], sizes = [16, 128], strides = [1, 1]} : vector<16x384xf32> to vector<16x128xf32>
    %146 = arith.addf %144, %145 : vector<16x128xf32>
    %147 = arith.negf %146 : vector<16x128xf32>
    %148 = math.exp %147 : vector<16x128xf32>
    %cst_46 = arith.constant 1.000000e+00 : f32
    %149 = vector.broadcast %cst_46 : f32 to vector<16x128xf32>
    %150 = arith.addf %149, %148 : vector<16x128xf32>
    %151 = arith.divf %149, %150 : vector<16x128xf32>
    %152 = vector.extract_strided_slice %140 {offsets = [0, 128], sizes = [16, 128], strides = [1, 1]} : vector<16x384xf32> to vector<16x128xf32>
    %153 = vector.extract_strided_slice %143 {offsets = [0, 128], sizes = [16, 128], strides = [1, 1]} : vector<16x384xf32> to vector<16x128xf32>
    %154 = arith.addf %152, %153 : vector<16x128xf32>
    %155 = arith.negf %154 : vector<16x128xf32>
    %156 = math.exp %155 : vector<16x128xf32>
    %cst_47 = arith.constant 1.000000e+00 : f32
    %157 = vector.broadcast %cst_47 : f32 to vector<16x128xf32>
    %158 = arith.addf %157, %156 : vector<16x128xf32>
    %159 = arith.divf %157, %158 : vector<16x128xf32>
    %160 = vector.extract_strided_slice %140 {offsets = [0, 256], sizes = [16, 128], strides = [1, 1]} : vector<16x384xf32> to vector<16x128xf32>
    %161 = vector.extract_strided_slice %143 {offsets = [0, 256], sizes = [16, 128], strides = [1, 1]} : vector<16x384xf32> to vector<16x128xf32>
    %c0_48 = arith.constant 0 : index
    %c0_49 = arith.constant 0 : index
    %162 = vector.load %arg5[%c0_48, %c0_49] : memref<1x128xf32, #tpu.memory_space<vmem>>, vector<1x128xf32>
    %163 = vector.broadcast %162 : vector<1x128xf32> to vector<16x128xf32>
    %164 = arith.addf %161, %163 : vector<16x128xf32>
    %165 = arith.mulf %151, %164 : vector<16x128xf32>
    %166 = arith.addf %160, %165 : vector<16x128xf32>
    %167 = math.tanh %166 : vector<16x128xf32>
    %cst_50 = arith.constant 1.000000e+00 : f32
    %168 = vector.broadcast %cst_50 : f32 to vector<16x128xf32>
    %169 = arith.subf %168, %159 : vector<16x128xf32>
    %170 = arith.mulf %169, %167 : vector<16x128xf32>
    %171 = arith.mulf %159, %131 : vector<16x128xf32>
    %172 = arith.addf %170, %171 : vector<16x128xf32>
    %173 = arith.addi %3, %c3_i32 : i32
    %c6_i32_51 = arith.constant 6 : i32
    %174 = arith.cmpi slt, %173, %c6_i32_51 : i32
    %175 = arith.select %174, %172, %131 : vector<16x128xf32>
    %176 = arith.truncf %175 : vector<16x128xf32> to vector<16x128xbf16>
    %177 = arith.index_cast %c3_i32 : i32 to index
    %c0_52 = arith.constant 0 : index
    %c0_53 = arith.constant 0 : index
    %178 = vector.load %arg6[%177, %c0_52, %c0_53] : memref<6x16x128xbf16, #tpu.memory_space<vmem>>, vector<1x16x128xbf16>
    %179 = vector.shape_cast %178 : vector<1x16x128xbf16> to vector<16x128xbf16>
    %180 = vector.shape_cast %176 : vector<16x128xbf16> to vector<1x16x128xbf16>
    tpu.vector_store %arg6[%177, %c0_52, %c0_53], %180 {strides = array<i32>} : memref<6x16x128xbf16, #tpu.memory_space<vmem>>, vector<1x16x128xbf16>,
    %c4_i32 = arith.constant 4 : i32
    %181 = arith.index_cast %c4_i32 : i32 to index
    %c0_54 = arith.constant 0 : index
    %c0_55 = arith.constant 0 : index
    %182 = vector.load %arg2[%181, %c0_54, %c0_55] : memref<6x16x384xbf16, #tpu.memory_space<vmem>>, vector<1x16x384xbf16>
    %183 = vector.shape_cast %182 : vector<1x16x384xbf16> to vector<16x384xbf16>
    %184 = arith.extf %183 : vector<16x384xbf16> to vector<16x384xf32>
    %185 = arith.truncf %175 : vector<16x128xf32> to vector<16x128xbf16>
    %c0_56 = arith.constant 0 : index
    %c0_57 = arith.constant 0 : index
    %186 = vector.load %arg4[%c0_56, %c0_57] : memref<128x384xbf16, #tpu.memory_space<vmem>>, vector<128x384xbf16>
    %cst_58 = arith.constant dense<0.000000e+00> : vector<16x384xf32>
    %187 = tpu.matmul %185, %186, %cst_58 {dimension_numbers = #tpu.dot_dimension_numbers<[1], [0], [0], [1], [0, 0, 1, 1], [], []>} : vector<16x128xbf16>, vector<128x384xbf16>, vector<16x384xf32> -> vector<16x384xf32>
    %188 = vector.extract_strided_slice %184 {offsets = [0, 0], sizes = [16, 128], strides = [1, 1]} : vector<16x384xf32> to vector<16x128xf32>
    %189 = vector.extract_strided_slice %187 {offsets = [0, 0], sizes = [16, 128], strides = [1, 1]} : vector<16x384xf32> to vector<16x128xf32>
    %190 = arith.addf %188, %189 : vector<16x128xf32>
    %191 = arith.negf %190 : vector<16x128xf32>
    %192 = math.exp %191 : vector<16x128xf32>
    %cst_59 = arith.constant 1.000000e+00 : f32
    %193 = vector.broadcast %cst_59 : f32 to vector<16x128xf32>
    %194 = arith.addf %193, %192 : vector<16x128xf32>
    %195 = arith.divf %193, %194 : vector<16x128xf32>
    %196 = vector.extract_strided_slice %184 {offsets = [0, 128], sizes = [16, 128], strides = [1, 1]} : vector<16x384xf32> to vector<16x128xf32>
    %197 = vector.extract_strided_slice %187 {offsets = [0, 128], sizes = [16, 128], strides = [1, 1]} : vector<16x384xf32> to vector<16x128xf32>
    %198 = arith.addf %196, %197 : vector<16x128xf32>
    %199 = arith.negf %198 : vector<16x128xf32>
    %200 = math.exp %199 : vector<16x128xf32>
    %cst_60 = arith.constant 1.000000e+00 : f32
    %201 = vector.broadcast %cst_60 : f32 to vector<16x128xf32>
    %202 = arith.addf %201, %200 : vector<16x128xf32>
    %203 = arith.divf %201, %202 : vector<16x128xf32>
    %204 = vector.extract_strided_slice %184 {offsets = [0, 256], sizes = [16, 128], strides = [1, 1]} : vector<16x384xf32> to vector<16x128xf32>
    %205 = vector.extract_strided_slice %187 {offsets = [0, 256], sizes = [16, 128], strides = [1, 1]} : vector<16x384xf32> to vector<16x128xf32>
    %c0_61 = arith.constant 0 : index
    %c0_62 = arith.constant 0 : index
    %206 = vector.load %arg5[%c0_61, %c0_62] : memref<1x128xf32, #tpu.memory_space<vmem>>, vector<1x128xf32>
    %207 = vector.broadcast %206 : vector<1x128xf32> to vector<16x128xf32>
    %208 = arith.addf %205, %207 : vector<16x128xf32>
    %209 = arith.mulf %195, %208 : vector<16x128xf32>
    %210 = arith.addf %204, %209 : vector<16x128xf32>
    %211 = math.tanh %210 : vector<16x128xf32>
    %cst_63 = arith.constant 1.000000e+00 : f32
    %212 = vector.broadcast %cst_63 : f32 to vector<16x128xf32>
    %213 = arith.subf %212, %203 : vector<16x128xf32>
    %214 = arith.mulf %213, %211 : vector<16x128xf32>
    %215 = arith.mulf %203, %175 : vector<16x128xf32>
    %216 = arith.addf %214, %215 : vector<16x128xf32>
    %217 = arith.addi %3, %c4_i32 : i32
    %c6_i32_64 = arith.constant 6 : i32
    %218 = arith.cmpi slt, %217, %c6_i32_64 : i32
    %219 = arith.select %218, %216, %175 : vector<16x128xf32>
    %220 = arith.truncf %219 : vector<16x128xf32> to vector<16x128xbf16>
    %221 = arith.index_cast %c4_i32 : i32 to index
    %c0_65 = arith.constant 0 : index
    %c0_66 = arith.constant 0 : index
    %222 = vector.load %arg6[%221, %c0_65, %c0_66] : memref<6x16x128xbf16, #tpu.memory_space<vmem>>, vector<1x16x128xbf16>
    %223 = vector.shape_cast %222 : vector<1x16x128xbf16> to vector<16x128xbf16>
    %224 = vector.shape_cast %220 : vector<16x128xbf16> to vector<1x16x128xbf16>
    tpu.vector_store %arg6[%221, %c0_65, %c0_66], %224 {strides = array<i32>} : memref<6x16x128xbf16, #tpu.memory_space<vmem>>, vector<1x16x128xbf16>,
    %c5_i32 = arith.constant 5 : i32
    %225 = arith.index_cast %c5_i32 : i32 to index
    %c0_67 = arith.constant 0 : index
    %c0_68 = arith.constant 0 : index
    %226 = vector.load %arg2[%225, %c0_67, %c0_68] : memref<6x16x384xbf16, #tpu.memory_space<vmem>>, vector<1x16x384xbf16>
    %227 = vector.shape_cast %226 : vector<1x16x384xbf16> to vector<16x384xbf16>
    %228 = arith.extf %227 : vector<16x384xbf16> to vector<16x384xf32>
    %229 = arith.truncf %219 : vector<16x128xf32> to vector<16x128xbf16>
    %c0_69 = arith.constant 0 : index
    %c0_70 = arith.constant 0 : index
    %230 = vector.load %arg4[%c0_69, %c0_70] : memref<128x384xbf16, #tpu.memory_space<vmem>>, vector<128x384xbf16>
    %cst_71 = arith.constant dense<0.000000e+00> : vector<16x384xf32>
    %231 = tpu.matmul %229, %230, %cst_71 {dimension_numbers = #tpu.dot_dimension_numbers<[1], [0], [0], [1], [0, 0, 1, 1], [], []>} : vector<16x128xbf16>, vector<128x384xbf16>, vector<16x384xf32> -> vector<16x384xf32>
    %232 = vector.extract_strided_slice %228 {offsets = [0, 0], sizes = [16, 128], strides = [1, 1]} : vector<16x384xf32> to vector<16x128xf32>
    %233 = vector.extract_strided_slice %231 {offsets = [0, 0], sizes = [16, 128], strides = [1, 1]} : vector<16x384xf32> to vector<16x128xf32>
    %234 = arith.addf %232, %233 : vector<16x128xf32>
    %235 = arith.negf %234 : vector<16x128xf32>
    %236 = math.exp %235 : vector<16x128xf32>
    %cst_72 = arith.constant 1.000000e+00 : f32
    %237 = vector.broadcast %cst_72 : f32 to vector<16x128xf32>
    %238 = arith.addf %237, %236 : vector<16x128xf32>
    %239 = arith.divf %237, %238 : vector<16x128xf32>
    %240 = vector.extract_strided_slice %228 {offsets = [0, 128], sizes = [16, 128], strides = [1, 1]} : vector<16x384xf32> to vector<16x128xf32>
    %241 = vector.extract_strided_slice %231 {offsets = [0, 128], sizes = [16, 128], strides = [1, 1]} : vector<16x384xf32> to vector<16x128xf32>
    %242 = arith.addf %240, %241 : vector<16x128xf32>
    %243 = arith.negf %242 : vector<16x128xf32>
    %244 = math.exp %243 : vector<16x128xf32>
    %cst_73 = arith.constant 1.000000e+00 : f32
    %245 = vector.broadcast %cst_73 : f32 to vector<16x128xf32>
    %246 = arith.addf %245, %244 : vector<16x128xf32>
    %247 = arith.divf %245, %246 : vector<16x128xf32>
    %248 = vector.extract_strided_slice %228 {offsets = [0, 256], sizes = [16, 128], strides = [1, 1]} : vector<16x384xf32> to vector<16x128xf32>
    %249 = vector.extract_strided_slice %231 {offsets = [0, 256], sizes = [16, 128], strides = [1, 1]} : vector<16x384xf32> to vector<16x128xf32>
    %c0_74 = arith.constant 0 : index
    %c0_75 = arith.constant 0 : index
    %250 = vector.load %arg5[%c0_74, %c0_75] : memref<1x128xf32, #tpu.memory_space<vmem>>, vector<1x128xf32>
    %251 = vector.broadcast %250 : vector<1x128xf32> to vector<16x128xf32>
    %252 = arith.addf %249, %251 : vector<16x128xf32>
    %253 = arith.mulf %239, %252 : vector<16x128xf32>
    %254 = arith.addf %248, %253 : vector<16x128xf32>
    %255 = math.tanh %254 : vector<16x128xf32>
    %cst_76 = arith.constant 1.000000e+00 : f32
    %256 = vector.broadcast %cst_76 : f32 to vector<16x128xf32>
    %257 = arith.subf %256, %247 : vector<16x128xf32>
    %258 = arith.mulf %257, %255 : vector<16x128xf32>
    %259 = arith.mulf %247, %219 : vector<16x128xf32>
    %260 = arith.addf %258, %259 : vector<16x128xf32>
    %261 = arith.addi %3, %c5_i32 : i32
    %c6_i32_77 = arith.constant 6 : i32
    %262 = arith.cmpi slt, %261, %c6_i32_77 : i32
    %263 = arith.select %262, %260, %219 : vector<16x128xf32>
    %264 = arith.truncf %263 : vector<16x128xf32> to vector<16x128xbf16>
    %265 = arith.index_cast %c5_i32 : i32 to index
    %c0_78 = arith.constant 0 : index
    %c0_79 = arith.constant 0 : index
    %266 = vector.load %arg6[%265, %c0_78, %c0_79] : memref<6x16x128xbf16, #tpu.memory_space<vmem>>, vector<1x16x128xbf16>
    %267 = vector.shape_cast %266 : vector<1x16x128xbf16> to vector<16x128xbf16>
    %268 = vector.shape_cast %264 : vector<16x128xbf16> to vector<1x16x128xbf16>
    tpu.vector_store %arg6[%265, %c0_78, %c0_79], %268 {strides = array<i32>} : memref<6x16x128xbf16, #tpu.memory_space<vmem>>, vector<1x16x128xbf16>,
    %c6_i32_80 = arith.constant 6 : i32
    %c0_81 = arith.constant 0 : index
    %c0_82 = arith.constant 0 : index
    %269 = vector.load %arg7[%c0_81, %c0_82] : memref<16x128xf32, #tpu.memory_space<vmem>>, vector<16x128xf32>
    tpu.vector_store %arg7[%c0_81, %c0_82], %263 {strides = array<i32>} : memref<16x128xf32, #tpu.memory_space<vmem>>, vector<16x128xf32>,
    return
  }
  func.func @transform_0(%arg0: i32, %arg1: i32) -> (i32, i32, i32) {
    %c0_i32 = arith.constant 0 : i32
    %c0_i32_0 = arith.constant 0 : i32
    return %arg1, %arg0, %c0_i32 : i32, i32, i32
  }
  func.func @transform_1(%arg0: i32, %arg1: i32) -> (i32, i32) {
    %c0_i32 = arith.constant 0 : i32
    %c0_i32_0 = arith.constant 0 : i32
    return %arg0, %c0_i32 : i32, i32
  }
  func.func @transform_2(%arg0: i32, %arg1: i32) -> (i32, i32) {
    %c0_i32 = arith.constant 0 : i32
    %c0_i32_0 = arith.constant 0 : i32
    %c0_i32_1 = arith.constant 0 : i32
    return %c0_i32, %c0_i32_0 : i32, i32
  }
  func.func @transform_3(%arg0: i32, %arg1: i32) -> (i32, i32) {
    %c0_i32 = arith.constant 0 : i32
    %c0_i32_0 = arith.constant 0 : i32
    %c0_i32_1 = arith.constant 0 : i32
    return %c0_i32, %c0_i32_0 : i32, i32
  }
  func.func @transform_4(%arg0: i32, %arg1: i32) -> (i32, i32, i32) {
    %c0_i32 = arith.constant 0 : i32
    %c0_i32_0 = arith.constant 0 : i32
    return %arg1, %arg0, %c0_i32 : i32, i32, i32
  }
  func.func @transform_5(%arg0: i32, %arg1: i32) -> (i32, i32) {
    %c0_i32 = arith.constant 0 : i32
    %c0_i32_0 = arith.constant 0 : i32
    return %arg0, %c0_i32 : i32, i32
  }
}

module attributes {stable_mosaic.version = 11 : i64} {
  func.func @_proj_logsoftmax_kernel(%arg0: i32, %arg1: memref<96x128xbf16, #tpu.memory_space<vmem>>, %arg2: memref<128x128xbf16, #tpu.memory_space<vmem>>, %arg3: memref<1x128xf32, #tpu.memory_space<vmem>>, %arg4: memref<96x128xf32, #tpu.memory_space<vmem>>) attributes {dimension_semantics = [#tpu.dimension_semantics<parallel>], iteration_bounds = array<i64: 1>, scalar_prefetch = 0 : i64, scratch_operands = 0 : i64, tpu.core_type = #tpu.core_type<tc>, window_params = [{transform_indices = @transform_0, window_bounds = array<i64: 96, 128>}, {pipeline_mode = #tpu.pipeline_mode<synchronous>, transform_indices = @transform_1, window_bounds = array<i64: 128, 128>}, {pipeline_mode = #tpu.pipeline_mode<synchronous>, transform_indices = @transform_2, window_bounds = array<i64: 1, 128>}, {transform_indices = @transform_3, window_bounds = array<i64: 96, 128>}]} {
    %c0 = arith.constant 0 : index
    %c0_0 = arith.constant 0 : index
    %0 = vector.load %arg1[%c0, %c0_0] : memref<96x128xbf16, #tpu.memory_space<vmem>>, vector<96x128xbf16>
    %c0_1 = arith.constant 0 : index
    %c0_2 = arith.constant 0 : index
    %1 = vector.load %arg2[%c0_1, %c0_2] : memref<128x128xbf16, #tpu.memory_space<vmem>>, vector<128x128xbf16>
    %cst = arith.constant dense<0.000000e+00> : vector<96x128xf32>
    %2 = tpu.matmul %0, %1, %cst {dimension_numbers = #tpu.dot_dimension_numbers<[1], [0], [0], [1], [0, 0, 1, 1], [], []>} : vector<96x128xbf16>, vector<128x128xbf16>, vector<96x128xf32> -> vector<96x128xf32>
    %c0_3 = arith.constant 0 : index
    %c0_4 = arith.constant 0 : index
    %3 = vector.load %arg3[%c0_3, %c0_4] : memref<1x128xf32, #tpu.memory_space<vmem>>, vector<1x128xf32>
    %4 = vector.broadcast %3 : vector<1x128xf32> to vector<96x128xf32>
    %5 = arith.addf %2, %4 : vector<96x128xf32>
    %6 = tpu.iota {dimensions = array<i32: 1>} : vector<96x128xi32>
    %c32_i32 = arith.constant 32 : i32
    %7 = vector.broadcast %c32_i32 : i32 to vector<96x128xi32>
    %8 = arith.cmpi slt, %6, %7 : vector<96x128xi32>
    %cst_5 = arith.constant -1.000000e+30 : f32
    %9 = vector.broadcast %cst_5 : f32 to vector<96x128xf32>
    %10 = arith.select %8, %5, %9 : vector<96x128xi1>, vector<96x128xf32>
    %cst_6 = arith.constant dense<0xFF800000> : vector<96xf32>
    %11 = vector.multi_reduction <maximumf>, %10, %cst_6 [1] : vector<96x128xf32> to vector<96xf32>
    %12 = vector.shape_cast %11 : vector<96xf32> to vector<96x1xf32>
    %13 = vector.broadcast %12 : vector<96x1xf32> to vector<96x128xf32>
    %14 = arith.subf %10, %13 : vector<96x128xf32>
    %15 = math.exp %14 : vector<96x128xf32>
    %cst_7 = arith.constant dense<0.000000e+00> : vector<96xf32>
    %16 = vector.multi_reduction <add>, %15, %cst_7 [1] : vector<96x128xf32> to vector<96xf32>
    %17 = vector.shape_cast %16 : vector<96xf32> to vector<96x1xf32>
    %18 = math.log %17 : vector<96x1xf32>
    %19 = arith.addf %18, %12 : vector<96x1xf32>
    %20 = vector.broadcast %19 : vector<96x1xf32> to vector<96x128xf32>
    %21 = arith.subf %10, %20 : vector<96x128xf32>
    %c0_8 = arith.constant 0 : index
    %c0_9 = arith.constant 0 : index
    %22 = vector.load %arg4[%c0_8, %c0_9] : memref<96x128xf32, #tpu.memory_space<vmem>>, vector<96x128xf32>
    tpu.vector_store %arg4[%c0_8, %c0_9], %21 {strides = array<i32>} : memref<96x128xf32, #tpu.memory_space<vmem>>, vector<96x128xf32>,
    return
  }
  func.func @transform_0(%arg0: i32) -> (i32, i32) {
    %c0_i32 = arith.constant 0 : i32
    %c0_i32_0 = arith.constant 0 : i32
    return %arg0, %c0_i32 : i32, i32
  }
  func.func @transform_1(%arg0: i32) -> (i32, i32) {
    %c0_i32 = arith.constant 0 : i32
    %c0_i32_0 = arith.constant 0 : i32
    %c0_i32_1 = arith.constant 0 : i32
    return %c0_i32, %c0_i32_0 : i32, i32
  }
  func.func @transform_2(%arg0: i32) -> (i32, i32) {
    %c0_i32 = arith.constant 0 : i32
    %c0_i32_0 = arith.constant 0 : i32
    %c0_i32_1 = arith.constant 0 : i32
    return %c0_i32, %c0_i32_0 : i32, i32
  }
  func.func @transform_3(%arg0: i32) -> (i32, i32) {
    %c0_i32 = arith.constant 0 : i32
    %c0_i32_0 = arith.constant 0 : i32
    return %arg0, %c0_i32 : i32, i32
  }
}

</mosaic_0001>

<llo_original>
// kernel: seq2seq_forward.5
$region0: #{seq2seq_forward.5}
  #allocation0 [shape = 'u32[]', space=smem, size = 0x4, offset = 0x4, fixed_abs, tag = 'smem constant byte address 0x4 - core index']
  #allocation1 [shape = 'u32[72,128]{1,0:T(1,128)}', space=vmem, size = 0x9000, scoped, tag = 'internal scratch']
  %s0 = inlined_call_operand.vmem [shape: bf16[128,128], index: 0, kind: input, shape index: {}]
  %s1 = inlined_call_operand.vmem [shape: bf16[128,384], index: 1, kind: input, shape index: {}]
  %s2 = inlined_call_operand.vmem [shape: f32[1,384], index: 2, kind: input, shape index: {}]
  %s3 = inlined_call_operand.vmem [shape: bf16[128,384], index: 3, kind: output, shape index: {}]
  %s4 = sld [smem:[#allocation0]]
  $region22: #{seq2seq_forward.5} parent=0
    _
  %s6 = ssub.s32 1, %s4
  %s7 = scalar_select 0, %s6, %s4
  // Predicated region
  $region2: #{seq2seq_forward.5} parent=0 // pred_check
    _
  $region3: #{seq2seq_forward.5} parent=0 // pred_check_branch
    %9 = sbr.rel (0) target = $region5
  $region4: #{seq2seq_forward.5} parent=0 // pred_region
    _
  $region5: #{seq2seq_forward.5} parent=0 // pred_fallthru
    _
  // Predicated region
  $region6: #{seq2seq_forward.5} parent=0 // pred_check
    _
  $region7: #{seq2seq_forward.5} parent=0 // pred_check_branch
    %11 = sbr.rel (0) target = $region9
  $region8: #{seq2seq_forward.5} parent=0 // pred_region
    _
  $region9: #{seq2seq_forward.5} parent=0 // pred_fallthru
    _
  // Predicated region
  $region10: #{seq2seq_forward.5} parent=0 // pred_check
    _
  $region11: #{seq2seq_forward.5} parent=0 // pred_check_branch
    %13 = sbr.rel (0) target = $region13
  $region12: #{seq2seq_forward.5} parent=0 // pred_region
    _
  $region13: #{seq2seq_forward.5} parent=0 // pred_fallthru
    _
  %v14 = vld [vmem:[%s0] sm:$0xf]
  %v15 = vld [vmem:[%s0 + $0x4] sm:$0xf]
  %v16 = vld [vmem:[%s0 + $0x8] sm:$0xf]
  %v17 = vld [vmem:[%s0 + $0xc] sm:$0xf]
  %v18 = vld [vmem:[%s0 + $0x10] sm:$0xf]
  %v19 = vld [vmem:[%s0 + $0x14] sm:$0xf]
  %v20 = vld [vmem:[%s0 + $0x18] sm:$0xf]
  %v21 = vld [vmem:[%s0 + $0x1c] sm:$0xf]
  %v22 = vld [vmem:[%s0 + $0x20] sm:$0xf]
  %v23 = vld [vmem:[%s0 + $0x24] sm:$0xf]
  %v24 = vld [vmem:[%s0 + $0x28] sm:$0xf]
  %v25 = vld [vmem:[%s0 + $0x2c] sm:$0xf]
  %v26 = vld [vmem:[%s0 + $0x30] sm:$0xf]
  %v27 = vld [vmem:[%s0 + $0x34] sm:$0xf]
  %v28 = vld [vmem:[%s0 + $0x38] sm:$0xf]
  %v29 = vld [vmem:[%s0 + $0x3c] sm:$0xf]
  %v30 = vld [vmem:[%s1] sm:$0xff]
  %v31 = vld [vmem:[%s1 + $0x8] sm:$0xf]
  %v32 = vld [vmem:[%s1 + $0xc] sm:$0xff]
  %v33 = vld [vmem:[%s1 + $0x14] sm:$0xf]
  %v34 = vld [vmem:[%s1 + $0x18] sm:$0xff]
  %v35 = vld [vmem:[%s1 + $0x20] sm:$0xf]
  %v36 = vld [vmem:[%s1 + $0x24] sm:$0xff]
  %v37 = vld [vmem:[%s1 + $0x2c] sm:$0xf]
  %v38 = vld [vmem:[%s1 + $0x30] sm:$0xff]
  %v39 = vld [vmem:[%s1 + $0x38] sm:$0xf]
  %v40 = vld [vmem:[%s1 + $0x3c] sm:$0xff]
  %v41 = vld [vmem:[%s1 + $0x44] sm:$0xf]
  %v42 = vld [vmem:[%s1 + $0x48] sm:$0xff]
  %v43 = vld [vmem:[%s1 + $0x50] sm:$0xf]
  %v44 = vld [vmem:[%s1 + $0x54] sm:$0xff]
  %v45 = vld [vmem:[%s1 + $0x5c] sm:$0xf]
  %v46 = vld [vmem:[%s1 + $0x60] sm:$0xff]
  %v47 = vld [vmem:[%s1 + $0x68] sm:$0xf]
  %v48 = vld [vmem:[%s1 + $0x6c] sm:$0xff]
  %v49 = vld [vmem:[%s1 + $0x74] sm:$0xf]
  %v50 = vld [vmem:[%s1 + $0x78] sm:$0xff]
  %v51 = vld [vmem:[%s1 + $0x80] sm:$0xf]
  %v52 = vld [vmem:[%s1 + $0x84] sm:$0xff]
  %v53 = vld [vmem:[%s1 + $0x8c] sm:$0xf]
  %v54 = vld [vmem:[%s1 + $0x90] sm:$0xff]
  %v55 = vld [vmem:[%s1 + $0x98] sm:$0xf]
  %v56 = vld [vmem:[%s1 + $0x9c] sm:$0xff]
  %v57 = vld [vmem:[%s1 + $0xa4] sm:$0xf]
  %v58 = vld [vmem:[%s1 + $0xa8] sm:$0xff]
  %v59 = vld [vmem:[%s1 + $0xb0] sm:$0xf]
  %v60 = vld [vmem:[%s1 + $0xb4] sm:$0xff]
  %v61 = vld [vmem:[%s1 + $0xbc] sm:$0xf]
  %v62 = vld [vmem:[%s2] sm:$0x7]
  %v64 = vperm.slane %v62, 0
  %v65 = vperm.slane %v62, 1
  %v66 = vperm.slane %v62, 2
  %v86 = vunpack.c.l.b16 %v14
  %v87 = vunpack.c.l.b16 %v15
  %v88 = vunpack.c.l.b16 %v16
  %v89 = vunpack.c.l.b16 %v17
  %v90 = vunpack.c.l.b16 %v18
  %v91 = vunpack.c.l.b16 %v19
  %v92 = vunpack.c.l.b16 %v20
  %v93 = vunpack.c.l.b16 %v21
  %v94 = vunpack.c.l.b16 %v22
  %v95 = vunpack.c.l.b16 %v23
  %v96 = vunpack.c.l.b16 %v24
  %v97 = vunpack.c.l.b16 %v25
  %v98 = vunpack.c.l.b16 %v26
  %v99 = vunpack.c.l.b16 %v27
  %v100 = vunpack.c.l.b16 %v28
  %v101 = vunpack.c.l.b16 %v29
  %v102 = vpack.c.b16 %v87, %v86
  %v103 = vpack.c.b16 %v89, %v88
  %v104 = vpack.c.b16 %v91, %v90
  %v105 = vpack.c.b16 %v93, %v92
  %v106 = vpack.c.b16 %v95, %v94
  %v107 = vpack.c.b16 %v97, %v96
  %v108 = vpack.c.b16 %v99, %v98
  %v109 = vpack.c.b16 %v101, %v100
  %v150 = vunpack.c.l.b16 %v30
  %v151 = vunpack.c.h.b16 %v30
  %v152 = vunpack.c.l.b16 %v31
  %v153 = vunpack.c.l.b16 %v32
  %v154 = vunpack.c.h.b16 %v32
  %v155 = vunpack.c.l.b16 %v33
  %v156 = vunpack.c.l.b16 %v34
  %v157 = vunpack.c.h.b16 %v34
  %v158 = vunpack.c.l.b16 %v35
  %v159 = vunpack.c.l.b16 %v36
  %v160 = vunpack.c.h.b16 %v36
  %v161 = vunpack.c.l.b16 %v37
  %v162 = vunpack.c.l.b16 %v38
  %v163 = vunpack.c.h.b16 %v38
  %v164 = vunpack.c.l.b16 %v39
  %v165 = vunpack.c.l.b16 %v40
  %v166 = vunpack.c.h.b16 %v40
  %v167 = vunpack.c.l.b16 %v41
  %v168 = vunpack.c.l.b16 %v42
  %v169 = vunpack.c.h.b16 %v42
  %v170 = vunpack.c.l.b16 %v43
  %v171 = vunpack.c.l.b16 %v44
  %v172 = vunpack.c.h.b16 %v44
  %v173 = vunpack.c.l.b16 %v45
  %v174 = vunpack.c.l.b16 %v46
  %v175 = vunpack.c.h.b16 %v46
  %v176 = vunpack.c.l.b16 %v47
  %v177 = vunpack.c.l.b16 %v48
  %v178 = vunpack.c.h.b16 %v48
  %v179 = vunpack.c.l.b16 %v49
  %v180 = vunpack.c.l.b16 %v50
  %v181 = vunpack.c.h.b16 %v50
  %v182 = vunpack.c.l.b16 %v51
  %v183 = vunpack.c.l.b16 %v52
  %v184 = vunpack.c.h.b16 %v52
  %v185 = vunpack.c.l.b16 %v53
  %v186 = vunpack.c.l.b16 %v54
  %v187 = vunpack.c.h.b16 %v54
  %v188 = vunpack.c.l.b16 %v55
  %v189 = vunpack.c.l.b16 %v56
  %v190 = vunpack.c.h.b16 %v56
  %v191 = vunpack.c.l.b16 %v57
  %v192 = vunpack.c.l.b16 %v58
  %v193 = vunpack.c.h.b16 %v58
  %v194 = vunpack.c.l.b16 %v59
  %v195 = vunpack.c.l.b16 %v60
  %v196 = vunpack.c.h.b16 %v60
  %v197 = vunpack.c.l.b16 %v61
  %v198 = vpack.c.b16 %v153, %v150
  %v199 = vpack.c.b16 %v154, %v151
  %v200 = vpack.c.b16 %v155, %v152
  %v201 = vpack.c.b16 %v159, %v156
  %v202 = vpack.c.b16 %v160, %v157
  %v203 = vpack.c.b16 %v161, %v158
  %v204 = vpack.c.b16 %v165, %v162
  %v205 = vpack.c.b16 %v166, %v163
  %v206 = vpack.c.b16 %v167, %v164
  %v207 = vpack.c.b16 %v171, %v168
  %v208 = vpack.c.b16 %v172, %v169
  %v209 = vpack.c.b16 %v173, %v170
  %v210 = vpack.c.b16 %v177, %v174
  %v211 = vpack.c.b16 %v178, %v175
  %v212 = vpack.c.b16 %v179, %v176
  %v213 = vpack.c.b16 %v183, %v180
  %v214 = vpack.c.b16 %v184, %v181
  %v215 = vpack.c.b16 %v185, %v182
  %v216 = vpack.c.b16 %v189, %v186
  %v217 = vpack.c.b16 %v190, %v187
  %v218 = vpack.c.b16 %v191, %v188
  %v219 = vpack.c.b16 %v195, %v192
  %v220 = vpack.c.b16 %v196, %v193
  %v221 = vpack.c.b16 %v197, %v194
  %246 = vmatpush.bf16.msra.mxu0 %v219
  %247 = vmatpush.bf16.msra.mxu0 %v216
  %248 = vmatpush.bf16.msra.mxu0 %v213
  %249 = vmatpush.bf16.msra.mxu0 %v210
  %250 = vmatpush.bf16.msra.mxu0 %v207
  %251 = vmatpush.bf16.msra.mxu0 %v204
  %252 = vmatpush.bf16.msra.mxu0 %v201
  %253 = vmatpush.bf16.msra.mxu0 %v198
  %254 = vmatmul.bf16.gmra.mxu0 %v102
  %v255 = vpop.f32.mrf.mxu0
  %v256 = vadd.f32 %v64, %v255
  %v257 = vpop.f32.mrf.mxu0
  %v258 = vadd.f32 %v64, %v257
  %259 = vmatmul.bf16.gmra.mxu0 %v103
  %v260 = vpop.f32.mrf.mxu0
  %v261 = vadd.f32 %v64, %v260
  %v262 = vpop.f32.mrf.mxu0
  %v263 = vadd.f32 %v64, %v262
  %264 = vmatmul.bf16.gmra.mxu0 %v104
  %v265 = vpop.f32.mrf.mxu0
  %v266 = vadd.f32 %v64, %v265
  %v267 = vpop.f32.mrf.mxu0
  %v268 = vadd.f32 %v64, %v267
  %269 = vmatmul.bf16.gmra.mxu0 %v105
  %v270 = vpop.f32.mrf.mxu0
  %v271 = vadd.f32 %v64, %v270
  %v272 = vpop.f32.mrf.mxu0
  %v273 = vadd.f32 %v64, %v272
  %274 = vmatmul.bf16.gmra.mxu0 %v106
  %v275 = vpop.f32.mrf.mxu0
  %v276 = vadd.f32 %v64, %v275
  %v277 = vpop.f32.mrf.mxu0
  %v278 = vadd.f32 %v64, %v277
  %279 = vmatmul.bf16.gmra.mxu0 %v107
  %v280 = vpop.f32.mrf.mxu0
  %v281 = vadd.f32 %v64, %v280
  %v282 = vpop.f32.mrf.mxu0
  %v283 = vadd.f32 %v64, %v282
  %284 = vmatmul.bf16.gmra.mxu0 %v108
  %v285 = vpop.f32.mrf.mxu0
  %v286 = vadd.f32 %v64, %v285
  %v287 = vpop.f32.mrf.mxu0
  %v288 = vadd.f32 %v64, %v287
  %289 = vmatmul.bf16.gmra.mxu0 %v109
  %v290 = vpop.f32.mrf.mxu0
  %v291 = vadd.f32 %v64, %v290
  %v292 = vpop.f32.mrf.mxu0
  %v293 = vadd.f32 %v64, %v292
  %294 = vdwg.mxu0
  %295 = vmatpush.bf16.msra.mxu0 %v220
  %296 = vmatpush.bf16.msra.mxu0 %v217
  %297 = vmatpush.bf16.msra.mxu0 %v214
  %298 = vmatpush.bf16.msra.mxu0 %v211
  %299 = vmatpush.bf16.msra.mxu0 %v208
  %300 = vmatpush.bf16.msra.mxu0 %v205
  %301 = vmatpush.bf16.msra.mxu0 %v202
  %302 = vmatpush.bf16.msra.mxu0 %v199
  %303 = vmatmul.bf16.gmra.mxu0 %v102
  %v304 = vpop.f32.mrf.mxu0
  %v305 = vadd.f32 %v65, %v304
  %v306 = vpop.f32.mrf.mxu0
  %v307 = vadd.f32 %v65, %v306
  %308 = vmatmul.bf16.gmra.mxu0 %v103
  %v309 = vpop.f32.mrf.mxu0
  %v310 = vadd.f32 %v65, %v309
  %v311 = vpop.f32.mrf.mxu0
  %v312 = vadd.f32 %v65, %v311
  %313 = vmatmul.bf16.gmra.mxu0 %v104
  %v314 = vpop.f32.mrf.mxu0
  %v315 = vadd.f32 %v65, %v314
  %v316 = vpop.f32.mrf.mxu0
  %v317 = vadd.f32 %v65, %v316
  %318 = vmatmul.bf16.gmra.mxu0 %v105
  %v319 = vpop.f32.mrf.mxu0
  %v320 = vadd.f32 %v65, %v319
  %v321 = vpop.f32.mrf.mxu0
  %v322 = vadd.f32 %v65, %v321
  %323 = vmatmul.bf16.gmra.mxu0 %v106
  %v324 = vpop.f32.mrf.mxu0
  %v325 = vadd.f32 %v65, %v324
  %v326 = vpop.f32.mrf.mxu0
  %v327 = vadd.f32 %v65, %v326
  %328 = vmatmul.bf16.gmra.mxu0 %v107
  %v329 = vpop.f32.mrf.mxu0
  %v330 = vadd.f32 %v65, %v329
  %v331 = vpop.f32.mrf.mxu0
  %v332 = vadd.f32 %v65, %v331
  %333 = vmatmul.bf16.gmra.mxu0 %v108
  %v334 = vpop.f32.mrf.mxu0
  %v335 = vadd.f32 %v65, %v334
  %v336 = vpop.f32.mrf.mxu0
  %v337 = vadd.f32 %v65, %v336
  %338 = vmatmul.bf16.gmra.mxu0 %v109
  %v339 = vpop.f32.mrf.mxu0
  %v340 = vadd.f32 %v65, %v339
  %v341 = vpop.f32.mrf.mxu0
  %v342 = vadd.f32 %v65, %v341
  %343 = vdwg.mxu0
  %344 = vmatpush.bf16.msra.mxu0 %v221
  %345 = vmatpush.bf16.msra.mxu0 %v218
  %346 = vmatpush.bf16.msra.mxu0 %v215
  %347 = vmatpush.bf16.msra.mxu0 %v212
  %348 = vmatpush.bf16.msra.mxu0 %v209
  %349 = vmatpush.bf16.msra.mxu0 %v206
  %350 = vmatpush.bf16.msra.mxu0 %v203
  %351 = vmatpush.bf16.msra.mxu0 %v200
  %352 = vmatmul.bf16.gmra.mxu0 %v102
  %v353 = vpop.f32.mrf.mxu0
  %v354 = vadd.f32 %v66, %v353
  %v355 = vpop.f32.mrf.mxu0
  %v356 = vadd.f32 %v66, %v355
  %357 = vmatmul.bf16.gmra.mxu0 %v103
  %v358 = vpop.f32.mrf.mxu0
  %v359 = vadd.f32 %v66, %v358
  %v360 = vpop.f32.mrf.mxu0
  %v361 = vadd.f32 %v66, %v360
  %362 = vmatmul.bf16.gmra.mxu0 %v104
  %v363 = vpop.f32.mrf.mxu0
  %v364 = vadd.f32 %v66, %v363
  %v365 = vpop.f32.mrf.mxu0
  %v366 = vadd.f32 %v66, %v365
  %367 = vmatmul.bf16.gmra.mxu0 %v105
  %v368 = vpop.f32.mrf.mxu0
  %v369 = vadd.f32 %v66, %v368
  %v370 = vpop.f32.mrf.mxu0
  %v371 = vadd.f32 %v66, %v370
  %372 = vmatmul.bf16.gmra.mxu0 %v106
  %v373 = vpop.f32.mrf.mxu0
  %v374 = vadd.f32 %v66, %v373
  %v375 = vpop.f32.mrf.mxu0
  %v376 = vadd.f32 %v66, %v375
  %377 = vmatmul.bf16.gmra.mxu0 %v107
  %v378 = vpop.f32.mrf.mxu0
  %v379 = vadd.f32 %v66, %v378
  %v380 = vpop.f32.mrf.mxu0
  %v381 = vadd.f32 %v66, %v380
  %382 = vmatmul.bf16.gmra.mxu0 %v108
  %v383 = vpop.f32.mrf.mxu0
  %v384 = vadd.f32 %v66, %v383
  %v385 = vpop.f32.mrf.mxu0
  %v386 = vadd.f32 %v66, %v385
  %387 = vmatmul.bf16.gmra.mxu0 %v109
  %v388 = vpop.f32.mrf.mxu0
  %v389 = vadd.f32 %v66, %v388
  %v390 = vpop.f32.mrf.mxu0
  %v391 = vadd.f32 %v66, %v390
  %392 = vdwg.mxu0
  %v393 = vpack.c.bf16 %v305, %v256
  %v394 = vpack.c.bf16 %v354, %v354
  %v395 = vpack.c.bf16 %v307, %v258
  %v396 = vpack.c.bf16 %v356, %v356
  %v397 = vpack.c.bf16 %v310, %v261
  %v398 = vpack.c.bf16 %v359, %v359
  %v399 = vpack.c.bf16 %v312, %v263
  %v400 = vpack.c.bf16 %v361, %v361
  %v401 = vpack.c.bf16 %v315, %v266
  %v402 = vpack.c.bf16 %v364, %v364
  %v403 = vpack.c.bf16 %v317, %v268
  %v404 = vpack.c.bf16 %v366, %v366
  %v405 = vpack.c.bf16 %v320, %v271
  %v406 = vpack.c.bf16 %v369, %v369
  %v407 = vpack.c.bf16 %v322, %v273
  %v408 = vpack.c.bf16 %v371, %v371
  %v409 = vpack.c.bf16 %v325, %v276
  %v410 = vpack.c.bf16 %v374, %v374
  %v411 = vpack.c.bf16 %v327, %v278
  %v412 = vpack.c.bf16 %v376, %v376
  %v413 = vpack.c.bf16 %v330, %v281
  %v414 = vpack.c.bf16 %v379, %v379
  %v415 = vpack.c.bf16 %v332, %v283
  %v416 = vpack.c.bf16 %v381, %v381
  %v417 = vpack.c.bf16 %v335, %v286
  %v418 = vpack.c.bf16 %v384, %v384
  %v419 = vpack.c.bf16 %v337, %v288
  %v420 = vpack.c.bf16 %v386, %v386
  %v421 = vpack.c.bf16 %v340, %v291
  %v422 = vpack.c.bf16 %v389, %v389
  %v423 = vpack.c.bf16 %v342, %v293
  %v424 = vpack.c.bf16 %v391, %v391
  %425 = vst [vmem:[%s3] sm:$0xff] %v393
  %426 = vst [vmem:[%s3 + $0x8] sm:$0xf] %v394
  %427 = vst [vmem:[%s3 + $0xc] sm:$0xff] %v395
  %428 = vst [vmem:[%s3 + $0x14] sm:$0xf] %v396
  %429 = vst [vmem:[%s3 + $0x18] sm:$0xff] %v397
  %430 = vst [vmem:[%s3 + $0x20] sm:$0xf] %v398
  %431 = vst [vmem:[%s3 + $0x24] sm:$0xff] %v399
  %432 = vst [vmem:[%s3 + $0x2c] sm:$0xf] %v400
  %433 = vst [vmem:[%s3 + $0x30] sm:$0xff] %v401
  %434 = vst [vmem:[%s3 + $0x38] sm:$0xf] %v402
  %435 = vst [vmem:[%s3 + $0x3c] sm:$0xff] %v403
  %436 = vst [vmem:[%s3 + $0x44] sm:$0xf] %v404
  %437 = vst [vmem:[%s3 + $0x48] sm:$0xff] %v405
  %438 = vst [vmem:[%s3 + $0x50] sm:$0xf] %v406
  %439 = vst [vmem:[%s3 + $0x54] sm:$0xff] %v407
  %440 = vst [vmem:[%s3 + $0x5c] sm:$0xf] %v408
  %441 = vst [vmem:[%s3 + $0x60] sm:$0xff] %v409
  %442 = vst [vmem:[%s3 + $0x68] sm:$0xf] %v410
  %443 = vst [vmem:[%s3 + $0x6c] sm:$0xff] %v411
  %444 = vst [vmem:[%s3 + $0x74] sm:$0xf] %v412
  %445 = vst [vmem:[%s3 + $0x78] sm:$0xff] %v413
  %446 = vst [vmem:[%s3 + $0x80] sm:$0xf] %v414
  %447 = vst [vmem:[%s3 + $0x84] sm:$0xff] %v415
  %448 = vst [vmem:[%s3 + $0x8c] sm:$0xf] %v416
  %449 = vst [vmem:[%s3 + $0x90] sm:$0xff] %v417
  %450 = vst [vmem:[%s3 + $0x98] sm:$0xf] %v418
  %451 = vst [vmem:[%s3 + $0x9c] sm:$0xff] %v419
  %452 = vst [vmem:[%s3 + $0xa4] sm:$0xf] %v420
  %453 = vst [vmem:[%s3 + $0xa8] sm:$0xff] %v421
  %454 = vst [vmem:[%s3 + $0xb0] sm:$0xf] %v422
  %455 = vst [vmem:[%s3 + $0xb4] sm:$0xff] %v423
  %456 = vst [vmem:[%s3 + $0xbc] sm:$0xf] %v424
  // Predicated region
  $region14: #{seq2seq_forward.5} parent=0 // pred_check
    _
  $region15: #{seq2seq_forward.5} parent=0 // pred_check_branch
    %458 = sbr.rel (0) target = $region17
  $region16: #{seq2seq_forward.5} parent=0 // pred_region
    _
  $region17: #{seq2seq_forward.5} parent=0 // pred_fallthru
    _
  // Predicated region
  $region18: #{seq2seq_forward.5} parent=0 // pred_check
    _
  $region19: #{seq2seq_forward.5} parent=0 // pred_check_branch
    %460 = sbr.rel (0) target = $region21
  $region20: #{seq2seq_forward.5} parent=0 // pred_region
    _
  $region21: #{seq2seq_forward.5} parent=0 // pred_fallthru
    _

// kernel: seq2seq_forward.7
$region0: #{seq2seq_forward.7}
  #allocation0 [shape = 'u32[]', space=smem, size = 0x4, offset = 0x4, fixed_abs, tag = 'smem constant byte address 0x4 - core index']
  #allocation1 [shape = 'u32[72,128]{1,0:T(1,128)}', space=vmem, size = 0x9000, scoped, tag = 'internal scratch']
  %s0 = inlined_call_operand.vmem [shape: bf16[96,128], index: 0, kind: input, shape index: {}]
  %s1 = inlined_call_operand.vmem [shape: bf16[128,384], index: 1, kind: input, shape index: {}]
  %s2 = inlined_call_operand.vmem [shape: f32[1,384], index: 2, kind: input, shape index: {}]
  %s3 = inlined_call_operand.vmem [shape: bf16[96,384], index: 3, kind: output, shape index: {}]
  %s4 = sld [smem:[#allocation0]]
  $region22: #{seq2seq_forward.7} parent=0
    _
  %s6 = ssub.s32 1, %s4
  %s7 = scalar_select 0, %s6, %s4
  // Predicated region
  $region2: #{seq2seq_forward.7} parent=0 // pred_check
    _
  $region3: #{seq2seq_forward.7} parent=0 // pred_check_branch
    %9 = sbr.rel (0) target = $region5
  $region4: #{seq2seq_forward.7} parent=0 // pred_region
    _
  $region5: #{seq2seq_forward.7} parent=0 // pred_fallthru
    _
  // Predicated region
  $region6: #{seq2seq_forward.7} parent=0 // pred_check
    _
  $region7: #{seq2seq_forward.7} parent=0 // pred_check_branch
    %11 = sbr.rel (0) target = $region9
  $region8: #{seq2seq_forward.7} parent=0 // pred_region
    _
  $region9: #{seq2seq_forward.7} parent=0 // pred_fallthru
    _
  // Predicated region
  $region10: #{seq2seq_forward.7} parent=0 // pred_check
    _
  $region11: #{seq2seq_forward.7} parent=0 // pred_check_branch
    %13 = sbr.rel (0) target = $region13
  $region12: #{seq2seq_forward.7} parent=0 // pred_region
    _
  $region13: #{seq2seq_forward.7} parent=0 // pred_fallthru
    _
  %v14 = vld [vmem:[%s0] sm:$0xf]
  %v15 = vld [vmem:[%s0 + $0x4] sm:$0xf]
  %v16 = vld [vmem:[%s0 + $0x8] sm:$0xf]
  %v17 = vld [vmem:[%s0 + $0xc] sm:$0xf]
  %v18 = vld [vmem:[%s0 + $0x10] sm:$0xf]
  %v19 = vld [vmem:[%s0 + $0x14] sm:$0xf]
  %v20 = vld [vmem:[%s0 + $0x18] sm:$0xf]
  %v21 = vld [vmem:[%s0 + $0x1c] sm:$0xf]
  %v22 = vld [vmem:[%s0 + $0x20] sm:$0xf]
  %v23 = vld [vmem:[%s0 + $0x24] sm:$0xf]
  %v24 = vld [vmem:[%s0 + $0x28] sm:$0xf]
  %v25 = vld [vmem:[%s0 + $0x2c] sm:$0xf]
  %v26 = vld [vmem:[%s1] sm:$0xff]
  %v27 = vld [vmem:[%s1 + $0x8] sm:$0xf]
  %v28 = vld [vmem:[%s1 + $0xc] sm:$0xff]
  %v29 = vld [vmem:[%s1 + $0x14] sm:$0xf]
  %v30 = vld [vmem:[%s1 + $0x18] sm:$0xff]
  %v31 = vld [vmem:[%s1 + $0x20] sm:$0xf]
  %v32 = vld [vmem:[%s1 + $0x24] sm:$0xff]
  %v33 = vld [vmem:[%s1 + $0x2c] sm:$0xf]
  %v34 = vld [vmem:[%s1 + $0x30] sm:$0xff]
  %v35 = vld [vmem:[%s1 + $0x38] sm:$0xf]
  %v36 = vld [vmem:[%s1 + $0x3c] sm:$0xff]
  %v37 = vld [vmem:[%s1 + $0x44] sm:$0xf]
  %v38 = vld [vmem:[%s1 + $0x48] sm:$0xff]
  %v39 = vld [vmem:[%s1 + $0x50] sm:$0xf]
  %v40 = vld [vmem:[%s1 + $0x54] sm:$0xff]
  %v41 = vld [vmem:[%s1 + $0x5c] sm:$0xf]
  %v42 = vld [vmem:[%s1 + $0x60] sm:$0xff]
  %v43 = vld [vmem:[%s1 + $0x68] sm:$0xf]
  %v44 = vld [vmem:[%s1 + $0x6c] sm:$0xff]
  %v45 = vld [vmem:[%s1 + $0x74] sm:$0xf]
  %v46 = vld [vmem:[%s1 + $0x78] sm:$0xff]
  %v47 = vld [vmem:[%s1 + $0x80] sm:$0xf]
  %v48 = vld [vmem:[%s1 + $0x84] sm:$0xff]
  %v49 = vld [vmem:[%s1 + $0x8c] sm:$0xf]
  %v50 = vld [vmem:[%s1 + $0x90] sm:$0xff]
  %v51 = vld [vmem:[%s1 + $0x98] sm:$0xf]
  %v52 = vld [vmem:[%s1 + $0x9c] sm:$0xff]
  %v53 = vld [vmem:[%s1 + $0xa4] sm:$0xf]
  %v54 = vld [vmem:[%s1 + $0xa8] sm:$0xff]
  %v55 = vld [vmem:[%s1 + $0xb0] sm:$0xf]
  %v56 = vld [vmem:[%s1 + $0xb4] sm:$0xff]
  %v57 = vld [vmem:[%s1 + $0xbc] sm:$0xf]
  %v58 = vld [vmem:[%s2] sm:$0x7]
  %v60 = vperm.slane %v58, 0
  %v61 = vperm.slane %v58, 1
  %v62 = vperm.slane %v58, 2
  %v78 = vunpack.c.l.b16 %v14
  %v79 = vunpack.c.l.b16 %v15
  %v80 = vunpack.c.l.b16 %v16
  %v81 = vunpack.c.l.b16 %v17
  %v82 = vunpack.c.l.b16 %v18
  %v83 = vunpack.c.l.b16 %v19
  %v84 = vunpack.c.l.b16 %v20
  %v85 = vunpack.c.l.b16 %v21
  %v86 = vunpack.c.l.b16 %v22
  %v87 = vunpack.c.l.b16 %v23
  %v88 = vunpack.c.l.b16 %v24
  %v89 = vunpack.c.l.b16 %v25
  %v90 = vpack.c.b16 %v79, %v78
  %v91 = vpack.c.b16 %v81, %v80
  %v92 = vpack.c.b16 %v83, %v82
  %v93 = vpack.c.b16 %v85, %v84
  %v94 = vpack.c.b16 %v87, %v86
  %v95 = vpack.c.b16 %v89, %v88
  %v134 = vunpack.c.l.b16 %v26
  %v135 = vunpack.c.h.b16 %v26
  %v136 = vunpack.c.l.b16 %v27
  %v137 = vunpack.c.l.b16 %v28
  %v138 = vunpack.c.h.b16 %v28
  %v139 = vunpack.c.l.b16 %v29
  %v140 = vunpack.c.l.b16 %v30
  %v141 = vunpack.c.h.b16 %v30
  %v142 = vunpack.c.l.b16 %v31
  %v143 = vunpack.c.l.b16 %v32
  %v144 = vunpack.c.h.b16 %v32
  %v145 = vunpack.c.l.b16 %v33
  %v146 = vunpack.c.l.b16 %v34
  %v147 = vunpack.c.h.b16 %v34
  %v148 = vunpack.c.l.b16 %v35
  %v149 = vunpack.c.l.b16 %v36
  %v150 = vunpack.c.h.b16 %v36
  %v151 = vunpack.c.l.b16 %v37
  %v152 = vunpack.c.l.b16 %v38
  %v153 = vunpack.c.h.b16 %v38
  %v154 = vunpack.c.l.b16 %v39
  %v155 = vunpack.c.l.b16 %v40
  %v156 = vunpack.c.h.b16 %v40
  %v157 = vunpack.c.l.b16 %v41
  %v158 = vunpack.c.l.b16 %v42
  %v159 = vunpack.c.h.b16 %v42
  %v160 = vunpack.c.l.b16 %v43
  %v161 = vunpack.c.l.b16 %v44
  %v162 = vunpack.c.h.b16 %v44
  %v163 = vunpack.c.l.b16 %v45
  %v164 = vunpack.c.l.b16 %v46
  %v165 = vunpack.c.h.b16 %v46
  %v166 = vunpack.c.l.b16 %v47
  %v167 = vunpack.c.l.b16 %v48
  %v168 = vunpack.c.h.b16 %v48
  %v169 = vunpack.c.l.b16 %v49
  %v170 = vunpack.c.l.b16 %v50
  %v171 = vunpack.c.h.b16 %v50
  %v172 = vunpack.c.l.b16 %v51
  %v173 = vunpack.c.l.b16 %v52
  %v174 = vunpack.c.h.b16 %v52
  %v175 = vunpack.c.l.b16 %v53
  %v176 = vunpack.c.l.b16 %v54
  %v177 = vunpack.c.h.b16 %v54
  %v178 = vunpack.c.l.b16 %v55
  %v179 = vunpack.c.l.b16 %v56
  %v180 = vunpack.c.h.b16 %v56
  %v181 = vunpack.c.l.b16 %v57
  %v182 = vpack.c.b16 %v137, %v134
  %v183 = vpack.c.b16 %v138, %v135
  %v184 = vpack.c.b16 %v139, %v136
  %v185 = vpack.c.b16 %v143, %v140
  %v186 = vpack.c.b16 %v144, %v141
  %v187 = vpack.c.b16 %v145, %v142
  %v188 = vpack.c.b16 %v149, %v146
  %v189 = vpack.c.b16 %v150, %v147
  %v190 = vpack.c.b16 %v151, %v148
  %v191 = vpack.c.b16 %v155, %v152
  %v192 = vpack.c.b16 %v156, %v153
  %v193 = vpack.c.b16 %v157, %v154
  %v194 = vpack.c.b16 %v161, %v158
  %v195 = vpack.c.b16 %v162, %v159
  %v196 = vpack.c.b16 %v163, %v160
  %v197 = vpack.c.b16 %v167, %v164
  %v198 = vpack.c.b16 %v168, %v165
  %v199 = vpack.c.b16 %v169, %v166
  %v200 = vpack.c.b16 %v173, %v170
  %v201 = vpack.c.b16 %v174, %v171
  %v202 = vpack.c.b16 %v175, %v172
  %v203 = vpack.c.b16 %v179, %v176
  %v204 = vpack.c.b16 %v180, %v177
  %v205 = vpack.c.b16 %v181, %v178
  %230 = vmatpush.bf16.msra.mxu0 %v203
  %231 = vmatpush.bf16.msra.mxu0 %v200
  %232 = vmatpush.bf16.msra.mxu0 %v197
  %233 = vmatpush.bf16.msra.mxu0 %v194
  %234 = vmatpush.bf16.msra.mxu0 %v191
  %235 = vmatpush.bf16.msra.mxu0 %v188
  %236 = vmatpush.bf16.msra.mxu0 %v185
  %237 = vmatpush.bf16.msra.mxu0 %v182
  %238 = vmatmul.bf16.gmra.mxu0 %v90
  %v239 = vpop.f32.mrf.mxu0
  %v240 = vadd.f32 %v60, %v239
  %v241 = vpop.f32.mrf.mxu0
  %v242 = vadd.f32 %v60, %v241
  %243 = vmatmul.bf16.gmra.mxu0 %v91
  %v244 = vpop.f32.mrf.mxu0
  %v245 = vadd.f32 %v60, %v244
  %v246 = vpop.f32.mrf.mxu0
  %v247 = vadd.f32 %v60, %v246
  %248 = vmatmul.bf16.gmra.mxu0 %v92
  %v249 = vpop.f32.mrf.mxu0
  %v250 = vadd.f32 %v60, %v249
  %v251 = vpop.f32.mrf.mxu0
  %v252 = vadd.f32 %v60, %v251
  %253 = vmatmul.bf16.gmra.mxu0 %v93
  %v254 = vpop.f32.mrf.mxu0
  %v255 = vadd.f32 %v60, %v254
  %v256 = vpop.f32.mrf.mxu0
  %v257 = vadd.f32 %v60, %v256
  %258 = vmatmul.bf16.gmra.mxu0 %v94
  %v259 = vpop.f32.mrf.mxu0
  %v260 = vadd.f32 %v60, %v259
  %v261 = vpop.f32.mrf.mxu0
  %v262 = vadd.f32 %v60, %v261
  %263 = vmatmul.bf16.gmra.mxu0 %v95
  %v264 = vpop.f32.mrf.mxu0
  %v265 = vadd.f32 %v60, %v264
  %v266 = vpop.f32.mrf.mxu0
  %v267 = vadd.f32 %v60, %v266
  %268 = vdwg.mxu0
  %269 = vmatpush.bf16.msra.mxu0 %v204
  %270 = vmatpush.bf16.msra.mxu0 %v201
  %271 = vmatpush.bf16.msra.mxu0 %v198
  %272 = vmatpush.bf16.msra.mxu0 %v195
  %273 = vmatpush.bf16.msra.mxu0 %v192
  %274 = vmatpush.bf16.msra.mxu0 %v189
  %275 = vmatpush.bf16.msra.mxu0 %v186
  %276 = vmatpush.bf16.msra.mxu0 %v183
  %277 = vmatmul.bf16.gmra.mxu0 %v90
  %v278 = vpop.f32.mrf.mxu0
  %v279 = vadd.f32 %v61, %v278
  %v280 = vpop.f32.mrf.mxu0
  %v281 = vadd.f32 %v61, %v280
  %282 = vmatmul.bf16.gmra.mxu0 %v91
  %v283 = vpop.f32.mrf.mxu0
  %v284 = vadd.f32 %v61, %v283
  %v285 = vpop.f32.mrf.mxu0
  %v286 = vadd.f32 %v61, %v285
  %287 = vmatmul.bf16.gmra.mxu0 %v92
  %v288 = vpop.f32.mrf.mxu0
  %v289 = vadd.f32 %v61, %v288
  %v290 = vpop.f32.mrf.mxu0
  %v291 = vadd.f32 %v61, %v290
  %292 = vmatmul.bf16.gmra.mxu0 %v93
  %v293 = vpop.f32.mrf.mxu0
  %v294 = vadd.f32 %v61, %v293
  %v295 = vpop.f32.mrf.mxu0
  %v296 = vadd.f32 %v61, %v295
  %297 = vmatmul.bf16.gmra.mxu0 %v94
  %v298 = vpop.f32.mrf.mxu0
  %v299 = vadd.f32 %v61, %v298
  %v300 = vpop.f32.mrf.mxu0
  %v301 = vadd.f32 %v61, %v300
  %302 = vmatmul.bf16.gmra.mxu0 %v95
  %v303 = vpop.f32.mrf.mxu0
  %v304 = vadd.f32 %v61, %v303
  %v305 = vpop.f32.mrf.mxu0
  %v306 = vadd.f32 %v61, %v305
  %307 = vdwg.mxu0
  %308 = vmatpush.bf16.msra.mxu0 %v205
  %309 = vmatpush.bf16.msra.mxu0 %v202
  %310 = vmatpush.bf16.msra.mxu0 %v199
  %311 = vmatpush.bf16.msra.mxu0 %v196
  %312 = vmatpush.bf16.msra.mxu0 %v193
  %313 = vmatpush.bf16.msra.mxu0 %v190
  %314 = vmatpush.bf16.msra.mxu0 %v187
  %315 = vmatpush.bf16.msra.mxu0 %v184
  %316 = vmatmul.bf16.gmra.mxu0 %v90
  %v317 = vpop.f32.mrf.mxu0
  %v318 = vadd.f32 %v62, %v317
  %v319 = vpop.f32.mrf.mxu0
  %v320 = vadd.f32 %v62, %v319
  %321 = vmatmul.bf16.gmra.mxu0 %v91
  %v322 = vpop.f32.mrf.mxu0
  %v323 = vadd.f32 %v62, %v322
  %v324 = vpop.f32.mrf.mxu0
  %v325 = vadd.f32 %v62, %v324
  %326 = vmatmul.bf16.gmra.mxu0 %v92
  %v327 = vpop.f32.mrf.mxu0
  %v328 = vadd.f32 %v62, %v327
  %v329 = vpop.f32.mrf.mxu0
  %v330 = vadd.f32 %v62, %v329
  %331 = vmatmul.bf16.gmra.mxu0 %v93
  %v332 = vpop.f32.mrf.mxu0
  %v333 = vadd.f32 %v62, %v332
  %v334 = vpop.f32.mrf.mxu0
  %v335 = vadd.f32 %v62, %v334
  %336 = vmatmul.bf16.gmra.mxu0 %v94
  %v337 = vpop.f32.mrf.mxu0
  %v338 = vadd.f32 %v62, %v337
  %v339 = vpop.f32.mrf.mxu0
  %v340 = vadd.f32 %v62, %v339
  %341 = vmatmul.bf16.gmra.mxu0 %v95
  %v342 = vpop.f32.mrf.mxu0
  %v343 = vadd.f32 %v62, %v342
  %v344 = vpop.f32.mrf.mxu0
  %v345 = vadd.f32 %v62, %v344
  %346 = vdwg.mxu0
  %v347 = vpack.c.bf16 %v279, %v240
  %v348 = vpack.c.bf16 %v318, %v318
  %v349 = vpack.c.bf16 %v281, %v242
  %v350 = vpack.c.bf16 %v320, %v320
  %v351 = vpack.c.bf16 %v284, %v245
  %v352 = vpack.c.bf16 %v323, %v323
  %v353 = vpack.c.bf16 %v286, %v247
  %v354 = vpack.c.bf16 %v325, %v325
  %v355 = vpack.c.bf16 %v289, %v250
  %v356 = vpack.c.bf16 %v328, %v328
  %v357 = vpack.c.bf16 %v291, %v252
  %v358 = vpack.c.bf16 %v330, %v330
  %v359 = vpack.c.bf16 %v294, %v255
  %v360 = vpack.c.bf16 %v333, %v333
  %v361 = vpack.c.bf16 %v296, %v257
  %v362 = vpack.c.bf16 %v335, %v335
  %v363 = vpack.c.bf16 %v299, %v260
  %v364 = vpack.c.bf16 %v338, %v338
  %v365 = vpack.c.bf16 %v301, %v262
  %v366 = vpack.c.bf16 %v340, %v340
  %v367 = vpack.c.bf16 %v304, %v265
  %v368 = vpack.c.bf16 %v343, %v343
  %v369 = vpack.c.bf16 %v306, %v267
  %v370 = vpack.c.bf16 %v345, %v345
  %371 = vst [vmem:[%s3] sm:$0xff] %v347
  %372 = vst [vmem:[%s3 + $0x8] sm:$0xf] %v348
  %373 = vst [vmem:[%s3 + $0xc] sm:$0xff] %v349
  %374 = vst [vmem:[%s3 + $0x14] sm:$0xf] %v350
  %375 = vst [vmem:[%s3 + $0x18] sm:$0xff] %v351
  %376 = vst [vmem:[%s3 + $0x20] sm:$0xf] %v352
  %377 = vst [vmem:[%s3 + $0x24] sm:$0xff] %v353
  %378 = vst [vmem:[%s3 + $0x2c] sm:$0xf] %v354
  %379 = vst [vmem:[%s3 + $0x30] sm:$0xff] %v355
  %380 = vst [vmem:[%s3 + $0x38] sm:$0xf] %v356
  %381 = vst [vmem:[%s3 + $0x3c] sm:$0xff] %v357
  %382 = vst [vmem:[%s3 + $0x44] sm:$0xf] %v358
  %383 = vst [vmem:[%s3 + $0x48] sm:$0xff] %v359
  %384 = vst [vmem:[%s3 + $0x50] sm:$0xf] %v360
  %385 = vst [vmem:[%s3 + $0x54] sm:$0xff] %v361
  %386 = vst [vmem:[%s3 + $0x5c] sm:$0xf] %v362
  %387 = vst [vmem:[%s3 + $0x60] sm:$0xff] %v363
  %388 = vst [vmem:[%s3 + $0x68] sm:$0xf] %v364
  %389 = vst [vmem:[%s3 + $0x6c] sm:$0xff] %v365
  %390 = vst [vmem:[%s3 + $0x74] sm:$0xf] %v366
  %391 = vst [vmem:[%s3 + $0x78] sm:$0xff] %v367
  %392 = vst [vmem:[%s3 + $0x80] sm:$0xf] %v368
  %393 = vst [vmem:[%s3 + $0x84] sm:$0xff] %v369
  %394 = vst [vmem:[%s3 + $0x8c] sm:$0xf] %v370
  // Predicated region
  $region14: #{seq2seq_forward.7} parent=0 // pred_check
    _
  $region15: #{seq2seq_forward.7} parent=0 // pred_check_branch
    %396 = sbr.rel (0) target = $region17
  $region16: #{seq2seq_forward.7} parent=0 // pred_region
    _
  $region17: #{seq2seq_forward.7} parent=0 // pred_fallthru
    _
  // Predicated region
  $region18: #{seq2seq_forward.7} parent=0 // pred_check
    _
  $region19: #{seq2seq_forward.7} parent=0 // pred_check_branch
    %398 = sbr.rel (0) target = $region21
  $region20: #{seq2seq_forward.7} parent=0 // pred_region
    _
  $region21: #{seq2seq_forward.7} parent=0 // pred_fallthru
    _

// kernel: seq2seq_forward.6
$region0: #{seq2seq_forward.6}
  #allocation0 [shape = 'u32[]', space=smem, size = 0x4, offset = 0x4, fixed_abs, tag = 'smem constant byte address 0x4 - core index']
  #allocation1 [shape = 'u32[72,128]{1,0:T(1,128)}', space=vmem, size = 0x9000, scoped, tag = 'internal scratch']
  %s0 = inlined_call_operand.vmem [shape: bf16[8,16,384], index: 0, kind: input, shape index: {}]
  %s1 = inlined_call_operand.vmem [shape: s32[16,1], index: 1, kind: input, shape index: {}]
  %s2 = inlined_call_operand.vmem [shape: bf16[128,384], index: 2, kind: input, shape index: {}]
  %s3 = inlined_call_operand.vmem [shape: f32[1,128], index: 3, kind: input, shape index: {}]
  %s4 = inlined_call_operand.vmem [shape: f32[16,128], index: 4, kind: output, shape index: {}]
  %s5 = sld [smem:[#allocation0]]
  $region30: #{seq2seq_forward.6} parent=0
    _
  %s7 = ssub.s32 1, %s5
  %s8 = scalar_select 0, %s7, %s5
  // Predicated region
  $region2: #{seq2seq_forward.6} parent=0 // pred_check
    _
  $region3: #{seq2seq_forward.6} parent=0 // pred_check_branch
    %10 = sbr.rel (0) target = $region5
  $region4: #{seq2seq_forward.6} parent=0 // pred_region
    _
  $region5: #{seq2seq_forward.6} parent=0 // pred_fallthru
    _
  // Predicated region
  $region6: #{seq2seq_forward.6} parent=0 // pred_check
    _
  $region7: #{seq2seq_forward.6} parent=0 // pred_check_branch
    %12 = sbr.rel (0) target = $region9
  $region8: #{seq2seq_forward.6} parent=0 // pred_region
    _
  $region9: #{seq2seq_forward.6} parent=0 // pred_fallthru
    _
  // Predicated region
  $region10: #{seq2seq_forward.6} parent=0 // pred_check
    _
  $region11: #{seq2seq_forward.6} parent=0 // pred_check_branch
    %14 = sbr.rel (0) target = $region13
  $region12: #{seq2seq_forward.6} parent=0 // pred_region
    _
  $region13: #{seq2seq_forward.6} parent=0 // pred_fallthru
    _
  // Predicated region
  $region14: #{seq2seq_forward.6} parent=0 // pred_check
    _
  $region15: #{seq2seq_forward.6} parent=0 // pred_check_branch
    %16 = sbr.rel (0) target = $region17
  $region16: #{seq2seq_forward.6} parent=0 // pred_region
    _
  $region17: #{seq2seq_forward.6} parent=0 // pred_fallthru
    _
  %p17 = scmp.eq.s32.totalorder 0, 0
  // Predicated region
  $region18: #{seq2seq_forward.6} parent=0 // pred_check
    %p18 = pneg %p17
  $region19: #{seq2seq_forward.6} parent=0 // pred_check_branch
    %20 = sbr.rel (%p18) target = $region21
  $region20: #{seq2seq_forward.6} parent=0 // pred_region
    %21 = vst [vmem:[%s4] sm:$0xff] 0.0
    %22 = vst [vmem:[%s4 + $0x8] sm:$0xff] 0.0
  $region21: #{seq2seq_forward.6} parent=0 // pred_fallthru
    _
  %s23 = smul.u32 0, 8
  %v24 = vld [vmem:[%s1] sm:$0xff]
  %v25 = vld [vmem:[%s1 + $0x8] sm:$0xff]
  %v26 = vld [vmem:[%s4] sm:$0xff]
  %v27 = vld [vmem:[%s4 + $0x8] sm:$0xff]
  %v28 = vld [vmem:[%s0] sm:$0xff]
  %v29 = vld [vmem:[%s0 + $0x8] sm:$0xf]
  %v30 = vld [vmem:[%s0 + $0xc] sm:$0xff]
  %v31 = vld [vmem:[%s0 + $0x14] sm:$0xf]
  %v32 = vunpack.c.l.bf16 %v28
  %v33 = vunpack.c.h.bf16 %v28
  %v34 = vunpack.c.l.bf16 %v29
  %v35 = vunpack.c.l.bf16 %v30
  %v36 = vunpack.c.h.bf16 %v30
  %v37 = vunpack.c.l.bf16 %v31
  %v38 = vpack.c.bf16 %v27, %v26
  %v39 = vld [vmem:[%s2] sm:$0xff]
  %v40 = vld [vmem:[%s2 + $0x8] sm:$0xf]
  %v41 = vld [vmem:[%s2 + $0xc] sm:$0xff]
  %v42 = vld [vmem:[%s2 + $0x14] sm:$0xf]
  %v43 = vld [vmem:[%s2 + $0x18] sm:$0xff]
  %v44 = vld [vmem:[%s2 + $0x20] sm:$0xf]
  %v45 = vld [vmem:[%s2 + $0x24] sm:$0xff]
  %v46 = vld [vmem:[%s2 + $0x2c] sm:$0xf]
  %v47 = vld [vmem:[%s2 + $0x30] sm:$0xff]
  %v48 = vld [vmem:[%s2 + $0x38] sm:$0xf]
  %v49 = vld [vmem:[%s2 + $0x3c] sm:$0xff]
  %v50 = vld [vmem:[%s2 + $0x44] sm:$0xf]
  %v51 = vld [vmem:[%s2 + $0x48] sm:$0xff]
  %v52 = vld [vmem:[%s2 + $0x50] sm:$0xf]
  %v53 = vld [vmem:[%s2 + $0x54] sm:$0xff]
  %v54 = vld [vmem:[%s2 + $0x5c] sm:$0xf]
  %v55 = vld [vmem:[%s2 + $0x60] sm:$0xff]
  %v56 = vld [vmem:[%s2 + $0x68] sm:$0xf]
  %v57 = vld [vmem:[%s2 + $0x6c] sm:$0xff]
  %v58 = vld [vmem:[%s2 + $0x74] sm:$0xf]
  %v59 = vld [vmem:[%s2 + $0x78] sm:$0xff]
  %v60 = vld [vmem:[%s2 + $0x80] sm:$0xf]
  %v61 = vld [vmem:[%s2 + $0x84] sm:$0xff]
  %v62 = vld [vmem:[%s2 + $0x8c] sm:$0xf]
  %v63 = vld [vmem:[%s2 + $0x90] sm:$0xff]
  %v64 = vld [vmem:[%s2 + $0x98] sm:$0xf]
  %v65 = vld [vmem:[%s2 + $0x9c] sm:$0xff]
  %v66 = vld [vmem:[%s2 + $0xa4] sm:$0xf]
  %v67 = vld [vmem:[%s2 + $0xa8] sm:$0xff]
  %v68 = vld [vmem:[%s2 + $0xb0] sm:$0xf]
  %v69 = vld [vmem:[%s2 + $0xb4] sm:$0xff]
  %v70 = vld [vmem:[%s2 + $0xbc] sm:$0xf]
  %v103 = vunpack.c.l.b16 %v39
  %v104 = vunpack.c.h.b16 %v39
  %v105 = vunpack.c.l.b16 %v40
  %v106 = vunpack.c.l.b16 %v41
  %v107 = vunpack.c.h.b16 %v41
  %v108 = vunpack.c.l.b16 %v42
  %v109 = vunpack.c.l.b16 %v43
  %v110 = vunpack.c.h.b16 %v43
  %v111 = vunpack.c.l.b16 %v44
  %v112 = vunpack.c.l.b16 %v45
  %v113 = vunpack.c.h.b16 %v45
  %v114 = vunpack.c.l.b16 %v46
  %v115 = vunpack.c.l.b16 %v47
  %v116 = vunpack.c.h.b16 %v47
  %v117 = vunpack.c.l.b16 %v48
  %v118 = vunpack.c.l.b16 %v49
  %v119 = vunpack.c.h.b16 %v49
  %v120 = vunpack.c.l.b16 %v50
  %v121 = vunpack.c.l.b16 %v51
  %v122 = vunpack.c.h.b16 %v51
  %v123 = vunpack.c.l.b16 %v52
  %v124 = vunpack.c.l.b16 %v53
  %v125 = vunpack.c.h.b16 %v53
  %v126 = vunpack.c.l.b16 %v54
  %v127 = vunpack.c.l.b16 %v55
  %v128 = vunpack.c.h.b16 %v55
  %v129 = vunpack.c.l.b16 %v56
  %v130 = vunpack.c.l.b16 %v57
  %v131 = vunpack.c.h.b16 %v57
  %v132 = vunpack.c.l.b16 %v58
  %v133 = vunpack.c.l.b16 %v59
  %v134 = vunpack.c.h.b16 %v59
  %v135 = vunpack.c.l.b16 %v60
  %v136 = vunpack.c.l.b16 %v61
  %v137 = vunpack.c.h.b16 %v61
  %v138 = vunpack.c.l.b16 %v62
  %v139 = vunpack.c.l.b16 %v63
  %v140 = vunpack.c.h.b16 %v63
  %v141 = vunpack.c.l.b16 %v64
  %v142 = vunpack.c.l.b16 %v65
  %v143 = vunpack.c.h.b16 %v65
  %v144 = vunpack.c.l.b16 %v66
  %v145 = vunpack.c.l.b16 %v67
  %v146 = vunpack.c.h.b16 %v67
  %v147 = vunpack.c.l.b16 %v68
  %v148 = vunpack.c.l.b16 %v69
  %v149 = vunpack.c.h.b16 %v69
  %v150 = vunpack.c.l.b16 %v70
  %v151 = vpack.c.b16 %v106, %v103
  %v152 = vpack.c.b16 %v107, %v104
  %v153 = vpack.c.b16 %v108, %v105
  %v154 = vpack.c.b16 %v112, %v109
  %v155 = vpack.c.b16 %v113, %v110
  %v156 = vpack.c.b16 %v114, %v111
  %v157 = vpack.c.b16 %v118, %v115
  %v158 = vpack.c.b16 %v119, %v116
  %v159 = vpack.c.b16 %v120, %v117
  %v160 = vpack.c.b16 %v124, %v121
  %v161 = vpack.c.b16 %v125, %v122
  %v162 = vpack.c.b16 %v126, %v123
  %v163 = vpack.c.b16 %v130, %v127
  %v164 = vpack.c.b16 %v131, %v128
  %v165 = vpack.c.b16 %v132, %v129
  %v166 = vpack.c.b16 %v136, %v133
  %v167 = vpack.c.b16 %v137, %v134
  %v168 = vpack.c.b16 %v138, %v135
  %v169 = vpack.c.b16 %v142, %v139
  %v170 = vpack.c.b16 %v143, %v140
  %v171 = vpack.c.b16 %v144, %v141
  %v172 = vpack.c.b16 %v148, %v145
  %v173 = vpack.c.b16 %v149, %v146
  %v174 = vpack.c.b16 %v150, %v147
  %199 = vmatpush.bf16.msra.mxu0 %v172
  %200 = vmatpush.bf16.msra.mxu0 %v169
  %201 = vmatpush.bf16.msra.mxu0 %v166
  %202 = vmatpush.bf16.msra.mxu0 %v163
  %203 = vmatpush.bf16.msra.mxu0 %v160
  %204 = vmatpush.bf16.msra.mxu0 %v157
  %205 = vmatpush.bf16.msra.mxu0 %v154
  %206 = vmatpush.bf16.msra.mxu0 %v151
  %207 = vmatmul.bf16.gmra.mxu0 %v38
  %v208 = vpop.f32.mrf.mxu0
  %v209 = vadd.f32 0.0, %v208
  %v210 = vpop.f32.mrf.mxu0
  %v211 = vadd.f32 0.0, %v210
  %212 = vdwg.mxu0
  %213 = vmatpush.bf16.msra.mxu0 %v173
  %214 = vmatpush.bf16.msra.mxu0 %v170
  %215 = vmatpush.bf16.msra.mxu0 %v167
  %216 = vmatpush.bf16.msra.mxu0 %v164
  %217 = vmatpush.bf16.msra.mxu0 %v161
  %218 = vmatpush.bf16.msra.mxu0 %v158
  %219 = vmatpush.bf16.msra.mxu0 %v155
  %220 = vmatpush.bf16.msra.mxu0 %v152
  %221 = vmatmul.bf16.gmra.mxu0 %v38
  %v222 = vpop.f32.mrf.mxu0
  %v223 = vadd.f32 0.0, %v222
  %v224 = vpop.f32.mrf.mxu0
  %v225 = vadd.f32 0.0, %v224
  %226 = vdwg.mxu0
  %227 = vmatpush.bf16.msra.mxu0 %v174
  %228 = vmatpush.bf16.msra.mxu0 %v171
  %229 = vmatpush.bf16.msra.mxu0 %v168
  %230 = vmatpush.bf16.msra.mxu0 %v165
  %231 = vmatpush.bf16.msra.mxu0 %v162
  %232 = vmatpush.bf16.msra.mxu0 %v159
  %233 = vmatpush.bf16.msra.mxu0 %v156
  %234 = vmatpush.bf16.msra.mxu0 %v153
  %235 = vmatmul.bf16.gmra.mxu0 %v38
  %v236 = vpop.f32.mrf.mxu0
  %v237 = vadd.f32 0.0, %v236
  %v238 = vpop.f32.mrf.mxu0
  %v239 = vadd.f32 0.0, %v238
  %240 = vdwg.mxu0
  %v241 = vadd.f32 %v32, %v209
  %v242 = vadd.f32 %v35, %v211
  %v243 = vxor.u32 %v241, 2147483648
  %v244 = vxor.u32 %v242, 2147483648
  %v245 = vmul.f32 %v243, 1.442695
  %v246 = vpow.pop %v245
  %v247 = vmul.f32 %v244, 1.442695
  %v248 = vpow.pop %v247
  %v249 = vadd.f32 %v246, 1.0
  %v250 = vadd.f32 %v248, 1.0
  %v251 = vrcp.pop %v249
  %v252 = vmul.f32 %v249, %v251
  %v253 = vsub.f32 1.0, %v252
  %v254 = vmul.f32 %v251, %v253
  %v255 = vadd.f32 %v251, %v254
  %vm256 = vweird.f32 %v249
  %vm257 = vweird.f32 %v251
  %vm258 = vmor %vm256, %vm257
  %v259 = vsel %vm258, %v251, %v255
  %v260 = vand.u32 2147483647, %v249
  %vm261 = vcmp.eq.f32.partialorder %v260, 8.507059e+37
  %v262 = vand.u32 %v249, 2147483648
  %v263 = vor.u32 1.1754944e-38, %v262
  %v264 = vsel %vm261, %v263, %v259
  %v265 = vmul.f32 1.0, %v264
  %v266 = vrcp.pop %v250
  %v267 = vmul.f32 %v250, %v266
  %v268 = vsub.f32 1.0, %v267
  %v269 = vmul.f32 %v266, %v268
  %v270 = vadd.f32 %v266, %v269
  %vm271 = vweird.f32 %v250
  %vm272 = vweird.f32 %v266
  %vm273 = vmor %vm271, %vm272
  %v274 = vsel %vm273, %v266, %v270
  %v275 = vand.u32 2147483647, %v250
  %vm276 = vcmp.eq.f32.partialorder %v275, 8.507059e+37
  %v277 = vand.u32 %v250, 2147483648
  %v278 = vor.u32 1.1754944e-38, %v277
  %v279 = vsel %vm276, %v278, %v274
  %v280 = vmul.f32 1.0, %v279
  %v281 = vadd.f32 %v33, %v223
  %v282 = vadd.f32 %v36, %v225
  %v283 = vxor.u32 %v281, 2147483648
  %v284 = vxor.u32 %v282, 2147483648
  %v285 = vmul.f32 %v283, 1.442695
  %v286 = vpow.pop %v285
  %v287 = vmul.f32 %v284, 1.442695
  %v288 = vpow.pop %v287
  %v289 = vadd.f32 %v286, 1.0
  %v290 = vadd.f32 %v288, 1.0
  %v291 = vrcp.pop %v289
  %v292 = vmul.f32 %v289, %v291
  %v293 = vsub.f32 1.0, %v292
  %v294 = vmul.f32 %v291, %v293
  %v295 = vadd.f32 %v291, %v294
  %vm296 = vweird.f32 %v289
  %vm297 = vweird.f32 %v291
  %vm298 = vmor %vm296, %vm297
  %v299 = vsel %vm298, %v291, %v295
  %v300 = vand.u32 2147483647, %v289
  %vm301 = vcmp.eq.f32.partialorder %v300, 8.507059e+37
  %v302 = vand.u32 %v289, 2147483648
  %v303 = vor.u32 1.1754944e-38, %v302
  %v304 = vsel %vm301, %v303, %v299
  %v305 = vmul.f32 1.0, %v304
  %v306 = vrcp.pop %v290
  %v307 = vmul.f32 %v290, %v306
  %v308 = vsub.f32 1.0, %v307
  %v309 = vmul.f32 %v306, %v308
  %v310 = vadd.f32 %v306, %v309
  %vm311 = vweird.f32 %v290
  %vm312 = vweird.f32 %v306
  %vm313 = vmor %vm311, %vm312
  %v314 = vsel %vm313, %v306, %v310
  %v315 = vand.u32 2147483647, %v290
  %vm316 = vcmp.eq.f32.partialorder %v315, 8.507059e+37
  %v317 = vand.u32 %v290, 2147483648
  %v318 = vor.u32 1.1754944e-38, %v317
  %v319 = vsel %vm316, %v318, %v314
  %v320 = vmul.f32 1.0, %v319
  %v321 = vld [vmem:[%s3] sm:$0x1]
  %v323 = vperm.slane %v321, 0
  %v325 = vadd.f32 %v237, %v323
  %v326 = vadd.f32 %v239, %v323
  %v327 = vmul.f32 %v265, %v325
  %v328 = vmul.f32 %v280, %v326
  %v329 = vadd.f32 %v34, %v327
  %v330 = vadd.f32 %v37, %v328
  %v331 = vtanh.pop %v329
  %v332 = vtanh.pop %v330
  %v333 = vsub.f32 1.0, %v305
  %v334 = vsub.f32 1.0, %v320
  %v335 = vmul.f32 %v333, %v331
  %v336 = vmul.f32 %v334, %v332
  %v337 = vmul.f32 %v305, %v26
  %v338 = vmul.f32 %v320, %v27
  %v339 = vadd.f32 %v335, %v337
  %v340 = vadd.f32 %v336, %v338
  %v341 = vstv %s23
  %vm342 = vcmp.gt.s32.totalorder %v24, %v341
  %vm343 = vcmp.gt.s32.totalorder %v25, %v341
  %v344 = vsel %vm342, 1, 0
  %v345 = vsel %vm343, 1, 0
  %346 = vset.pattern.permute.xlu0 0
  %347 = vperm.xlu0 %346, %v344
  %v348 = vpop.permute.xlu0 %347
  %349 = vset.pattern.permute.xlu0 0
  %350 = vperm.xlu0 %349, %v345
  %v351 = vpop.permute.xlu0 %350
  %vm352 = vcmp.eq.s32.totalorder %v348, 1
  %vm353 = vcmp.eq.s32.totalorder %v351, 1
  %v354 = vsel %vm352, %v339, %v26
  %v355 = vsel %vm353, %v340, %v27
  %s356 = scalar_lea.vmem %s0, 24
  %v357 = vld [vmem:[%s356] sm:$0xff]
  %v358 = vld [vmem:[%s356 + $0x8] sm:$0xf]
  %v359 = vld [vmem:[%s356 + $0xc] sm:$0xff]
  %v360 = vld [vmem:[%s356 + $0x14] sm:$0xf]
  %v361 = vunpack.c.l.bf16 %v357
  %v362 = vunpack.c.h.bf16 %v357
  %v363 = vunpack.c.l.bf16 %v358
  %v364 = vunpack.c.l.bf16 %v359
  %v365 = vunpack.c.h.bf16 %v359
  %v366 = vunpack.c.l.bf16 %v360
  %v367 = vpack.c.bf16 %v355, %v354
  %368 = vmatpush.bf16.msra.mxu0 %v172
  %369 = vmatpush.bf16.msra.mxu0 %v169
  %370 = vmatpush.bf16.msra.mxu0 %v166
  %371 = vmatpush.bf16.msra.mxu0 %v163
  %372 = vmatpush.bf16.msra.mxu0 %v160
  %373 = vmatpush.bf16.msra.mxu0 %v157
  %374 = vmatpush.bf16.msra.mxu0 %v154
  %375 = vmatpush.bf16.msra.mxu0 %v151
  %376 = vmatmul.bf16.gmra.mxu0 %v367
  %v377 = vpop.f32.mrf.mxu0
  %v378 = vadd.f32 0.0, %v377
  %v379 = vpop.f32.mrf.mxu0
  %v380 = vadd.f32 0.0, %v379
  %381 = vdwg.mxu0
  %382 = vmatpush.bf16.msra.mxu0 %v173
  %383 = vmatpush.bf16.msra.mxu0 %v170
  %384 = vmatpush.bf16.msra.mxu0 %v167
  %385 = vmatpush.bf16.msra.mxu0 %v164
  %386 = vmatpush.bf16.msra.mxu0 %v161
  %387 = vmatpush.bf16.msra.mxu0 %v158
  %388 = vmatpush.bf16.msra.mxu0 %v155
  %389 = vmatpush.bf16.msra.mxu0 %v152
  %390 = vmatmul.bf16.gmra.mxu0 %v367
  %v391 = vpop.f32.mrf.mxu0
  %v392 = vadd.f32 0.0, %v391
  %v393 = vpop.f32.mrf.mxu0
  %v394 = vadd.f32 0.0, %v393
  %395 = vdwg.mxu0
  %396 = vmatpush.bf16.msra.mxu0 %v174
  %397 = vmatpush.bf16.msra.mxu0 %v171
  %398 = vmatpush.bf16.msra.mxu0 %v168
  %399 = vmatpush.bf16.msra.mxu0 %v165
  %400 = vmatpush.bf16.msra.mxu0 %v162
  %401 = vmatpush.bf16.msra.mxu0 %v159
  %402 = vmatpush.bf16.msra.mxu0 %v156
  %403 = vmatpush.bf16.msra.mxu0 %v153
  %404 = vmatmul.bf16.gmra.mxu0 %v367
  %v405 = vpop.f32.mrf.mxu0
  %v406 = vadd.f32 0.0, %v405
  %v407 = vpop.f32.mrf.mxu0
  %v408 = vadd.f32 0.0, %v407
  %409 = vdwg.mxu0
  %v410 = vadd.f32 %v361, %v378
  %v411 = vadd.f32 %v364, %v380
  %v412 = vxor.u32 %v410, 2147483648
  %v413 = vxor.u32 %v411, 2147483648
  %v414 = vmul.f32 %v412, 1.442695
  %v415 = vpow.pop %v414
  %v416 = vmul.f32 %v413, 1.442695
  %v417 = vpow.pop %v416
  %v418 = vadd.f32 %v415, 1.0
  %v419 = vadd.f32 %v417, 1.0
  %v420 = vrcp.pop %v418
  %v421 = vmul.f32 %v418, %v420
  %v422 = vsub.f32 1.0, %v421
  %v423 = vmul.f32 %v420, %v422
  %v424 = vadd.f32 %v420, %v423
  %vm425 = vweird.f32 %v418
  %vm426 = vweird.f32 %v420
  %vm427 = vmor %vm425, %vm426
  %v428 = vsel %vm427, %v420, %v424
  %v429 = vand.u32 2147483647, %v418
  %vm430 = vcmp.eq.f32.partialorder %v429, 8.507059e+37
  %v431 = vand.u32 %v418, 2147483648
  %v432 = vor.u32 1.1754944e-38, %v431
  %v433 = vsel %vm430, %v432, %v428
  %v434 = vmul.f32 1.0, %v433
  %v435 = vrcp.pop %v419
  %v436 = vmul.f32 %v419, %v435
  %v437 = vsub.f32 1.0, %v436
  %v438 = vmul.f32 %v435, %v437
  %v439 = vadd.f32 %v435, %v438
  %vm440 = vweird.f32 %v419
  %vm441 = vweird.f32 %v435
  %vm442 = vmor %vm440, %vm441
  %v443 = vsel %vm442, %v435, %v439
  %v444 = vand.u32 2147483647, %v419
  %vm445 = vcmp.eq.f32.partialorder %v444, 8.507059e+37
  %v446 = vand.u32 %v419, 2147483648
  %v447 = vor.u32 1.1754944e-38, %v446
  %v448 = vsel %vm445, %v447, %v443
  %v449 = vmul.f32 1.0, %v448
  %v450 = vadd.f32 %v362, %v392
  %v451 = vadd.f32 %v365, %v394
  %v452 = vxor.u32 %v450, 2147483648
  %v453 = vxor.u32 %v451, 2147483648
  %v454 = vmul.f32 %v452, 1.442695
  %v455 = vpow.pop %v454
  %v456 = vmul.f32 %v453, 1.442695
  %v457 = vpow.pop %v456
  %v458 = vadd.f32 %v455, 1.0
  %v459 = vadd.f32 %v457, 1.0
  %v460 = vrcp.pop %v458
  %v461 = vmul.f32 %v458, %v460
  %v462 = vsub.f32 1.0, %v461
  %v463 = vmul.f32 %v460, %v462
  %v464 = vadd.f32 %v460, %v463
  %vm465 = vweird.f32 %v458
  %vm466 = vweird.f32 %v460
  %vm467 = vmor %vm465, %vm466
  %v468 = vsel %vm467, %v460, %v464
  %v469 = vand.u32 2147483647, %v458
  %vm470 = vcmp.eq.f32.partialorder %v469, 8.507059e+37
  %v471 = vand.u32 %v458, 2147483648
  %v472 = vor.u32 1.1754944e-38, %v471
  %v473 = vsel %vm470, %v472, %v468
  %v474 = vmul.f32 1.0, %v473
  %v475 = vrcp.pop %v459
  %v476 = vmul.f32 %v459, %v475
  %v477 = vsub.f32 1.0, %v476
  %v478 = vmul.f32 %v475, %v477
  %v479 = vadd.f32 %v475, %v478
  %vm480 = vweird.f32 %v459
  %vm481 = vweird.f32 %v475
  %vm482 = vmor %vm480, %vm481
  %v483 = vsel %vm482, %v475, %v479
  %v484 = vand.u32 2147483647, %v459
  %vm485 = vcmp.eq.f32.partialorder %v484, 8.507059e+37
  %v486 = vand.u32 %v459, 2147483648
  %v487 = vor.u32 1.1754944e-38, %v486
  %v488 = vsel %vm485, %v487, %v483
  %v489 = vmul.f32 1.0, %v488
  %v490 = vadd.f32 %v406, %v323
  %v491 = vadd.f32 %v408, %v323
  %v492 = vmul.f32 %v434, %v490
  %v493 = vmul.f32 %v449, %v491
  %v494 = vadd.f32 %v363, %v492
  %v495 = vadd.f32 %v366, %v493
  %v496 = vtanh.pop %v494
  %v497 = vtanh.pop %v495
  %v498 = vsub.f32 1.0, %v474
  %v499 = vsub.f32 1.0, %v489
  %v500 = vmul.f32 %v498, %v496
  %v501 = vmul.f32 %v499, %v497
  %v502 = vmul.f32 %v474, %v354
  %v503 = vmul.f32 %v489, %v355
  %v504 = vadd.f32 %v500, %v502
  %v505 = vadd.f32 %v501, %v503
  %s506 = sadd.s32 %s23, 1
  %v507 = vstv %s506
  %vm508 = vcmp.gt.s32.totalorder %v24, %v507
  %vm509 = vcmp.gt.s32.totalorder %v25, %v507
  %v510 = vsel %vm508, 1, 0
  %v511 = vsel %vm509, 1, 0
  %512 = vset.pattern.permute.xlu0 0
  %513 = vperm.xlu0 %512, %v510
  %v514 = vpop.permute.xlu0 %513
  %515 = vset.pattern.permute.xlu0 0
  %516 = vperm.xlu0 %515, %v511
  %v517 = vpop.permute.xlu0 %516
  %vm518 = vcmp.eq.s32.totalorder %v514, 1
  %vm519 = vcmp.eq.s32.totalorder %v517, 1
  %v520 = vsel %vm518, %v504, %v354
  %v521 = vsel %vm519, %v505, %v355
  %s522 = scalar_lea.vmem %s0, 48
  %v523 = vld [vmem:[%s522] sm:$0xff]
  %v524 = vld [vmem:[%s522 + $0x8] sm:$0xf]
  %v525 = vld [vmem:[%s522 + $0xc] sm:$0xff]
  %v526 = vld [vmem:[%s522 + $0x14] sm:$0xf]
  %v527 = vunpack.c.l.bf16 %v523
  %v528 = vunpack.c.h.bf16 %v523
  %v529 = vunpack.c.l.bf16 %v524
  %v530 = vunpack.c.l.bf16 %v525
  %v531 = vunpack.c.h.bf16 %v525
  %v532 = vunpack.c.l.bf16 %v526
  %v533 = vpack.c.bf16 %v521, %v520
  %534 = vmatpush.bf16.msra.mxu0 %v172
  %535 = vmatpush.bf16.msra.mxu0 %v169
  %536 = vmatpush.bf16.msra.mxu0 %v166
  %537 = vmatpush.bf16.msra.mxu0 %v163
  %538 = vmatpush.bf16.msra.mxu0 %v160
  %539 = vmatpush.bf16.msra.mxu0 %v157
  %540 = vmatpush.bf16.msra.mxu0 %v154
  %541 = vmatpush.bf16.msra.mxu0 %v151
  %542 = vmatmul.bf16.gmra.mxu0 %v533
  %v543 = vpop.f32.mrf.mxu0
  %v544 = vadd.f32 0.0, %v543
  %v545 = vpop.f32.mrf.mxu0
  %v546 = vadd.f32 0.0, %v545
  %547 = vdwg.mxu0
  %548 = vmatpush.bf16.msra.mxu0 %v173
  %549 = vmatpush.bf16.msra.mxu0 %v170
  %550 = vmatpush.bf16.msra.mxu0 %v167
  %551 = vmatpush.bf16.msra.mxu0 %v164
  %552 = vmatpush.bf16.msra.mxu0 %v161
  %553 = vmatpush.bf16.msra.mxu0 %v158
  %554 = vmatpush.bf16.msra.mxu0 %v155
  %555 = vmatpush.bf16.msra.mxu0 %v152
  %556 = vmatmul.bf16.gmra.mxu0 %v533
  %v557 = vpop.f32.mrf.mxu0
  %v558 = vadd.f32 0.0, %v557
  %v559 = vpop.f32.mrf.mxu0
  %v560 = vadd.f32 0.0, %v559
  %561 = vdwg.mxu0
  %562 = vmatpush.bf16.msra.mxu0 %v174
  %563 = vmatpush.bf16.msra.mxu0 %v171
  %564 = vmatpush.bf16.msra.mxu0 %v168
  %565 = vmatpush.bf16.msra.mxu0 %v165
  %566 = vmatpush.bf16.msra.mxu0 %v162
  %567 = vmatpush.bf16.msra.mxu0 %v159
  %568 = vmatpush.bf16.msra.mxu0 %v156
  %569 = vmatpush.bf16.msra.mxu0 %v153
  %570 = vmatmul.bf16.gmra.mxu0 %v533
  %v571 = vpop.f32.mrf.mxu0
  %v572 = vadd.f32 0.0, %v571
  %v573 = vpop.f32.mrf.mxu0
  %v574 = vadd.f32 0.0, %v573
  %575 = vdwg.mxu0
  %v576 = vadd.f32 %v527, %v544
  %v577 = vadd.f32 %v530, %v546
  %v578 = vxor.u32 %v576, 2147483648
  %v579 = vxor.u32 %v577, 2147483648
  %v580 = vmul.f32 %v578, 1.442695
  %v581 = vpow.pop %v580
  %v582 = vmul.f32 %v579, 1.442695
  %v583 = vpow.pop %v582
  %v584 = vadd.f32 %v581, 1.0
  %v585 = vadd.f32 %v583, 1.0
  %v586 = vrcp.pop %v584
  %v587 = vmul.f32 %v584, %v586
  %v588 = vsub.f32 1.0, %v587
  %v589 = vmul.f32 %v586, %v588
  %v590 = vadd.f32 %v586, %v589
  %vm591 = vweird.f32 %v584
  %vm592 = vweird.f32 %v586
  %vm593 = vmor %vm591, %vm592
  %v594 = vsel %vm593, %v586, %v590
  %v595 = vand.u32 2147483647, %v584
  %vm596 = vcmp.eq.f32.partialorder %v595, 8.507059e+37
  %v597 = vand.u32 %v584, 2147483648
  %v598 = vor.u32 1.1754944e-38, %v597
  %v599 = vsel %vm596, %v598, %v594
  %v600 = vmul.f32 1.0, %v599
  %v601 = vrcp.pop %v585
  %v602 = vmul.f32 %v585, %v601
  %v603 = vsub.f32 1.0, %v602
  %v604 = vmul.f32 %v601, %v603
  %v605 = vadd.f32 %v601, %v604
  %vm606 = vweird.f32 %v585
  %vm607 = vweird.f32 %v601
  %vm608 = vmor %vm606, %vm607
  %v609 = vsel %vm608, %v601, %v605
  %v610 = vand.u32 2147483647, %v585
  %vm611 = vcmp.eq.f32.partialorder %v610, 8.507059e+37
  %v612 = vand.u32 %v585, 2147483648
  %v613 = vor.u32 1.1754944e-38, %v612
  %v614 = vsel %vm611, %v613, %v609
  %v615 = vmul.f32 1.0, %v614
  %v616 = vadd.f32 %v528, %v558
  %v617 = vadd.f32 %v531, %v560
  %v618 = vxor.u32 %v616, 2147483648
  %v619 = vxor.u32 %v617, 2147483648
  %v620 = vmul.f32 %v618, 1.442695
  %v621 = vpow.pop %v620
  %v622 = vmul.f32 %v619, 1.442695
  %v623 = vpow.pop %v622
  %v624 = vadd.f32 %v621, 1.0
  %v625 = vadd.f32 %v623, 1.0
  %v626 = vrcp.pop %v624
  %v627 = vmul.f32 %v624, %v626
  %v628 = vsub.f32 1.0, %v627
  %v629 = vmul.f32 %v626, %v628
  %v630 = vadd.f32 %v626, %v629
  %vm631 = vweird.f32 %v624
  %vm632 = vweird.f32 %v626
  %vm633 = vmor %vm631, %vm632
  %v634 = vsel %vm633, %v626, %v630
  %v635 = vand.u32 2147483647, %v624
  %vm636 = vcmp.eq.f32.partialorder %v635, 8.507059e+37
  %v637 = vand.u32 %v624, 2147483648
  %v638 = vor.u32 1.1754944e-38, %v637
  %v639 = vsel %vm636, %v638, %v634
  %v640 = vmul.f32 1.0, %v639
  %v641 = vrcp.pop %v625
  %v642 = vmul.f32 %v625, %v641
  %v643 = vsub.f32 1.0, %v642
  %v644 = vmul.f32 %v641, %v643
  %v645 = vadd.f32 %v641, %v644
  %vm646 = vweird.f32 %v625
  %vm647 = vweird.f32 %v641
  %vm648 = vmor %vm646, %vm647
  %v649 = vsel %vm648, %v641, %v645
  %v650 = vand.u32 2147483647, %v625
  %vm651 = vcmp.eq.f32.partialorder %v650, 8.507059e+37
  %v652 = vand.u32 %v625, 2147483648
  %v653 = vor.u32 1.1754944e-38, %v652
  %v654 = vsel %vm651, %v653, %v649
  %v655 = vmul.f32 1.0, %v654
  %v656 = vadd.f32 %v572, %v323
  %v657 = vadd.f32 %v574, %v323
  %v658 = vmul.f32 %v600, %v656
  %v659 = vmul.f32 %v615, %v657
  %v660 = vadd.f32 %v529, %v658
  %v661 = vadd.f32 %v532, %v659
  %v662 = vtanh.pop %v660
  %v663 = vtanh.pop %v661
  %v664 = vsub.f32 1.0, %v640
  %v665 = vsub.f32 1.0, %v655
  %v666 = vmul.f32 %v664, %v662
  %v667 = vmul.f32 %v665, %v663
  %v668 = vmul.f32 %v640, %v520
  %v669 = vmul.f32 %v655, %v521
  %v670 = vadd.f32 %v666, %v668
  %v671 = vadd.f32 %v667, %v669
  %s672 = sadd.s32 %s23, 2
  %v673 = vstv %s672
  %vm674 = vcmp.gt.s32.totalorder %v24, %v673
  %vm675 = vcmp.gt.s32.totalorder %v25, %v673
  %v676 = vsel %vm674, 1, 0
  %v677 = vsel %vm675, 1, 0
  %678 = vset.pattern.permute.xlu0 0
  %679 = vperm.xlu0 %678, %v676
  %v680 = vpop.permute.xlu0 %679
  %681 = vset.pattern.permute.xlu0 0
  %682 = vperm.xlu0 %681, %v677
  %v683 = vpop.permute.xlu0 %682
  %vm684 = vcmp.eq.s32.totalorder %v680, 1
  %vm685 = vcmp.eq.s32.totalorder %v683, 1
  %v686 = vsel %vm684, %v670, %v520
  %v687 = vsel %vm685, %v671, %v521
  %s688 = scalar_lea.vmem %s0, 72
  %v689 = vld [vmem:[%s688] sm:$0xff]
  %v690 = vld [vmem:[%s688 + $0x8] sm:$0xf]
  %v691 = vld [vmem:[%s688 + $0xc] sm:$0xff]
  %v692 = vld [vmem:[%s688 + $0x14] sm:$0xf]
  %v693 = vunpack.c.l.bf16 %v689
  %v694 = vunpack.c.h.bf16 %v689
  %v695 = vunpack.c.l.bf16 %v690
  %v696 = vunpack.c.l.bf16 %v691
  %v697 = vunpack.c.h.bf16 %v691
  %v698 = vunpack.c.l.bf16 %v692
  %v699 = vpack.c.bf16 %v687, %v686
  %700 = vmatpush.bf16.msra.mxu0 %v172
  %701 = vmatpush.bf16.msra.mxu0 %v169
  %702 = vmatpush.bf16.msra.mxu0 %v166
  %703 = vmatpush.bf16.msra.mxu0 %v163
  %704 = vmatpush.bf16.msra.mxu0 %v160
  %705 = vmatpush.bf16.msra.mxu0 %v157
  %706 = vmatpush.bf16.msra.mxu0 %v154
  %707 = vmatpush.bf16.msra.mxu0 %v151
  %708 = vmatmul.bf16.gmra.mxu0 %v699
  %v709 = vpop.f32.mrf.mxu0
  %v710 = vadd.f32 0.0, %v709
  %v711 = vpop.f32.mrf.mxu0
  %v712 = vadd.f32 0.0, %v711
  %713 = vdwg.mxu0
  %714 = vmatpush.bf16.msra.mxu0 %v173
  %715 = vmatpush.bf16.msra.mxu0 %v170
  %716 = vmatpush.bf16.msra.mxu0 %v167
  %717 = vmatpush.bf16.msra.mxu0 %v164
  %718 = vmatpush.bf16.msra.mxu0 %v161
  %719 = vmatpush.bf16.msra.mxu0 %v158
  %720 = vmatpush.bf16.msra.mxu0 %v155
  %721 = vmatpush.bf16.msra.mxu0 %v152
  %722 = vmatmul.bf16.gmra.mxu0 %v699
  %v723 = vpop.f32.mrf.mxu0
  %v724 = vadd.f32 0.0, %v723
  %v725 = vpop.f32.mrf.mxu0
  %v726 = vadd.f32 0.0, %v725
  %727 = vdwg.mxu0
  %728 = vmatpush.bf16.msra.mxu0 %v174
  %729 = vmatpush.bf16.msra.mxu0 %v171
  %730 = vmatpush.bf16.msra.mxu0 %v168
  %731 = vmatpush.bf16.msra.mxu0 %v165
  %732 = vmatpush.bf16.msra.mxu0 %v162
  %733 = vmatpush.bf16.msra.mxu0 %v159
  %734 = vmatpush.bf16.msra.mxu0 %v156
  %735 = vmatpush.bf16.msra.mxu0 %v153
  %736 = vmatmul.bf16.gmra.mxu0 %v699
  %v737 = vpop.f32.mrf.mxu0
  %v738 = vadd.f32 0.0, %v737
  %v739 = vpop.f32.mrf.mxu0
  %v740 = vadd.f32 0.0, %v739
  %741 = vdwg.mxu0
  %v742 = vadd.f32 %v693, %v710
  %v743 = vadd.f32 %v696, %v712
  %v744 = vxor.u32 %v742, 2147483648
  %v745 = vxor.u32 %v743, 2147483648
  %v746 = vmul.f32 %v744, 1.442695
  %v747 = vpow.pop %v746
  %v748 = vmul.f32 %v745, 1.442695
  %v749 = vpow.pop %v748
  %v750 = vadd.f32 %v747, 1.0
  %v751 = vadd.f32 %v749, 1.0
  %v752 = vrcp.pop %v750
  %v753 = vmul.f32 %v750, %v752
  %v754 = vsub.f32 1.0, %v753
  %v755 = vmul.f32 %v752, %v754
  %v756 = vadd.f32 %v752, %v755
  %vm757 = vweird.f32 %v750
  %vm758 = vweird.f32 %v752
  %vm759 = vmor %vm757, %vm758
  %v760 = vsel %vm759, %v752, %v756
  %v761 = vand.u32 2147483647, %v750
  %vm762 = vcmp.eq.f32.partialorder %v761, 8.507059e+37
  %v763 = vand.u32 %v750, 2147483648
  %v764 = vor.u32 1.1754944e-38, %v763
  %v765 = vsel %vm762, %v764, %v760
  %v766 = vmul.f32 1.0, %v765
  %v767 = vrcp.pop %v751
  %v768 = vmul.f32 %v751, %v767
  %v769 = vsub.f32 1.0, %v768
  %v770 = vmul.f32 %v767, %v769
  %v771 = vadd.f32 %v767, %v770
  %vm772 = vweird.f32 %v751
  %vm773 = vweird.f32 %v767
  %vm774 = vmor %vm772, %vm773
  %v775 = vsel %vm774, %v767, %v771
  %v776 = vand.u32 2147483647, %v751
  %vm777 = vcmp.eq.f32.partialorder %v776, 8.507059e+37
  %v778 = vand.u32 %v751, 2147483648
  %v779 = vor.u32 1.1754944e-38, %v778
  %v780 = vsel %vm777, %v779, %v775
  %v781 = vmul.f32 1.0, %v780
  %v782 = vadd.f32 %v694, %v724
  %v783 = vadd.f32 %v697, %v726
  %v784 = vxor.u32 %v782, 2147483648
  %v785 = vxor.u32 %v783, 2147483648
  %v786 = vmul.f32 %v784, 1.442695
  %v787 = vpow.pop %v786
  %v788 = vmul.f32 %v785, 1.442695
  %v789 = vpow.pop %v788
  %v790 = vadd.f32 %v787, 1.0
  %v791 = vadd.f32 %v789, 1.0
  %v792 = vrcp.pop %v790
  %v793 = vmul.f32 %v790, %v792
  %v794 = vsub.f32 1.0, %v793
  %v795 = vmul.f32 %v792, %v794
  %v796 = vadd.f32 %v792, %v795
  %vm797 = vweird.f32 %v790
  %vm798 = vweird.f32 %v792
  %vm799 = vmor %vm797, %vm798
  %v800 = vsel %vm799, %v792, %v796
  %v801 = vand.u32 2147483647, %v790
  %vm802 = vcmp.eq.f32.partialorder %v801, 8.507059e+37
  %v803 = vand.u32 %v790, 2147483648
  %v804 = vor.u32 1.1754944e-38, %v803
  %v805 = vsel %vm802, %v804, %v800
  %v806 = vmul.f32 1.0, %v805
  %v807 = vrcp.pop %v791
  %v808 = vmul.f32 %v791, %v807
  %v809 = vsub.f32 1.0, %v808
  %v810 = vmul.f32 %v807, %v809
  %v811 = vadd.f32 %v807, %v810
  %vm812 = vweird.f32 %v791
  %vm813 = vweird.f32 %v807
  %vm814 = vmor %vm812, %vm813
  %v815 = vsel %vm814, %v807, %v811
  %v816 = vand.u32 2147483647, %v791
  %vm817 = vcmp.eq.f32.partialorder %v816, 8.507059e+37
  %v818 = vand.u32 %v791, 2147483648
  %v819 = vor.u32 1.1754944e-38, %v818
  %v820 = vsel %vm817, %v819, %v815
  %v821 = vmul.f32 1.0, %v820
  %v822 = vadd.f32 %v738, %v323
  %v823 = vadd.f32 %v740, %v323
  %v824 = vmul.f32 %v766, %v822
  %v825 = vmul.f32 %v781, %v823
  %v826 = vadd.f32 %v695, %v824
  %v827 = vadd.f32 %v698, %v825
  %v828 = vtanh.pop %v826
  %v829 = vtanh.pop %v827
  %v830 = vsub.f32 1.0, %v806
  %v831 = vsub.f32 1.0, %v821
  %v832 = vmul.f32 %v830, %v828
  %v833 = vmul.f32 %v831, %v829
  %v834 = vmul.f32 %v806, %v686
  %v835 = vmul.f32 %v821, %v687
  %v836 = vadd.f32 %v832, %v834
  %v837 = vadd.f32 %v833, %v835
  %s838 = sadd.s32 %s23, 3
  %v839 = vstv %s838
  %vm840 = vcmp.gt.s32.totalorder %v24, %v839
  %vm841 = vcmp.gt.s32.totalorder %v25, %v839
  %v842 = vsel %vm840, 1, 0
  %v843 = vsel %vm841, 1, 0
  %844 = vset.pattern.permute.xlu0 0
  %845 = vperm.xlu0 %844, %v842
  %v846 = vpop.permute.xlu0 %845
  %847 = vset.pattern.permute.xlu0 0
  %848 = vperm.xlu0 %847, %v843
  %v849 = vpop.permute.xlu0 %848
  %vm850 = vcmp.eq.s32.totalorder %v846, 1
  %vm851 = vcmp.eq.s32.totalorder %v849, 1
  %v852 = vsel %vm850, %v836, %v686
  %v853 = vsel %vm851, %v837, %v687
  %s854 = scalar_lea.vmem %s0, 96
  %v855 = vld [vmem:[%s854] sm:$0xff]
  %v856 = vld [vmem:[%s854 + $0x8] sm:$0xf]
  %v857 = vld [vmem:[%s854 + $0xc] sm:$0xff]
  %v858 = vld [vmem:[%s854 + $0x14] sm:$0xf]
  %v859 = vunpack.c.l.bf16 %v855
  %v860 = vunpack.c.h.bf16 %v855
  %v861 = vunpack.c.l.bf16 %v856
  %v862 = vunpack.c.l.bf16 %v857
  %v863 = vunpack.c.h.bf16 %v857
  %v864 = vunpack.c.l.bf16 %v858
  %v865 = vpack.c.bf16 %v853, %v852
  %866 = vmatpush.bf16.msra.mxu0 %v172
  %867 = vmatpush.bf16.msra.mxu0 %v169
  %868 = vmatpush.bf16.msra.mxu0 %v166
  %869 = vmatpush.bf16.msra.mxu0 %v163
  %870 = vmatpush.bf16.msra.mxu0 %v160
  %871 = vmatpush.bf16.msra.mxu0 %v157
  %872 = vmatpush.bf16.msra.mxu0 %v154
  %873 = vmatpush.bf16.msra.mxu0 %v151
  %874 = vmatmul.bf16.gmra.mxu0 %v865
  %v875 = vpop.f32.mrf.mxu0
  %v876 = vadd.f32 0.0, %v875
  %v877 = vpop.f32.mrf.mxu0
  %v878 = vadd.f32 0.0, %v877
  %879 = vdwg.mxu0
  %880 = vmatpush.bf16.msra.mxu0 %v173
  %881 = vmatpush.bf16.msra.mxu0 %v170
  %882 = vmatpush.bf16.msra.mxu0 %v167
  %883 = vmatpush.bf16.msra.mxu0 %v164
  %884 = vmatpush.bf16.msra.mxu0 %v161
  %885 = vmatpush.bf16.msra.mxu0 %v158
  %886 = vmatpush.bf16.msra.mxu0 %v155
  %887 = vmatpush.bf16.msra.mxu0 %v152
  %888 = vmatmul.bf16.gmra.mxu0 %v865
  %v889 = vpop.f32.mrf.mxu0
  %v890 = vadd.f32 0.0, %v889
  %v891 = vpop.f32.mrf.mxu0
  %v892 = vadd.f32 0.0, %v891
  %893 = vdwg.mxu0
  %894 = vmatpush.bf16.msra.mxu0 %v174
  %895 = vmatpush.bf16.msra.mxu0 %v171
  %896 = vmatpush.bf16.msra.mxu0 %v168
  %897 = vmatpush.bf16.msra.mxu0 %v165
  %898 = vmatpush.bf16.msra.mxu0 %v162
  %899 = vmatpush.bf16.msra.mxu0 %v159
  %900 = vmatpush.bf16.msra.mxu0 %v156
  %901 = vmatpush.bf16.msra.mxu0 %v153
  %902 = vmatmul.bf16.gmra.mxu0 %v865
  %v903 = vpop.f32.mrf.mxu0
  %v904 = vadd.f32 0.0, %v903
  %v905 = vpop.f32.mrf.mxu0
  %v906 = vadd.f32 0.0, %v905
  %907 = vdwg.mxu0
  %v908 = vadd.f32 %v859, %v876
  %v909 = vadd.f32 %v862, %v878
  %v910 = vxor.u32 %v908, 2147483648
  %v911 = vxor.u32 %v909, 2147483648
  %v912 = vmul.f32 %v910, 1.442695
  %v913 = vpow.pop %v912
  %v914 = vmul.f32 %v911, 1.442695
  %v915 = vpow.pop %v914
  %v916 = vadd.f32 %v913, 1.0
  %v917 = vadd.f32 %v915, 1.0
  %v918 = vrcp.pop %v916
  %v919 = vmul.f32 %v916, %v918
  %v920 = vsub.f32 1.0, %v919
  %v921 = vmul.f32 %v918, %v920
  %v922 = vadd.f32 %v918, %v921
  %vm923 = vweird.f32 %v916
  %vm924 = vweird.f32 %v918
  %vm925 = vmor %vm923, %vm924
  %v926 = vsel %vm925, %v918, %v922
  %v927 = vand.u32 2147483647, %v916
  %vm928 = vcmp.eq.f32.partialorder %v927, 8.507059e+37
  %v929 = vand.u32 %v916, 2147483648
  %v930 = vor.u32 1.1754944e-38, %v929
  %v931 = vsel %vm928, %v930, %v926
  %v932 = vmul.f32 1.0, %v931
  %v933 = vrcp.pop %v917
  %v934 = vmul.f32 %v917, %v933
  %v935 = vsub.f32 1.0, %v934
  %v936 = vmul.f32 %v933, %v935
  %v937 = vadd.f32 %v933, %v936
  %vm938 = vweird.f32 %v917
  %vm939 = vweird.f32 %v933
  %vm940 = vmor %vm938, %vm939
  %v941 = vsel %vm940, %v933, %v937
  %v942 = vand.u32 2147483647, %v917
  %vm943 = vcmp.eq.f32.partialorder %v942, 8.507059e+37
  %v944 = vand.u32 %v917, 2147483648
  %v945 = vor.u32 1.1754944e-38, %v944
  %v946 = vsel %vm943, %v945, %v941
  %v947 = vmul.f32 1.0, %v946
  %v948 = vadd.f32 %v860, %v890
  %v949 = vadd.f32 %v863, %v892
  %v950 = vxor.u32 %v948, 2147483648
  %v951 = vxor.u32 %v949, 2147483648
  %v952 = vmul.f32 %v950, 1.442695
  %v953 = vpow.pop %v952
  %v954 = vmul.f32 %v951, 1.442695
  %v955 = vpow.pop %v954
  %v956 = vadd.f32 %v953, 1.0
  %v957 = vadd.f32 %v955, 1.0
  %v958 = vrcp.pop %v956
  %v959 = vmul.f32 %v956, %v958
  %v960 = vsub.f32 1.0, %v959
  %v961 = vmul.f32 %v958, %v960
  %v962 = vadd.f32 %v958, %v961
  %vm963 = vweird.f32 %v956
  %vm964 = vweird.f32 %v958
  %vm965 = vmor %vm963, %vm964
  %v966 = vsel %vm965, %v958, %v962
  %v967 = vand.u32 2147483647, %v956
  %vm968 = vcmp.eq.f32.partialorder %v967, 8.507059e+37
  %v969 = vand.u32 %v956, 2147483648
  %v970 = vor.u32 1.1754944e-38, %v969
  %v971 = vsel %vm968, %v970, %v966
  %v972 = vmul.f32 1.0, %v971
  %v973 = vrcp.pop %v957
  %v974 = vmul.f32 %v957, %v973
  %v975 = vsub.f32 1.0, %v974
  %v976 = vmul.f32 %v973, %v975
  %v977 = vadd.f32 %v973, %v976
  %vm978 = vweird.f32 %v957
  %vm979 = vweird.f32 %v973
  %vm980 = vmor %vm978, %vm979
  %v981 = vsel %vm980, %v973, %v977
  %v982 = vand.u32 2147483647, %v957
  %vm983 = vcmp.eq.f32.partialorder %v982, 8.507059e+37
  %v984 = vand.u32 %v957, 2147483648
  %v985 = vor.u32 1.1754944e-38, %v984
  %v986 = vsel %vm983, %v985, %v981
  %v987 = vmul.f32 1.0, %v986
  %v988 = vadd.f32 %v904, %v323
  %v989 = vadd.f32 %v906, %v323
  %v990 = vmul.f32 %v932, %v988
  %v991 = vmul.f32 %v947, %v989
  %v992 = vadd.f32 %v861, %v990
  %v993 = vadd.f32 %v864, %v991
  %v994 = vtanh.pop %v992
  %v995 = vtanh.pop %v993
  %v996 = vsub.f32 1.0, %v972
  %v997 = vsub.f32 1.0, %v987
  %v998 = vmul.f32 %v996, %v994
  %v999 = vmul.f32 %v997, %v995
  %v1000 = vmul.f32 %v972, %v852
  %v1001 = vmul.f32 %v987, %v853
  %v1002 = vadd.f32 %v998, %v1000
  %v1003 = vadd.f32 %v999, %v1001
  %s1004 = sadd.s32 %s23, 4
  %v1005 = vstv %s1004
  %vm1006 = vcmp.gt.s32.totalorder %v24, %v1005
  %vm1007 = vcmp.gt.s32.totalorder %v25, %v1005
  %v1008 = vsel %vm1006, 1, 0
  %v1009 = vsel %vm1007, 1, 0
  %1010 = vset.pattern.permute.xlu0 0
  %1011 = vperm.xlu0 %1010, %v1008
  %v1012 = vpop.permute.xlu0 %1011
  %1013 = vset.pattern.permute.xlu0 0
  %1014 = vperm.xlu0 %1013, %v1009
  %v1015 = vpop.permute.xlu0 %1014
  %vm1016 = vcmp.eq.s32.totalorder %v1012, 1
  %vm1017 = vcmp.eq.s32.totalorder %v1015, 1
  %v1018 = vsel %vm1016, %v1002, %v852
  %v1019 = vsel %vm1017, %v1003, %v853
  %s1020 = scalar_lea.vmem %s0, 120
  %v1021 = vld [vmem:[%s1020] sm:$0xff]
  %v1022 = vld [vmem:[%s1020 + $0x8] sm:$0xf]
  %v1023 = vld [vmem:[%s1020 + $0xc] sm:$0xff]
  %v1024 = vld [vmem:[%s1020 + $0x14] sm:$0xf]
  %v1025 = vunpack.c.l.bf16 %v1021
  %v1026 = vunpack.c.h.bf16 %v1021
  %v1027 = vunpack.c.l.bf16 %v1022
  %v1028 = vunpack.c.l.bf16 %v1023
  %v1029 = vunpack.c.h.bf16 %v1023
  %v1030 = vunpack.c.l.bf16 %v1024
  %v1031 = vpack.c.bf16 %v1019, %v1018
  %1032 = vmatpush.bf16.msra.mxu0 %v172
  %1033 = vmatpush.bf16.msra.mxu0 %v169
  %1034 = vmatpush.bf16.msra.mxu0 %v166
  %1035 = vmatpush.bf16.msra.mxu0 %v163
  %1036 = vmatpush.bf16.msra.mxu0 %v160
  %1037 = vmatpush.bf16.msra.mxu0 %v157
  %1038 = vmatpush.bf16.msra.mxu0 %v154
  %1039 = vmatpush.bf16.msra.mxu0 %v151
  %1040 = vmatmul.bf16.gmra.mxu0 %v1031
  %v1041 = vpop.f32.mrf.mxu0
  %v1042 = vadd.f32 0.0, %v1041
  %v1043 = vpop.f32.mrf.mxu0
  %v1044 = vadd.f32 0.0, %v1043
  %1045 = vdwg.mxu0
  %1046 = vmatpush.bf16.msra.mxu0 %v173
  %1047 = vmatpush.bf16.msra.mxu0 %v170
  %1048 = vmatpush.bf16.msra.mxu0 %v167
  %1049 = vmatpush.bf16.msra.mxu0 %v164
  %1050 = vmatpush.bf16.msra.mxu0 %v161
  %1051 = vmatpush.bf16.msra.mxu0 %v158
  %1052 = vmatpush.bf16.msra.mxu0 %v155
  %1053 = vmatpush.bf16.msra.mxu0 %v152
  %1054 = vmatmul.bf16.gmra.mxu0 %v1031
  %v1055 = vpop.f32.mrf.mxu0
  %v1056 = vadd.f32 0.0, %v1055
  %v1057 = vpop.f32.mrf.mxu0
  %v1058 = vadd.f32 0.0, %v1057
  %1059 = vdwg.mxu0
  %1060 = vmatpush.bf16.msra.mxu0 %v174
  %1061 = vmatpush.bf16.msra.mxu0 %v171
  %1062 = vmatpush.bf16.msra.mxu0 %v168
  %1063 = vmatpush.bf16.msra.mxu0 %v165
  %1064 = vmatpush.bf16.msra.mxu0 %v162
  %1065 = vmatpush.bf16.msra.mxu0 %v159
  %1066 = vmatpush.bf16.msra.mxu0 %v156
  %1067 = vmatpush.bf16.msra.mxu0 %v153
  %1068 = vmatmul.bf16.gmra.mxu0 %v1031
  %v1069 = vpop.f32.mrf.mxu0
  %v1070 = vadd.f32 0.0, %v1069
  %v1071 = vpop.f32.mrf.mxu0
  %v1072 = vadd.f32 0.0, %v1071
  %1073 = vdwg.mxu0
  %v1074 = vadd.f32 %v1025, %v1042
  %v1075 = vadd.f32 %v1028, %v1044
  %v1076 = vxor.u32 %v1074, 2147483648
  %v1077 = vxor.u32 %v1075, 2147483648
  %v1078 = vmul.f32 %v1076, 1.442695
  %v1079 = vpow.pop %v1078
  %v1080 = vmul.f32 %v1077, 1.442695
  %v1081 = vpow.pop %v1080
  %v1082 = vadd.f32 %v1079, 1.0
  %v1083 = vadd.f32 %v1081, 1.0
  %v1084 = vrcp.pop %v1082
  %v1085 = vmul.f32 %v1082, %v1084
  %v1086 = vsub.f32 1.0, %v1085
  %v1087 = vmul.f32 %v1084, %v1086
  %v1088 = vadd.f32 %v1084, %v1087
  %vm1089 = vweird.f32 %v1082
  %vm1090 = vweird.f32 %v1084
  %vm1091 = vmor %vm1089, %vm1090
  %v1092 = vsel %vm1091, %v1084, %v1088
  %v1093 = vand.u32 2147483647, %v1082
  %vm1094 = vcmp.eq.f32.partialorder %v1093, 8.507059e+37
  %v1095 = vand.u32 %v1082, 2147483648
  %v1096 = vor.u32 1.1754944e-38, %v1095
  %v1097 = vsel %vm1094, %v1096, %v1092
  %v1098 = vmul.f32 1.0, %v1097
  %v1099 = vrcp.pop %v1083
  %v1100 = vmul.f32 %v1083, %v1099
  %v1101 = vsub.f32 1.0, %v1100
  %v1102 = vmul.f32 %v1099, %v1101
  %v1103 = vadd.f32 %v1099, %v1102
  %vm1104 = vweird.f32 %v1083
  %vm1105 = vweird.f32 %v1099
  %vm1106 = vmor %vm1104, %vm1105
  %v1107 = vsel %vm1106, %v1099, %v1103
  %v1108 = vand.u32 2147483647, %v1083
  %vm1109 = vcmp.eq.f32.partialorder %v1108, 8.507059e+37
  %v1110 = vand.u32 %v1083, 2147483648
  %v1111 = vor.u32 1.1754944e-38, %v1110
  %v1112 = vsel %vm1109, %v1111, %v1107
  %v1113 = vmul.f32 1.0, %v1112
  %v1114 = vadd.f32 %v1026, %v1056
  %v1115 = vadd.f32 %v1029, %v1058
  %v1116 = vxor.u32 %v1114, 2147483648
  %v1117 = vxor.u32 %v1115, 2147483648
  %v1118 = vmul.f32 %v1116, 1.442695
  %v1119 = vpow.pop %v1118
  %v1120 = vmul.f32 %v1117, 1.442695
  %v1121 = vpow.pop %v1120
  %v1122 = vadd.f32 %v1119, 1.0
  %v1123 = vadd.f32 %v1121, 1.0
  %v1124 = vrcp.pop %v1122
  %v1125 = vmul.f32 %v1122, %v1124
  %v1126 = vsub.f32 1.0, %v1125
  %v1127 = vmul.f32 %v1124, %v1126
  %v1128 = vadd.f32 %v1124, %v1127
  %vm1129 = vweird.f32 %v1122
  %vm1130 = vweird.f32 %v1124
  %vm1131 = vmor %vm1129, %vm1130
  %v1132 = vsel %vm1131, %v1124, %v1128
  %v1133 = vand.u32 2147483647, %v1122
  %vm1134 = vcmp.eq.f32.partialorder %v1133, 8.507059e+37
  %v1135 = vand.u32 %v1122, 2147483648
  %v1136 = vor.u32 1.1754944e-38, %v1135
  %v1137 = vsel %vm1134, %v1136, %v1132
  %v1138 = vmul.f32 1.0, %v1137
  %v1139 = vrcp.pop %v1123
  %v1140 = vmul.f32 %v1123, %v1139
  %v1141 = vsub.f32 1.0, %v1140
  %v1142 = vmul.f32 %v1139, %v1141
  %v1143 = vadd.f32 %v1139, %v1142
  %vm1144 = vweird.f32 %v1123
  %vm1145 = vweird.f32 %v1139
  %vm1146 = vmor %vm1144, %vm1145
  %v1147 = vsel %vm1146, %v1139, %v1143
  %v1148 = vand.u32 2147483647, %v1123
  %vm1149 = vcmp.eq.f32.partialorder %v1148, 8.507059e+37
  %v1150 = vand.u32 %v1123, 2147483648
  %v1151 = vor.u32 1.1754944e-38, %v1150
  %v1152 = vsel %vm1149, %v1151, %v1147
  %v1153 = vmul.f32 1.0, %v1152
  %v1154 = vadd.f32 %v1070, %v323
  %v1155 = vadd.f32 %v1072, %v323
  %v1156 = vmul.f32 %v1098, %v1154
  %v1157 = vmul.f32 %v1113, %v1155
  %v1158 = vadd.f32 %v1027, %v1156
  %v1159 = vadd.f32 %v1030, %v1157
  %v1160 = vtanh.pop %v1158
  %v1161 = vtanh.pop %v1159
  %v1162 = vsub.f32 1.0, %v1138
  %v1163 = vsub.f32 1.0, %v1153
  %v1164 = vmul.f32 %v1162, %v1160
  %v1165 = vmul.f32 %v1163, %v1161
  %v1166 = vmul.f32 %v1138, %v1018
  %v1167 = vmul.f32 %v1153, %v1019
  %v1168 = vadd.f32 %v1164, %v1166
  %v1169 = vadd.f32 %v1165, %v1167
  %s1170 = sadd.s32 %s23, 5
  %v1171 = vstv %s1170
  %vm1172 = vcmp.gt.s32.totalorder %v24, %v1171
  %vm1173 = vcmp.gt.s32.totalorder %v25, %v1171
  %v1174 = vsel %vm1172, 1, 0
  %v1175 = vsel %vm1173, 1, 0
  %1176 = vset.pattern.permute.xlu0 0
  %1177 = vperm.xlu0 %1176, %v1174
  %v1178 = vpop.permute.xlu0 %1177
  %1179 = vset.pattern.permute.xlu0 0
  %1180 = vperm.xlu0 %1179, %v1175
  %v1181 = vpop.permute.xlu0 %1180
  %vm1182 = vcmp.eq.s32.totalorder %v1178, 1
  %vm1183 = vcmp.eq.s32.totalorder %v1181, 1
  %v1184 = vsel %vm1182, %v1168, %v1018
  %v1185 = vsel %vm1183, %v1169, %v1019
  %s1186 = scalar_lea.vmem %s0, 144
  %v1187 = vld [vmem:[%s1186] sm:$0xff]
  %v1188 = vld [vmem:[%s1186 + $0x8] sm:$0xf]
  %v1189 = vld [vmem:[%s1186 + $0xc] sm:$0xff]
  %v1190 = vld [vmem:[%s1186 + $0x14] sm:$0xf]
  %v1191 = vunpack.c.l.bf16 %v1187
  %v1192 = vunpack.c.h.bf16 %v1187
  %v1193 = vunpack.c.l.bf16 %v1188
  %v1194 = vunpack.c.l.bf16 %v1189
  %v1195 = vunpack.c.h.bf16 %v1189
  %v1196 = vunpack.c.l.bf16 %v1190
  %v1197 = vpack.c.bf16 %v1185, %v1184
  %1198 = vmatpush.bf16.msra.mxu0 %v172
  %1199 = vmatpush.bf16.msra.mxu0 %v169
  %1200 = vmatpush.bf16.msra.mxu0 %v166
  %1201 = vmatpush.bf16.msra.mxu0 %v163
  %1202 = vmatpush.bf16.msra.mxu0 %v160
  %1203 = vmatpush.bf16.msra.mxu0 %v157
  %1204 = vmatpush.bf16.msra.mxu0 %v154
  %1205 = vmatpush.bf16.msra.mxu0 %v151
  %1206 = vmatmul.bf16.gmra.mxu0 %v1197
  %v1207 = vpop.f32.mrf.mxu0
  %v1208 = vadd.f32 0.0, %v1207
  %v1209 = vpop.f32.mrf.mxu0
  %v1210 = vadd.f32 0.0, %v1209
  %1211 = vdwg.mxu0
  %1212 = vmatpush.bf16.msra.mxu0 %v173
  %1213 = vmatpush.bf16.msra.mxu0 %v170
  %1214 = vmatpush.bf16.msra.mxu0 %v167
  %1215 = vmatpush.bf16.msra.mxu0 %v164
  %1216 = vmatpush.bf16.msra.mxu0 %v161
  %1217 = vmatpush.bf16.msra.mxu0 %v158
  %1218 = vmatpush.bf16.msra.mxu0 %v155
  %1219 = vmatpush.bf16.msra.mxu0 %v152
  %1220 = vmatmul.bf16.gmra.mxu0 %v1197
  %v1221 = vpop.f32.mrf.mxu0
  %v1222 = vadd.f32 0.0, %v1221
  %v1223 = vpop.f32.mrf.mxu0
  %v1224 = vadd.f32 0.0, %v1223
  %1225 = vdwg.mxu0
  %1226 = vmatpush.bf16.msra.mxu0 %v174
  %1227 = vmatpush.bf16.msra.mxu0 %v171
  %1228 = vmatpush.bf16.msra.mxu0 %v168
  %1229 = vmatpush.bf16.msra.mxu0 %v165
  %1230 = vmatpush.bf16.msra.mxu0 %v162
  %1231 = vmatpush.bf16.msra.mxu0 %v159
  %1232 = vmatpush.bf16.msra.mxu0 %v156
  %1233 = vmatpush.bf16.msra.mxu0 %v153
  %1234 = vmatmul.bf16.gmra.mxu0 %v1197
  %v1235 = vpop.f32.mrf.mxu0
  %v1236 = vadd.f32 0.0, %v1235
  %v1237 = vpop.f32.mrf.mxu0
  %v1238 = vadd.f32 0.0, %v1237
  %1239 = vdwg.mxu0
  %v1240 = vadd.f32 %v1191, %v1208
  %v1241 = vadd.f32 %v1194, %v1210
  %v1242 = vxor.u32 %v1240, 2147483648
  %v1243 = vxor.u32 %v1241, 2147483648
  %v1244 = vmul.f32 %v1242, 1.442695
  %v1245 = vpow.pop %v1244
  %v1246 = vmul.f32 %v1243, 1.442695
  %v1247 = vpow.pop %v1246
  %v1248 = vadd.f32 %v1245, 1.0
  %v1249 = vadd.f32 %v1247, 1.0
  %v1250 = vrcp.pop %v1248
  %v1251 = vmul.f32 %v1248, %v1250
  %v1252 = vsub.f32 1.0, %v1251
  %v1253 = vmul.f32 %v1250, %v1252
  %v1254 = vadd.f32 %v1250, %v1253
  %vm1255 = vweird.f32 %v1248
  %vm1256 = vweird.f32 %v1250
  %vm1257 = vmor %vm1255, %vm1256
  %v1258 = vsel %vm1257, %v1250, %v1254
  %v1259 = vand.u32 2147483647, %v1248
  %vm1260 = vcmp.eq.f32.partialorder %v1259, 8.507059e+37
  %v1261 = vand.u32 %v1248, 2147483648
  %v1262 = vor.u32 1.1754944e-38, %v1261
  %v1263 = vsel %vm1260, %v1262, %v1258
  %v1264 = vmul.f32 1.0, %v1263
  %v1265 = vrcp.pop %v1249
  %v1266 = vmul.f32 %v1249, %v1265
  %v1267 = vsub.f32 1.0, %v1266
  %v1268 = vmul.f32 %v1265, %v1267
  %v1269 = vadd.f32 %v1265, %v1268
  %vm1270 = vweird.f32 %v1249
  %vm1271 = vweird.f32 %v1265
  %vm1272 = vmor %vm1270, %vm1271
  %v1273 = vsel %vm1272, %v1265, %v1269
  %v1274 = vand.u32 2147483647, %v1249
  %vm1275 = vcmp.eq.f32.partialorder %v1274, 8.507059e+37
  %v1276 = vand.u32 %v1249, 2147483648
  %v1277 = vor.u32 1.1754944e-38, %v1276
  %v1278 = vsel %vm1275, %v1277, %v1273
  %v1279 = vmul.f32 1.0, %v1278
  %v1280 = vadd.f32 %v1192, %v1222
  %v1281 = vadd.f32 %v1195, %v1224
  %v1282 = vxor.u32 %v1280, 2147483648
  %v1283 = vxor.u32 %v1281, 2147483648
  %v1284 = vmul.f32 %v1282, 1.442695
  %v1285 = vpow.pop %v1284
  %v1286 = vmul.f32 %v1283, 1.442695
  %v1287 = vpow.pop %v1286
  %v1288 = vadd.f32 %v1285, 1.0
  %v1289 = vadd.f32 %v1287, 1.0
  %v1290 = vrcp.pop %v1288
  %v1291 = vmul.f32 %v1288, %v1290
  %v1292 = vsub.f32 1.0, %v1291
  %v1293 = vmul.f32 %v1290, %v1292
  %v1294 = vadd.f32 %v1290, %v1293
  %vm1295 = vweird.f32 %v1288
  %vm1296 = vweird.f32 %v1290
  %vm1297 = vmor %vm1295, %vm1296
  %v1298 = vsel %vm1297, %v1290, %v1294
  %v1299 = vand.u32 2147483647, %v1288
  %vm1300 = vcmp.eq.f32.partialorder %v1299, 8.507059e+37
  %v1301 = vand.u32 %v1288, 2147483648
  %v1302 = vor.u32 1.1754944e-38, %v1301
  %v1303 = vsel %vm1300, %v1302, %v1298
  %v1304 = vmul.f32 1.0, %v1303
  %v1305 = vrcp.pop %v1289
  %v1306 = vmul.f32 %v1289, %v1305
  %v1307 = vsub.f32 1.0, %v1306
  %v1308 = vmul.f32 %v1305, %v1307
  %v1309 = vadd.f32 %v1305, %v1308
  %vm1310 = vweird.f32 %v1289
  %vm1311 = vweird.f32 %v1305
  %vm1312 = vmor %vm1310, %vm1311
  %v1313 = vsel %vm1312, %v1305, %v1309
  %v1314 = vand.u32 2147483647, %v1289
  %vm1315 = vcmp.eq.f32.partialorder %v1314, 8.507059e+37
  %v1316 = vand.u32 %v1289, 2147483648
  %v1317 = vor.u32 1.1754944e-38, %v1316
  %v1318 = vsel %vm1315, %v1317, %v1313
  %v1319 = vmul.f32 1.0, %v1318
  %v1320 = vadd.f32 %v1236, %v323
  %v1321 = vadd.f32 %v1238, %v323
  %v1322 = vmul.f32 %v1264, %v1320
  %v1323 = vmul.f32 %v1279, %v1321
  %v1324 = vadd.f32 %v1193, %v1322
  %v1325 = vadd.f32 %v1196, %v1323
  %v1326 = vtanh.pop %v1324
  %v1327 = vtanh.pop %v1325
  %v1328 = vsub.f32 1.0, %v1304
  %v1329 = vsub.f32 1.0, %v1319
  %v1330 = vmul.f32 %v1328, %v1326
  %v1331 = vmul.f32 %v1329, %v1327
  %v1332 = vmul.f32 %v1304, %v1184
  %v1333 = vmul.f32 %v1319, %v1185
  %v1334 = vadd.f32 %v1330, %v1332
  %v1335 = vadd.f32 %v1331, %v1333
  %s1336 = sadd.s32 %s23, 6
  %v1337 = vstv %s1336
  %vm1338 = vcmp.gt.s32.totalorder %v24, %v1337
  %vm1339 = vcmp.gt.s32.totalorder %v25, %v1337
  %v1340 = vsel %vm1338, 1, 0
  %v1341 = vsel %vm1339, 1, 0
  %1342 = vset.pattern.permute.xlu0 0
  %1343 = vperm.xlu0 %1342, %v1340
  %v1344 = vpop.permute.xlu0 %1343
  %1345 = vset.pattern.permute.xlu0 0
  %1346 = vperm.xlu0 %1345, %v1341
  %v1347 = vpop.permute.xlu0 %1346
  %vm1348 = vcmp.eq.s32.totalorder %v1344, 1
  %vm1349 = vcmp.eq.s32.totalorder %v1347, 1
  %v1350 = vsel %vm1348, %v1334, %v1184
  %v1351 = vsel %vm1349, %v1335, %v1185
  %s1352 = scalar_lea.vmem %s0, 168
  %v1353 = vld [vmem:[%s1352] sm:$0xff]
  %v1354 = vld [vmem:[%s1352 + $0x8] sm:$0xf]
  %v1355 = vld [vmem:[%s1352 + $0xc] sm:$0xff]
  %v1356 = vld [vmem:[%s1352 + $0x14] sm:$0xf]
  %v1357 = vunpack.c.l.bf16 %v1353
  %v1358 = vunpack.c.h.bf16 %v1353
  %v1359 = vunpack.c.l.bf16 %v1354
  %v1360 = vunpack.c.l.bf16 %v1355
  %v1361 = vunpack.c.h.bf16 %v1355
  %v1362 = vunpack.c.l.bf16 %v1356
  %v1363 = vpack.c.bf16 %v1351, %v1350
  %1364 = vmatpush.bf16.msra.mxu0 %v172
  %1365 = vmatpush.bf16.msra.mxu0 %v169
  %1366 = vmatpush.bf16.msra.mxu0 %v166
  %1367 = vmatpush.bf16.msra.mxu0 %v163
  %1368 = vmatpush.bf16.msra.mxu0 %v160
  %1369 = vmatpush.bf16.msra.mxu0 %v157
  %1370 = vmatpush.bf16.msra.mxu0 %v154
  %1371 = vmatpush.bf16.msra.mxu0 %v151
  %1372 = vmatmul.bf16.gmra.mxu0 %v1363
  %v1373 = vpop.f32.mrf.mxu0
  %v1374 = vadd.f32 0.0, %v1373
  %v1375 = vpop.f32.mrf.mxu0
  %v1376 = vadd.f32 0.0, %v1375
  %1377 = vdwg.mxu0
  %1378 = vmatpush.bf16.msra.mxu0 %v173
  %1379 = vmatpush.bf16.msra.mxu0 %v170
  %1380 = vmatpush.bf16.msra.mxu0 %v167
  %1381 = vmatpush.bf16.msra.mxu0 %v164
  %1382 = vmatpush.bf16.msra.mxu0 %v161
  %1383 = vmatpush.bf16.msra.mxu0 %v158
  %1384 = vmatpush.bf16.msra.mxu0 %v155
  %1385 = vmatpush.bf16.msra.mxu0 %v152
  %1386 = vmatmul.bf16.gmra.mxu0 %v1363
  %v1387 = vpop.f32.mrf.mxu0
  %v1388 = vadd.f32 0.0, %v1387
  %v1389 = vpop.f32.mrf.mxu0
  %v1390 = vadd.f32 0.0, %v1389
  %1391 = vdwg.mxu0
  %1392 = vmatpush.bf16.msra.mxu0 %v174
  %1393 = vmatpush.bf16.msra.mxu0 %v171
  %1394 = vmatpush.bf16.msra.mxu0 %v168
  %1395 = vmatpush.bf16.msra.mxu0 %v165
  %1396 = vmatpush.bf16.msra.mxu0 %v162
  %1397 = vmatpush.bf16.msra.mxu0 %v159
  %1398 = vmatpush.bf16.msra.mxu0 %v156
  %1399 = vmatpush.bf16.msra.mxu0 %v153
  %1400 = vmatmul.bf16.gmra.mxu0 %v1363
  %v1401 = vpop.f32.mrf.mxu0
  %v1402 = vadd.f32 0.0, %v1401
  %v1403 = vpop.f32.mrf.mxu0
  %v1404 = vadd.f32 0.0, %v1403
  %1405 = vdwg.mxu0
  %v1406 = vadd.f32 %v1357, %v1374
  %v1407 = vadd.f32 %v1360, %v1376
  %v1408 = vxor.u32 %v1406, 2147483648
  %v1409 = vxor.u32 %v1407, 2147483648
  %v1410 = vmul.f32 %v1408, 1.442695
  %v1411 = vpow.pop %v1410
  %v1412 = vmul.f32 %v1409, 1.442695
  %v1413 = vpow.pop %v1412
  %v1414 = vadd.f32 %v1411, 1.0
  %v1415 = vadd.f32 %v1413, 1.0
  %v1416 = vrcp.pop %v1414
  %v1417 = vmul.f32 %v1414, %v1416
  %v1418 = vsub.f32 1.0, %v1417
  %v1419 = vmul.f32 %v1416, %v1418
  %v1420 = vadd.f32 %v1416, %v1419
  %vm1421 = vweird.f32 %v1414
  %vm1422 = vweird.f32 %v1416
  %vm1423 = vmor %vm1421, %vm1422
  %v1424 = vsel %vm1423, %v1416, %v1420
  %v1425 = vand.u32 2147483647, %v1414
  %vm1426 = vcmp.eq.f32.partialorder %v1425, 8.507059e+37
  %v1427 = vand.u32 %v1414, 2147483648
  %v1428 = vor.u32 1.1754944e-38, %v1427
  %v1429 = vsel %vm1426, %v1428, %v1424
  %v1430 = vmul.f32 1.0, %v1429
  %v1431 = vrcp.pop %v1415
  %v1432 = vmul.f32 %v1415, %v1431
  %v1433 = vsub.f32 1.0, %v1432
  %v1434 = vmul.f32 %v1431, %v1433
  %v1435 = vadd.f32 %v1431, %v1434
  %vm1436 = vweird.f32 %v1415
  %vm1437 = vweird.f32 %v1431
  %vm1438 = vmor %vm1436, %vm1437
  %v1439 = vsel %vm1438, %v1431, %v1435
  %v1440 = vand.u32 2147483647, %v1415
  %vm1441 = vcmp.eq.f32.partialorder %v1440, 8.507059e+37
  %v1442 = vand.u32 %v1415, 2147483648
  %v1443 = vor.u32 1.1754944e-38, %v1442
  %v1444 = vsel %vm1441, %v1443, %v1439
  %v1445 = vmul.f32 1.0, %v1444
  %v1446 = vadd.f32 %v1358, %v1388
  %v1447 = vadd.f32 %v1361, %v1390
  %v1448 = vxor.u32 %v1446, 2147483648
  %v1449 = vxor.u32 %v1447, 2147483648
  %v1450 = vmul.f32 %v1448, 1.442695
  %v1451 = vpow.pop %v1450
  %v1452 = vmul.f32 %v1449, 1.442695
  %v1453 = vpow.pop %v1452
  %v1454 = vadd.f32 %v1451, 1.0
  %v1455 = vadd.f32 %v1453, 1.0
  %v1456 = vrcp.pop %v1454
  %v1457 = vmul.f32 %v1454, %v1456
  %v1458 = vsub.f32 1.0, %v1457
  %v1459 = vmul.f32 %v1456, %v1458
  %v1460 = vadd.f32 %v1456, %v1459
  %vm1461 = vweird.f32 %v1454
  %vm1462 = vweird.f32 %v1456
  %vm1463 = vmor %vm1461, %vm1462
  %v1464 = vsel %vm1463, %v1456, %v1460
  %v1465 = vand.u32 2147483647, %v1454
  %vm1466 = vcmp.eq.f32.partialorder %v1465, 8.507059e+37
  %v1467 = vand.u32 %v1454, 2147483648
  %v1468 = vor.u32 1.1754944e-38, %v1467
  %v1469 = vsel %vm1466, %v1468, %v1464
  %v1470 = vmul.f32 1.0, %v1469
  %v1471 = vrcp.pop %v1455
  %v1472 = vmul.f32 %v1455, %v1471
  %v1473 = vsub.f32 1.0, %v1472
  %v1474 = vmul.f32 %v1471, %v1473
  %v1475 = vadd.f32 %v1471, %v1474
  %vm1476 = vweird.f32 %v1455
  %vm1477 = vweird.f32 %v1471
  %vm1478 = vmor %vm1476, %vm1477
  %v1479 = vsel %vm1478, %v1471, %v1475
  %v1480 = vand.u32 2147483647, %v1455
  %vm1481 = vcmp.eq.f32.partialorder %v1480, 8.507059e+37
  %v1482 = vand.u32 %v1455, 2147483648
  %v1483 = vor.u32 1.1754944e-38, %v1482
  %v1484 = vsel %vm1481, %v1483, %v1479
  %v1485 = vmul.f32 1.0, %v1484
  %v1486 = vadd.f32 %v1402, %v323
  %v1487 = vadd.f32 %v1404, %v323
  %v1488 = vmul.f32 %v1430, %v1486
  %v1489 = vmul.f32 %v1445, %v1487
  %v1490 = vadd.f32 %v1359, %v1488
  %v1491 = vadd.f32 %v1362, %v1489
  %v1492 = vtanh.pop %v1490
  %v1493 = vtanh.pop %v1491
  %v1494 = vsub.f32 1.0, %v1470
  %v1495 = vsub.f32 1.0, %v1485
  %v1496 = vmul.f32 %v1494, %v1492
  %v1497 = vmul.f32 %v1495, %v1493
  %v1498 = vmul.f32 %v1470, %v1350
  %v1499 = vmul.f32 %v1485, %v1351
  %v1500 = vadd.f32 %v1496, %v1498
  %v1501 = vadd.f32 %v1497, %v1499
  %s1502 = sadd.s32 %s23, 7
  %v1503 = vstv %s1502
  %vm1504 = vcmp.gt.s32.totalorder %v24, %v1503
  %vm1505 = vcmp.gt.s32.totalorder %v25, %v1503
  %v1506 = vsel %vm1504, 1, 0
  %v1507 = vsel %vm1505, 1, 0
  %1508 = vset.pattern.permute.xlu0 0
  %1509 = vperm.xlu0 %1508, %v1506
  %v1510 = vpop.permute.xlu0 %1509
  %1511 = vset.pattern.permute.xlu0 0
  %1512 = vperm.xlu0 %1511, %v1507
  %v1513 = vpop.permute.xlu0 %1512
  %vm1514 = vcmp.eq.s32.totalorder %v1510, 1
  %vm1515 = vcmp.eq.s32.totalorder %v1513, 1
  %v1516 = vsel %vm1514, %v1500, %v1350
  %v1517 = vsel %vm1515, %v1501, %v1351
  %1518 = vst [vmem:[%s4] sm:$0xff] %v1516
  %1519 = vst [vmem:[%s4 + $0x8] sm:$0xff] %v1517
  // Predicated region
  $region22: #{seq2seq_forward.6} parent=0 // pred_check
    _
  $region23: #{seq2seq_forward.6} parent=0 // pred_check_branch
    %1521 = sbr.rel (0) target = $region25
  $region24: #{seq2seq_forward.6} parent=0 // pred_region
    _
  $region25: #{seq2seq_forward.6} parent=0 // pred_fallthru
    _
  // Predicated region
  $region26: #{seq2seq_forward.6} parent=0 // pred_check
    _
  $region27: #{seq2seq_forward.6} parent=0 // pred_check_branch
    %1523 = sbr.rel (0) target = $region29
  $region28: #{seq2seq_forward.6} parent=0 // pred_region
    _
  $region29: #{seq2seq_forward.6} parent=0 // pred_fallthru
    _

// kernel: seq2seq_forward.9
$region0: #{seq2seq_forward.9}
  #allocation0 [shape = 'u32[]', space=smem, size = 0x4, offset = 0x4, fixed_abs, tag = 'smem constant byte address 0x4 - core index']
  #allocation1 [shape = 'u32[72,128]{1,0:T(1,128)}', space=vmem, size = 0x9000, scoped, tag = 'internal scratch']
  %s0 = inlined_call_operand.vmem [shape: bf16[96,128], index: 0, kind: input, shape index: {}]
  %s1 = inlined_call_operand.vmem [shape: bf16[128,128], index: 1, kind: input, shape index: {}]
  %s2 = inlined_call_operand.vmem [shape: f32[1,128], index: 2, kind: input, shape index: {}]
  %s3 = inlined_call_operand.vmem [shape: f32[96,128], index: 3, kind: output, shape index: {}]
  %s4 = sld [smem:[#allocation0]]
  $region22: #{seq2seq_forward.9} parent=0
    _
  %s6 = ssub.s32 1, %s4
  %s7 = scalar_select 0, %s6, %s4
  // Predicated region
  $region2: #{seq2seq_forward.9} parent=0 // pred_check
    _
  $region3: #{seq2seq_forward.9} parent=0 // pred_check_branch
    %9 = sbr.rel (0) target = $region5
  $region4: #{seq2seq_forward.9} parent=0 // pred_region
    _
  $region5: #{seq2seq_forward.9} parent=0 // pred_fallthru
    _
  // Predicated region
  $region6: #{seq2seq_forward.9} parent=0 // pred_check
    _
  $region7: #{seq2seq_forward.9} parent=0 // pred_check_branch
    %11 = sbr.rel (0) target = $region9
  $region8: #{seq2seq_forward.9} parent=0 // pred_region
    _
  $region9: #{seq2seq_forward.9} parent=0 // pred_fallthru
    _
  // Predicated region
  $region10: #{seq2seq_forward.9} parent=0 // pred_check
    _
  $region11: #{seq2seq_forward.9} parent=0 // pred_check_branch
    %13 = sbr.rel (0) target = $region13
  $region12: #{seq2seq_forward.9} parent=0 // pred_region
    _
  $region13: #{seq2seq_forward.9} parent=0 // pred_fallthru
    _
  %v14 = vld [vmem:[%s0] sm:$0xf]
  %v15 = vld [vmem:[%s0 + $0x4] sm:$0xf]
  %v16 = vld [vmem:[%s0 + $0x8] sm:$0xf]
  %v17 = vld [vmem:[%s0 + $0xc] sm:$0xf]
  %v18 = vld [vmem:[%s0 + $0x10] sm:$0xf]
  %v19 = vld [vmem:[%s0 + $0x14] sm:$0xf]
  %v20 = vld [vmem:[%s0 + $0x18] sm:$0xf]
  %v21 = vld [vmem:[%s0 + $0x1c] sm:$0xf]
  %v22 = vld [vmem:[%s0 + $0x20] sm:$0xf]
  %v23 = vld [vmem:[%s0 + $0x24] sm:$0xf]
  %v24 = vld [vmem:[%s0 + $0x28] sm:$0xf]
  %v25 = vld [vmem:[%s0 + $0x2c] sm:$0xf]
  %v26 = vld [vmem:[%s1] sm:$0xf]
  %v27 = vld [vmem:[%s1 + $0x4] sm:$0xf]
  %v28 = vld [vmem:[%s1 + $0x8] sm:$0xf]
  %v29 = vld [vmem:[%s1 + $0xc] sm:$0xf]
  %v30 = vld [vmem:[%s1 + $0x10] sm:$0xf]
  %v31 = vld [vmem:[%s1 + $0x14] sm:$0xf]
  %v32 = vld [vmem:[%s1 + $0x18] sm:$0xf]
  %v33 = vld [vmem:[%s1 + $0x1c] sm:$0xf]
  %v34 = vld [vmem:[%s1 + $0x20] sm:$0xf]
  %v35 = vld [vmem:[%s1 + $0x24] sm:$0xf]
  %v36 = vld [vmem:[%s1 + $0x28] sm:$0xf]
  %v37 = vld [vmem:[%s1 + $0x2c] sm:$0xf]
  %v38 = vld [vmem:[%s1 + $0x30] sm:$0xf]
  %v39 = vld [vmem:[%s1 + $0x34] sm:$0xf]
  %v40 = vld [vmem:[%s1 + $0x38] sm:$0xf]
  %v41 = vld [vmem:[%s1 + $0x3c] sm:$0xf]
  %v42 = vld [vmem:[%s2] sm:$0x1]
  %v44 = vperm.slane %v42, 0
  %v58 = vunpack.c.l.b16 %v14
  %v59 = vunpack.c.l.b16 %v15
  %v60 = vunpack.c.l.b16 %v16
  %v61 = vunpack.c.l.b16 %v17
  %v62 = vunpack.c.l.b16 %v18
  %v63 = vunpack.c.l.b16 %v19
  %v64 = vunpack.c.l.b16 %v20
  %v65 = vunpack.c.l.b16 %v21
  %v66 = vunpack.c.l.b16 %v22
  %v67 = vunpack.c.l.b16 %v23
  %v68 = vunpack.c.l.b16 %v24
  %v69 = vunpack.c.l.b16 %v25
  %v70 = vpack.c.b16 %v59, %v58
  %v71 = vpack.c.b16 %v61, %v60
  %v72 = vpack.c.b16 %v63, %v62
  %v73 = vpack.c.b16 %v65, %v64
  %v74 = vpack.c.b16 %v67, %v66
  %v75 = vpack.c.b16 %v69, %v68
  %v98 = vunpack.c.l.b16 %v26
  %v99 = vunpack.c.l.b16 %v27
  %v100 = vunpack.c.l.b16 %v28
  %v101 = vunpack.c.l.b16 %v29
  %v102 = vunpack.c.l.b16 %v30
  %v103 = vunpack.c.l.b16 %v31
  %v104 = vunpack.c.l.b16 %v32
  %v105 = vunpack.c.l.b16 %v33
  %v106 = vunpack.c.l.b16 %v34
  %v107 = vunpack.c.l.b16 %v35
  %v108 = vunpack.c.l.b16 %v36
  %v109 = vunpack.c.l.b16 %v37
  %v110 = vunpack.c.l.b16 %v38
  %v111 = vunpack.c.l.b16 %v39
  %v112 = vunpack.c.l.b16 %v40
  %v113 = vunpack.c.l.b16 %v41
  %v114 = vpack.c.b16 %v99, %v98
  %v115 = vpack.c.b16 %v101, %v100
  %v116 = vpack.c.b16 %v103, %v102
  %v117 = vpack.c.b16 %v105, %v104
  %v118 = vpack.c.b16 %v107, %v106
  %v119 = vpack.c.b16 %v109, %v108
  %v120 = vpack.c.b16 %v111, %v110
  %v121 = vpack.c.b16 %v113, %v112
  %130 = vmatpush.bf16.msra.mxu0 %v121
  %131 = vmatpush.bf16.msra.mxu0 %v120
  %132 = vmatpush.bf16.msra.mxu0 %v119
  %133 = vmatpush.bf16.msra.mxu0 %v118
  %134 = vmatpush.bf16.msra.mxu0 %v117
  %135 = vmatpush.bf16.msra.mxu0 %v116
  %136 = vmatpush.bf16.msra.mxu0 %v115
  %137 = vmatpush.bf16.msra.mxu0 %v114
  %138 = vmatmul.bf16.gmra.mxu0 %v70
  %v139 = vpop.f32.mrf.mxu0
  %v140 = vadd.f32 %v44, %v139
  %v141 = vpop.f32.mrf.mxu0
  %v142 = vadd.f32 %v44, %v141
  %143 = vmatmul.bf16.gmra.mxu0 %v71
  %v144 = vpop.f32.mrf.mxu0
  %v145 = vadd.f32 %v44, %v144
  %v146 = vpop.f32.mrf.mxu0
  %v147 = vadd.f32 %v44, %v146
  %148 = vmatmul.bf16.gmra.mxu0 %v72
  %v149 = vpop.f32.mrf.mxu0
  %v150 = vadd.f32 %v44, %v149
  %v151 = vpop.f32.mrf.mxu0
  %v152 = vadd.f32 %v44, %v151
  %153 = vmatmul.bf16.gmra.mxu0 %v73
  %v154 = vpop.f32.mrf.mxu0
  %v155 = vadd.f32 %v44, %v154
  %v156 = vpop.f32.mrf.mxu0
  %v157 = vadd.f32 %v44, %v156
  %158 = vmatmul.bf16.gmra.mxu0 %v74
  %v159 = vpop.f32.mrf.mxu0
  %v160 = vadd.f32 %v44, %v159
  %v161 = vpop.f32.mrf.mxu0
  %v162 = vadd.f32 %v44, %v161
  %163 = vmatmul.bf16.gmra.mxu0 %v75
  %v164 = vpop.f32.mrf.mxu0
  %v165 = vadd.f32 %v44, %v164
  %v166 = vpop.f32.mrf.mxu0
  %v167 = vadd.f32 %v44, %v166
  %168 = vdwg.mxu0
  %v169 = vlaneseq
  %v170 = vand.u32 %v169, 127
  %vm171 = vcmp.lt.s32.totalorder %v170, 32
  %v172 = vsel %vm171, %v140, -1e+30
  %v173 = vsel %vm171, %v142, -1e+30
  %v174 = vsel %vm171, %v145, -1e+30
  %v175 = vsel %vm171, %v147, -1e+30
  %v176 = vsel %vm171, %v150, -1e+30
  %v177 = vsel %vm171, %v152, -1e+30
  %v178 = vsel %vm171, %v155, -1e+30
  %v179 = vsel %vm171, %v157, -1e+30
  %v180 = vsel %vm171, %v160, -1e+30
  %v181 = vsel %vm171, %v162, -1e+30
  %v182 = vsel %vm171, %v165, -1e+30
  %v183 = vsel %vm171, %v167, -1e+30
  %184 = vmax.xlane.f32.xlu0 %v172
  %v185 = vpop.xlane.xlu0 %184
  %186 = vmax.xlane.f32.xlu0 %v173
  %v187 = vpop.xlane.xlu0 %186
  %188 = vmax.xlane.f32.xlu0 %v174
  %v189 = vpop.xlane.xlu0 %188
  %190 = vmax.xlane.f32.xlu0 %v175
  %v191 = vpop.xlane.xlu0 %190
  %192 = vmax.xlane.f32.xlu0 %v176
  %v193 = vpop.xlane.xlu0 %192
  %194 = vmax.xlane.f32.xlu0 %v177
  %v195 = vpop.xlane.xlu0 %194
  %196 = vmax.xlane.f32.xlu0 %v178
  %v197 = vpop.xlane.xlu0 %196
  %198 = vmax.xlane.f32.xlu0 %v179
  %v199 = vpop.xlane.xlu0 %198
  %200 = vmax.xlane.f32.xlu0 %v180
  %v201 = vpop.xlane.xlu0 %200
  %202 = vmax.xlane.f32.xlu0 %v181
  %v203 = vpop.xlane.xlu0 %202
  %204 = vmax.xlane.f32.xlu0 %v182
  %v205 = vpop.xlane.xlu0 %204
  %206 = vmax.xlane.f32.xlu0 %v183
  %v207 = vpop.xlane.xlu0 %206
  %v208 = vsub.f32 %v172, %v185
  %v209 = vsub.f32 %v173, %v187
  %v210 = vsub.f32 %v174, %v189
  %v211 = vsub.f32 %v175, %v191
  %v212 = vsub.f32 %v176, %v193
  %v213 = vsub.f32 %v177, %v195
  %v214 = vsub.f32 %v178, %v197
  %v215 = vsub.f32 %v179, %v199
  %v216 = vsub.f32 %v180, %v201
  %v217 = vsub.f32 %v181, %v203
  %v218 = vsub.f32 %v182, %v205
  %v219 = vsub.f32 %v183, %v207
  %v220 = vmul.f32 %v208, 1.442695
  %v221 = vpow.pop %v220
  %v222 = vmul.f32 %v209, 1.442695
  %v223 = vpow.pop %v222
  %v224 = vmul.f32 %v210, 1.442695
  %v225 = vpow.pop %v224
  %v226 = vmul.f32 %v211, 1.442695
  %v227 = vpow.pop %v226
  %v228 = vmul.f32 %v212, 1.442695
  %v229 = vpow.pop %v228
  %v230 = vmul.f32 %v213, 1.442695
  %v231 = vpow.pop %v230
  %v232 = vmul.f32 %v214, 1.442695
  %v233 = vpow.pop %v232
  %v234 = vmul.f32 %v215, 1.442695
  %v235 = vpow.pop %v234
  %v236 = vmul.f32 %v216, 1.442695
  %v237 = vpow.pop %v236
  %v238 = vmul.f32 %v217, 1.442695
  %v239 = vpow.pop %v238
  %v240 = vmul.f32 %v218, 1.442695
  %v241 = vpow.pop %v240
  %v242 = vmul.f32 %v219, 1.442695
  %v243 = vpow.pop %v242
  %244 = vadd.xlane.f32.xlu0 %v221
  %v245 = vpop.xlane.xlu0 %244
  %246 = vadd.xlane.f32.xlu0 %v223
  %v247 = vpop.xlane.xlu0 %246
  %248 = vadd.xlane.f32.xlu0 %v225
  %v249 = vpop.xlane.xlu0 %248
  %250 = vadd.xlane.f32.xlu0 %v227
  %v251 = vpop.xlane.xlu0 %250
  %252 = vadd.xlane.f32.xlu0 %v229
  %v253 = vpop.xlane.xlu0 %252
  %254 = vadd.xlane.f32.xlu0 %v231
  %v255 = vpop.xlane.xlu0 %254
  %256 = vadd.xlane.f32.xlu0 %v233
  %v257 = vpop.xlane.xlu0 %256
  %258 = vadd.xlane.f32.xlu0 %v235
  %v259 = vpop.xlane.xlu0 %258
  %260 = vadd.xlane.f32.xlu0 %v237
  %v261 = vpop.xlane.xlu0 %260
  %262 = vadd.xlane.f32.xlu0 %v239
  %v263 = vpop.xlane.xlu0 %262
  %264 = vadd.xlane.f32.xlu0 %v241
  %v265 = vpop.xlane.xlu0 %264
  %266 = vadd.xlane.f32.xlu0 %v243
  %v267 = vpop.xlane.xlu0 %266
  %v268 = vlog2.pop %v245
  %v269 = vmul.f32 %v268, 0.6931472
  %v270 = vlog2.pop %v247
  %v271 = vmul.f32 %v270, 0.6931472
  %v272 = vlog2.pop %v249
  %v273 = vmul.f32 %v272, 0.6931472
  %v274 = vlog2.pop %v251
  %v275 = vmul.f32 %v274, 0.6931472
  %v276 = vlog2.pop %v253
  %v277 = vmul.f32 %v276, 0.6931472
  %v278 = vlog2.pop %v255
  %v279 = vmul.f32 %v278, 0.6931472
  %v280 = vlog2.pop %v257
  %v281 = vmul.f32 %v280, 0.6931472
  %v282 = vlog2.pop %v259
  %v283 = vmul.f32 %v282, 0.6931472
  %v284 = vlog2.pop %v261
  %v285 = vmul.f32 %v284, 0.6931472
  %v286 = vlog2.pop %v263
  %v287 = vmul.f32 %v286, 0.6931472
  %v288 = vlog2.pop %v265
  %v289 = vmul.f32 %v288, 0.6931472
  %v290 = vlog2.pop %v267
  %v291 = vmul.f32 %v290, 0.6931472
  %v292 = vadd.f32 %v269, %v185
  %v293 = vadd.f32 %v271, %v187
  %v294 = vadd.f32 %v273, %v189
  %v295 = vadd.f32 %v275, %v191
  %v296 = vadd.f32 %v277, %v193
  %v297 = vadd.f32 %v279, %v195
  %v298 = vadd.f32 %v281, %v197
  %v299 = vadd.f32 %v283, %v199
  %v300 = vadd.f32 %v285, %v201
  %v301 = vadd.f32 %v287, %v203
  %v302 = vadd.f32 %v289, %v205
  %v303 = vadd.f32 %v291, %v207
  %v304 = vsub.f32 %v172, %v292
  %v305 = vsub.f32 %v173, %v293
  %v306 = vsub.f32 %v174, %v294
  %v307 = vsub.f32 %v175, %v295
  %v308 = vsub.f32 %v176, %v296
  %v309 = vsub.f32 %v177, %v297
  %v310 = vsub.f32 %v178, %v298
  %v311 = vsub.f32 %v179, %v299
  %v312 = vsub.f32 %v180, %v300
  %v313 = vsub.f32 %v181, %v301
  %v314 = vsub.f32 %v182, %v302
  %v315 = vsub.f32 %v183, %v303
  %316 = vst [vmem:[%s3] sm:$0xff] %v304
  %317 = vst [vmem:[%s3 + $0x8] sm:$0xff] %v305
  %318 = vst [vmem:[%s3 + $0x10] sm:$0xff] %v306
  %319 = vst [vmem:[%s3 + $0x18] sm:$0xff] %v307
  %320 = vst [vmem:[%s3 + $0x20] sm:$0xff] %v308
  %321 = vst [vmem:[%s3 + $0x28] sm:$0xff] %v309
  %322 = vst [vmem:[%s3 + $0x30] sm:$0xff] %v310
  %323 = vst [vmem:[%s3 + $0x38] sm:$0xff] %v311
  %324 = vst [vmem:[%s3 + $0x40] sm:$0xff] %v312
  %325 = vst [vmem:[%s3 + $0x48] sm:$0xff] %v313
  %326 = vst [vmem:[%s3 + $0x50] sm:$0xff] %v314
  %327 = vst [vmem:[%s3 + $0x58] sm:$0xff] %v315
  // Predicated region
  $region14: #{seq2seq_forward.9} parent=0 // pred_check
    _
  $region15: #{seq2seq_forward.9} parent=0 // pred_check_branch
    %329 = sbr.rel (0) target = $region17
  $region16: #{seq2seq_forward.9} parent=0 // pred_region
    _
  $region17: #{seq2seq_forward.9} parent=0 // pred_fallthru
    _
  // Predicated region
  $region18: #{seq2seq_forward.9} parent=0 // pred_check
    _
  $region19: #{seq2seq_forward.9} parent=0 // pred_check_branch
    %331 = sbr.rel (0) target = $region21
  $region20: #{seq2seq_forward.9} parent=0 // pred_region
    _
  $region21: #{seq2seq_forward.9} parent=0 // pred_fallthru
    _

// kernel: seq2seq_forward.8
$region0: #{seq2seq_forward.8}
  #allocation0 [shape = 'u32[]', space=smem, size = 0x4, offset = 0x4, fixed_abs, tag = 'smem constant byte address 0x4 - core index']
  #allocation1 [shape = 'u32[72,128]{1,0:T(1,128)}', space=vmem, size = 0x9000, scoped, tag = 'internal scratch']
  %s0 = inlined_call_operand.vmem [shape: bf16[6,16,384], index: 0, kind: input, shape index: {}]
  %s1 = inlined_call_operand.vmem [shape: f32[16,128], index: 1, kind: input, shape index: {}]
  %s2 = inlined_call_operand.vmem [shape: bf16[128,384], index: 2, kind: input, shape index: {}]
  %s3 = inlined_call_operand.vmem [shape: f32[1,128], index: 3, kind: input, shape index: {}]
  %s4 = inlined_call_operand.vmem [shape: bf16[6,16,128], index: 4, kind: output, shape index: {0}]
  %s5 = inlined_call_operand.vmem [shape: f32[16,128], index: 5, kind: output, shape index: {1}]
  %6 = xla_tuple %s4, %s5
  %s7 = sld [smem:[#allocation0]]
  $region38: #{seq2seq_forward.8} parent=0
    _
  %s9 = ssub.s32 1, %s7
  %s10 = scalar_select 0, %s9, %s7
  // Predicated region
  $region2: #{seq2seq_forward.8} parent=0 // pred_check
    _
  $region3: #{seq2seq_forward.8} parent=0 // pred_check_branch
    %12 = sbr.rel (0) target = $region5
  $region4: #{seq2seq_forward.8} parent=0 // pred_region
    _
  $region5: #{seq2seq_forward.8} parent=0 // pred_fallthru
    _
  // Predicated region
  $region6: #{seq2seq_forward.8} parent=0 // pred_check
    _
  $region7: #{seq2seq_forward.8} parent=0 // pred_check_branch
    %14 = sbr.rel (0) target = $region9
  $region8: #{seq2seq_forward.8} parent=0 // pred_region
    _
  $region9: #{seq2seq_forward.8} parent=0 // pred_fallthru
    _
  // Predicated region
  $region10: #{seq2seq_forward.8} parent=0 // pred_check
    _
  $region11: #{seq2seq_forward.8} parent=0 // pred_check_branch
    %16 = sbr.rel (0) target = $region13
  $region12: #{seq2seq_forward.8} parent=0 // pred_region
    _
  $region13: #{seq2seq_forward.8} parent=0 // pred_fallthru
    _
  // Predicated region
  $region14: #{seq2seq_forward.8} parent=0 // pred_check
    _
  $region15: #{seq2seq_forward.8} parent=0 // pred_check_branch
    %18 = sbr.rel (0) target = $region17
  $region16: #{seq2seq_forward.8} parent=0 // pred_region
    _
  $region17: #{seq2seq_forward.8} parent=0 // pred_fallthru
    _
  %p19 = scmp.eq.s32.totalorder 0, 0
  // Predicated region
  $region18: #{seq2seq_forward.8} parent=0 // pred_check
    %p20 = pneg %p19
  $region19: #{seq2seq_forward.8} parent=0 // pred_check_branch
    %22 = sbr.rel (%p20) target = $region21
  $region20: #{seq2seq_forward.8} parent=0 // pred_region
    %v23 = vld [vmem:[%s1] sm:$0xff]
    %v24 = vld [vmem:[%s1 + $0x8] sm:$0xff]
    %25 = vst [vmem:[%s5] sm:$0xff] %v23
    %26 = vst [vmem:[%s5 + $0x8] sm:$0xff] %v24
  $region21: #{seq2seq_forward.8} parent=0 // pred_fallthru
    _
  %s27 = smul.u32 0, 6
  %v28 = vld [vmem:[%s5] sm:$0xff]
  %v29 = vld [vmem:[%s5 + $0x8] sm:$0xff]
  %v30 = vld [vmem:[%s0] sm:$0xff]
  %v31 = vld [vmem:[%s0 + $0x8] sm:$0xf]
  %v32 = vld [vmem:[%s0 + $0xc] sm:$0xff]
  %v33 = vld [vmem:[%s0 + $0x14] sm:$0xf]
  %v34 = vunpack.c.l.bf16 %v30
  %v35 = vunpack.c.h.bf16 %v30
  %v36 = vunpack.c.l.bf16 %v31
  %v37 = vunpack.c.l.bf16 %v32
  %v38 = vunpack.c.h.bf16 %v32
  %v39 = vunpack.c.l.bf16 %v33
  %v40 = vpack.c.bf16 %v29, %v28
  %v41 = vld [vmem:[%s2] sm:$0xff]
  %v42 = vld [vmem:[%s2 + $0x8] sm:$0xf]
  %v43 = vld [vmem:[%s2 + $0xc] sm:$0xff]
  %v44 = vld [vmem:[%s2 + $0x14] sm:$0xf]
  %v45 = vld [vmem:[%s2 + $0x18] sm:$0xff]
  %v46 = vld [vmem:[%s2 + $0x20] sm:$0xf]
  %v47 = vld [vmem:[%s2 + $0x24] sm:$0xff]
  %v48 = vld [vmem:[%s2 + $0x2c] sm:$0xf]
  %v49 = vld [vmem:[%s2 + $0x30] sm:$0xff]
  %v50 = vld [vmem:[%s2 + $0x38] sm:$0xf]
  %v51 = vld [vmem:[%s2 + $0x3c] sm:$0xff]
  %v52 = vld [vmem:[%s2 + $0x44] sm:$0xf]
  %v53 = vld [vmem:[%s2 + $0x48] sm:$0xff]
  %v54 = vld [vmem:[%s2 + $0x50] sm:$0xf]
  %v55 = vld [vmem:[%s2 + $0x54] sm:$0xff]
  %v56 = vld [vmem:[%s2 + $0x5c] sm:$0xf]
  %v57 = vld [vmem:[%s2 + $0x60] sm:$0xff]
  %v58 = vld [vmem:[%s2 + $0x68] sm:$0xf]
  %v59 = vld [vmem:[%s2 + $0x6c] sm:$0xff]
  %v60 = vld [vmem:[%s2 + $0x74] sm:$0xf]
  %v61 = vld [vmem:[%s2 + $0x78] sm:$0xff]
  %v62 = vld [vmem:[%s2 + $0x80] sm:$0xf]
  %v63 = vld [vmem:[%s2 + $0x84] sm:$0xff]
  %v64 = vld [vmem:[%s2 + $0x8c] sm:$0xf]
  %v65 = vld [vmem:[%s2 + $0x90] sm:$0xff]
  %v66 = vld [vmem:[%s2 + $0x98] sm:$0xf]
  %v67 = vld [vmem:[%s2 + $0x9c] sm:$0xff]
  %v68 = vld [vmem:[%s2 + $0xa4] sm:$0xf]
  %v69 = vld [vmem:[%s2 + $0xa8] sm:$0xff]
  %v70 = vld [vmem:[%s2 + $0xb0] sm:$0xf]
  %v71 = vld [vmem:[%s2 + $0xb4] sm:$0xff]
  %v72 = vld [vmem:[%s2 + $0xbc] sm:$0xf]
  %v105 = vunpack.c.l.b16 %v41
  %v106 = vunpack.c.h.b16 %v41
  %v107 = vunpack.c.l.b16 %v42
  %v108 = vunpack.c.l.b16 %v43
  %v109 = vunpack.c.h.b16 %v43
  %v110 = vunpack.c.l.b16 %v44
  %v111 = vunpack.c.l.b16 %v45
  %v112 = vunpack.c.h.b16 %v45
  %v113 = vunpack.c.l.b16 %v46
  %v114 = vunpack.c.l.b16 %v47
  %v115 = vunpack.c.h.b16 %v47
  %v116 = vunpack.c.l.b16 %v48
  %v117 = vunpack.c.l.b16 %v49
  %v118 = vunpack.c.h.b16 %v49
  %v119 = vunpack.c.l.b16 %v50
  %v120 = vunpack.c.l.b16 %v51
  %v121 = vunpack.c.h.b16 %v51
  %v122 = vunpack.c.l.b16 %v52
  %v123 = vunpack.c.l.b16 %v53
  %v124 = vunpack.c.h.b16 %v53
  %v125 = vunpack.c.l.b16 %v54
  %v126 = vunpack.c.l.b16 %v55
  %v127 = vunpack.c.h.b16 %v55
  %v128 = vunpack.c.l.b16 %v56
  %v129 = vunpack.c.l.b16 %v57
  %v130 = vunpack.c.h.b16 %v57
  %v131 = vunpack.c.l.b16 %v58
  %v132 = vunpack.c.l.b16 %v59
  %v133 = vunpack.c.h.b16 %v59
  %v134 = vunpack.c.l.b16 %v60
  %v135 = vunpack.c.l.b16 %v61
  %v136 = vunpack.c.h.b16 %v61
  %v137 = vunpack.c.l.b16 %v62
  %v138 = vunpack.c.l.b16 %v63
  %v139 = vunpack.c.h.b16 %v63
  %v140 = vunpack.c.l.b16 %v64
  %v141 = vunpack.c.l.b16 %v65
  %v142 = vunpack.c.h.b16 %v65
  %v143 = vunpack.c.l.b16 %v66
  %v144 = vunpack.c.l.b16 %v67
  %v145 = vunpack.c.h.b16 %v67
  %v146 = vunpack.c.l.b16 %v68
  %v147 = vunpack.c.l.b16 %v69
  %v148 = vunpack.c.h.b16 %v69
  %v149 = vunpack.c.l.b16 %v70
  %v150 = vunpack.c.l.b16 %v71
  %v151 = vunpack.c.h.b16 %v71
  %v152 = vunpack.c.l.b16 %v72
  %v153 = vpack.c.b16 %v108, %v105
  %v154 = vpack.c.b16 %v109, %v106
  %v155 = vpack.c.b16 %v110, %v107
  %v156 = vpack.c.b16 %v114, %v111
  %v157 = vpack.c.b16 %v115, %v112
  %v158 = vpack.c.b16 %v116, %v113
  %v159 = vpack.c.b16 %v120, %v117
  %v160 = vpack.c.b16 %v121, %v118
  %v161 = vpack.c.b16 %v122, %v119
  %v162 = vpack.c.b16 %v126, %v123
  %v163 = vpack.c.b16 %v127, %v124
  %v164 = vpack.c.b16 %v128, %v125
  %v165 = vpack.c.b16 %v132, %v129
  %v166 = vpack.c.b16 %v133, %v130
  %v167 = vpack.c.b16 %v134, %v131
  %v168 = vpack.c.b16 %v138, %v135
  %v169 = vpack.c.b16 %v139, %v136
  %v170 = vpack.c.b16 %v140, %v137
  %v171 = vpack.c.b16 %v144, %v141
  %v172 = vpack.c.b16 %v145, %v142
  %v173 = vpack.c.b16 %v146, %v143
  %v174 = vpack.c.b16 %v150, %v147
  %v175 = vpack.c.b16 %v151, %v148
  %v176 = vpack.c.b16 %v152, %v149
  %201 = vmatpush.bf16.msra.mxu0 %v174
  %202 = vmatpush.bf16.msra.mxu0 %v171
  %203 = vmatpush.bf16.msra.mxu0 %v168
  %204 = vmatpush.bf16.msra.mxu0 %v165
  %205 = vmatpush.bf16.msra.mxu0 %v162
  %206 = vmatpush.bf16.msra.mxu0 %v159
  %207 = vmatpush.bf16.msra.mxu0 %v156
  %208 = vmatpush.bf16.msra.mxu0 %v153
  %209 = vmatmul.bf16.gmra.mxu0 %v40
  %v210 = vpop.f32.mrf.mxu0
  %v211 = vadd.f32 0.0, %v210
  %v212 = vpop.f32.mrf.mxu0
  %v213 = vadd.f32 0.0, %v212
  %214 = vdwg.mxu0
  %215 = vmatpush.bf16.msra.mxu0 %v175
  %216 = vmatpush.bf16.msra.mxu0 %v172
  %217 = vmatpush.bf16.msra.mxu0 %v169
  %218 = vmatpush.bf16.msra.mxu0 %v166
  %219 = vmatpush.bf16.msra.mxu0 %v163
  %220 = vmatpush.bf16.msra.mxu0 %v160
  %221 = vmatpush.bf16.msra.mxu0 %v157
  %222 = vmatpush.bf16.msra.mxu0 %v154
  %223 = vmatmul.bf16.gmra.mxu0 %v40
  %v224 = vpop.f32.mrf.mxu0
  %v225 = vadd.f32 0.0, %v224
  %v226 = vpop.f32.mrf.mxu0
  %v227 = vadd.f32 0.0, %v226
  %228 = vdwg.mxu0
  %229 = vmatpush.bf16.msra.mxu0 %v176
  %230 = vmatpush.bf16.msra.mxu0 %v173
  %231 = vmatpush.bf16.msra.mxu0 %v170
  %232 = vmatpush.bf16.msra.mxu0 %v167
  %233 = vmatpush.bf16.msra.mxu0 %v164
  %234 = vmatpush.bf16.msra.mxu0 %v161
  %235 = vmatpush.bf16.msra.mxu0 %v158
  %236 = vmatpush.bf16.msra.mxu0 %v155
  %237 = vmatmul.bf16.gmra.mxu0 %v40
  %v238 = vpop.f32.mrf.mxu0
  %v239 = vadd.f32 0.0, %v238
  %v240 = vpop.f32.mrf.mxu0
  %v241 = vadd.f32 0.0, %v240
  %242 = vdwg.mxu0
  %v243 = vadd.f32 %v34, %v211
  %v244 = vadd.f32 %v37, %v213
  %v245 = vxor.u32 %v243, 2147483648
  %v246 = vxor.u32 %v244, 2147483648
  %v247 = vmul.f32 %v245, 1.442695
  %v248 = vpow.pop %v247
  %v249 = vmul.f32 %v246, 1.442695
  %v250 = vpow.pop %v249
  %v251 = vadd.f32 %v248, 1.0
  %v252 = vadd.f32 %v250, 1.0
  %v253 = vrcp.pop %v251
  %v254 = vmul.f32 %v251, %v253
  %v255 = vsub.f32 1.0, %v254
  %v256 = vmul.f32 %v253, %v255
  %v257 = vadd.f32 %v253, %v256
  %vm258 = vweird.f32 %v251
  %vm259 = vweird.f32 %v253
  %vm260 = vmor %vm258, %vm259
  %v261 = vsel %vm260, %v253, %v257
  %v262 = vand.u32 2147483647, %v251
  %vm263 = vcmp.eq.f32.partialorder %v262, 8.507059e+37
  %v264 = vand.u32 %v251, 2147483648
  %v265 = vor.u32 1.1754944e-38, %v264
  %v266 = vsel %vm263, %v265, %v261
  %v267 = vmul.f32 1.0, %v266
  %v268 = vrcp.pop %v252
  %v269 = vmul.f32 %v252, %v268
  %v270 = vsub.f32 1.0, %v269
  %v271 = vmul.f32 %v268, %v270
  %v272 = vadd.f32 %v268, %v271
  %vm273 = vweird.f32 %v252
  %vm274 = vweird.f32 %v268
  %vm275 = vmor %vm273, %vm274
  %v276 = vsel %vm275, %v268, %v272
  %v277 = vand.u32 2147483647, %v252
  %vm278 = vcmp.eq.f32.partialorder %v277, 8.507059e+37
  %v279 = vand.u32 %v252, 2147483648
  %v280 = vor.u32 1.1754944e-38, %v279
  %v281 = vsel %vm278, %v280, %v276
  %v282 = vmul.f32 1.0, %v281
  %v283 = vadd.f32 %v35, %v225
  %v284 = vadd.f32 %v38, %v227
  %v285 = vxor.u32 %v283, 2147483648
  %v286 = vxor.u32 %v284, 2147483648
  %v287 = vmul.f32 %v285, 1.442695
  %v288 = vpow.pop %v287
  %v289 = vmul.f32 %v286, 1.442695
  %v290 = vpow.pop %v289
  %v291 = vadd.f32 %v288, 1.0
  %v292 = vadd.f32 %v290, 1.0
  %v293 = vrcp.pop %v291
  %v294 = vmul.f32 %v291, %v293
  %v295 = vsub.f32 1.0, %v294
  %v296 = vmul.f32 %v293, %v295
  %v297 = vadd.f32 %v293, %v296
  %vm298 = vweird.f32 %v291
  %vm299 = vweird.f32 %v293
  %vm300 = vmor %vm298, %vm299
  %v301 = vsel %vm300, %v293, %v297
  %v302 = vand.u32 2147483647, %v291
  %vm303 = vcmp.eq.f32.partialorder %v302, 8.507059e+37
  %v304 = vand.u32 %v291, 2147483648
  %v305 = vor.u32 1.1754944e-38, %v304
  %v306 = vsel %vm303, %v305, %v301
  %v307 = vmul.f32 1.0, %v306
  %v308 = vrcp.pop %v292
  %v309 = vmul.f32 %v292, %v308
  %v310 = vsub.f32 1.0, %v309
  %v311 = vmul.f32 %v308, %v310
  %v312 = vadd.f32 %v308, %v311
  %vm313 = vweird.f32 %v292
  %vm314 = vweird.f32 %v308
  %vm315 = vmor %vm313, %vm314
  %v316 = vsel %vm315, %v308, %v312
  %v317 = vand.u32 2147483647, %v292
  %vm318 = vcmp.eq.f32.partialorder %v317, 8.507059e+37
  %v319 = vand.u32 %v292, 2147483648
  %v320 = vor.u32 1.1754944e-38, %v319
  %v321 = vsel %vm318, %v320, %v316
  %v322 = vmul.f32 1.0, %v321
  %v323 = vld [vmem:[%s3] sm:$0x1]
  %v325 = vperm.slane %v323, 0
  %v327 = vadd.f32 %v239, %v325
  %v328 = vadd.f32 %v241, %v325
  %v329 = vmul.f32 %v267, %v327
  %v330 = vmul.f32 %v282, %v328
  %v331 = vadd.f32 %v36, %v329
  %v332 = vadd.f32 %v39, %v330
  %v333 = vtanh.pop %v331
  %v334 = vtanh.pop %v332
  %v335 = vsub.f32 1.0, %v307
  %v336 = vsub.f32 1.0, %v322
  %v337 = vmul.f32 %v335, %v333
  %v338 = vmul.f32 %v336, %v334
  %v339 = vmul.f32 %v307, %v28
  %v340 = vmul.f32 %v322, %v29
  %v341 = vadd.f32 %v337, %v339
  %v342 = vadd.f32 %v338, %v340
  %p343 = scmp.lt.s32.totalorder %s27, 6
  %s344 = scalar_select %p343, 1, 0
  %v345 = vstv %s344
  %vm346 = vcmp.eq.s32.totalorder %v345, 1
  %v347 = vsel %vm346, %v341, %v28
  %v348 = vsel %vm346, %v342, %v29
  %v349 = vpack.c.bf16 %v347, %v347
  %v350 = vpack.c.bf16 %v348, %v348
  %351 = vst [vmem:[%s4] sm:$0xf] %v349
  %352 = vst [vmem:[%s4 + $0x4] sm:$0xf] %v350
  %s353 = scalar_lea.vmem %s0, 24
  %v354 = vld [vmem:[%s353] sm:$0xff]
  %v355 = vld [vmem:[%s353 + $0x8] sm:$0xf]
  %v356 = vld [vmem:[%s353 + $0xc] sm:$0xff]
  %v357 = vld [vmem:[%s353 + $0x14] sm:$0xf]
  %v358 = vunpack.c.l.bf16 %v354
  %v359 = vunpack.c.h.bf16 %v354
  %v360 = vunpack.c.l.bf16 %v355
  %v361 = vunpack.c.l.bf16 %v356
  %v362 = vunpack.c.h.bf16 %v356
  %v363 = vunpack.c.l.bf16 %v357
  %v364 = vld [vmem:[%s2] sm:$0xff]
  %v365 = vld [vmem:[%s2 + $0x8] sm:$0xf]
  %v366 = vld [vmem:[%s2 + $0xc] sm:$0xff]
  %v367 = vld [vmem:[%s2 + $0x14] sm:$0xf]
  %v368 = vld [vmem:[%s2 + $0x18] sm:$0xff]
  %v369 = vld [vmem:[%s2 + $0x20] sm:$0xf]
  %v370 = vld [vmem:[%s2 + $0x24] sm:$0xff]
  %v371 = vld [vmem:[%s2 + $0x2c] sm:$0xf]
  %v372 = vld [vmem:[%s2 + $0x30] sm:$0xff]
  %v373 = vld [vmem:[%s2 + $0x38] sm:$0xf]
  %v374 = vld [vmem:[%s2 + $0x3c] sm:$0xff]
  %v375 = vld [vmem:[%s2 + $0x44] sm:$0xf]
  %v376 = vld [vmem:[%s2 + $0x48] sm:$0xff]
  %v377 = vld [vmem:[%s2 + $0x50] sm:$0xf]
  %v378 = vld [vmem:[%s2 + $0x54] sm:$0xff]
  %v379 = vld [vmem:[%s2 + $0x5c] sm:$0xf]
  %v380 = vld [vmem:[%s2 + $0x60] sm:$0xff]
  %v381 = vld [vmem:[%s2 + $0x68] sm:$0xf]
  %v382 = vld [vmem:[%s2 + $0x6c] sm:$0xff]
  %v383 = vld [vmem:[%s2 + $0x74] sm:$0xf]
  %v384 = vld [vmem:[%s2 + $0x78] sm:$0xff]
  %v385 = vld [vmem:[%s2 + $0x80] sm:$0xf]
  %v386 = vld [vmem:[%s2 + $0x84] sm:$0xff]
  %v387 = vld [vmem:[%s2 + $0x8c] sm:$0xf]
  %v388 = vld [vmem:[%s2 + $0x90] sm:$0xff]
  %v389 = vld [vmem:[%s2 + $0x98] sm:$0xf]
  %v390 = vld [vmem:[%s2 + $0x9c] sm:$0xff]
  %v391 = vld [vmem:[%s2 + $0xa4] sm:$0xf]
  %v392 = vld [vmem:[%s2 + $0xa8] sm:$0xff]
  %v393 = vld [vmem:[%s2 + $0xb0] sm:$0xf]
  %v394 = vld [vmem:[%s2 + $0xb4] sm:$0xff]
  %v395 = vld [vmem:[%s2 + $0xbc] sm:$0xf]
  %v398 = vunpack.c.l.b16 %v349
  %v399 = vunpack.c.l.b16 %v350
  %v400 = vpack.c.b16 %v399, %v398
  %v434 = vunpack.c.l.b16 %v364
  %v435 = vunpack.c.h.b16 %v364
  %v436 = vunpack.c.l.b16 %v365
  %v437 = vunpack.c.l.b16 %v366
  %v438 = vunpack.c.h.b16 %v366
  %v439 = vunpack.c.l.b16 %v367
  %v440 = vunpack.c.l.b16 %v368
  %v441 = vunpack.c.h.b16 %v368
  %v442 = vunpack.c.l.b16 %v369
  %v443 = vunpack.c.l.b16 %v370
  %v444 = vunpack.c.h.b16 %v370
  %v445 = vunpack.c.l.b16 %v371
  %v446 = vunpack.c.l.b16 %v372
  %v447 = vunpack.c.h.b16 %v372
  %v448 = vunpack.c.l.b16 %v373
  %v449 = vunpack.c.l.b16 %v374
  %v450 = vunpack.c.h.b16 %v374
  %v451 = vunpack.c.l.b16 %v375
  %v452 = vunpack.c.l.b16 %v376
  %v453 = vunpack.c.h.b16 %v376
  %v454 = vunpack.c.l.b16 %v377
  %v455 = vunpack.c.l.b16 %v378
  %v456 = vunpack.c.h.b16 %v378
  %v457 = vunpack.c.l.b16 %v379
  %v458 = vunpack.c.l.b16 %v380
  %v459 = vunpack.c.h.b16 %v380
  %v460 = vunpack.c.l.b16 %v381
  %v461 = vunpack.c.l.b16 %v382
  %v462 = vunpack.c.h.b16 %v382
  %v463 = vunpack.c.l.b16 %v383
  %v464 = vunpack.c.l.b16 %v384
  %v465 = vunpack.c.h.b16 %v384
  %v466 = vunpack.c.l.b16 %v385
  %v467 = vunpack.c.l.b16 %v386
  %v468 = vunpack.c.h.b16 %v386
  %v469 = vunpack.c.l.b16 %v387
  %v470 = vunpack.c.l.b16 %v388
  %v471 = vunpack.c.h.b16 %v388
  %v472 = vunpack.c.l.b16 %v389
  %v473 = vunpack.c.l.b16 %v390
  %v474 = vunpack.c.h.b16 %v390
  %v475 = vunpack.c.l.b16 %v391
  %v476 = vunpack.c.l.b16 %v392
  %v477 = vunpack.c.h.b16 %v392
  %v478 = vunpack.c.l.b16 %v393
  %v479 = vunpack.c.l.b16 %v394
  %v480 = vunpack.c.h.b16 %v394
  %v481 = vunpack.c.l.b16 %v395
  %v482 = vpack.c.b16 %v437, %v434
  %v483 = vpack.c.b16 %v438, %v435
  %v484 = vpack.c.b16 %v439, %v436
  %v485 = vpack.c.b16 %v443, %v440
  %v486 = vpack.c.b16 %v444, %v441
  %v487 = vpack.c.b16 %v445, %v442
  %v488 = vpack.c.b16 %v449, %v446
  %v489 = vpack.c.b16 %v450, %v447
  %v490 = vpack.c.b16 %v451, %v448
  %v491 = vpack.c.b16 %v455, %v452
  %v492 = vpack.c.b16 %v456, %v453
  %v493 = vpack.c.b16 %v457, %v454
  %v494 = vpack.c.b16 %v461, %v458
  %v495 = vpack.c.b16 %v462, %v459
  %v496 = vpack.c.b16 %v463, %v460
  %v497 = vpack.c.b16 %v467, %v464
  %v498 = vpack.c.b16 %v468, %v465
  %v499 = vpack.c.b16 %v469, %v466
  %v500 = vpack.c.b16 %v473, %v470
  %v501 = vpack.c.b16 %v474, %v471
  %v502 = vpack.c.b16 %v475, %v472
  %v503 = vpack.c.b16 %v479, %v476
  %v504 = vpack.c.b16 %v480, %v477
  %v505 = vpack.c.b16 %v481, %v478
  %530 = vmatpush.bf16.msra.mxu0 %v503
  %531 = vmatpush.bf16.msra.mxu0 %v500
  %532 = vmatpush.bf16.msra.mxu0 %v497
  %533 = vmatpush.bf16.msra.mxu0 %v494
  %534 = vmatpush.bf16.msra.mxu0 %v491
  %535 = vmatpush.bf16.msra.mxu0 %v488
  %536 = vmatpush.bf16.msra.mxu0 %v485
  %537 = vmatpush.bf16.msra.mxu0 %v482
  %538 = vmatmul.bf16.gmra.mxu0 %v400
  %v539 = vpop.f32.mrf.mxu0
  %v540 = vadd.f32 0.0, %v539
  %v541 = vpop.f32.mrf.mxu0
  %v542 = vadd.f32 0.0, %v541
  %543 = vdwg.mxu0
  %544 = vmatpush.bf16.msra.mxu0 %v504
  %545 = vmatpush.bf16.msra.mxu0 %v501
  %546 = vmatpush.bf16.msra.mxu0 %v498
  %547 = vmatpush.bf16.msra.mxu0 %v495
  %548 = vmatpush.bf16.msra.mxu0 %v492
  %549 = vmatpush.bf16.msra.mxu0 %v489
  %550 = vmatpush.bf16.msra.mxu0 %v486
  %551 = vmatpush.bf16.msra.mxu0 %v483
  %552 = vmatmul.bf16.gmra.mxu0 %v400
  %v553 = vpop.f32.mrf.mxu0
  %v554 = vadd.f32 0.0, %v553
  %v555 = vpop.f32.mrf.mxu0
  %v556 = vadd.f32 0.0, %v555
  %557 = vdwg.mxu0
  %558 = vmatpush.bf16.msra.mxu0 %v505
  %559 = vmatpush.bf16.msra.mxu0 %v502
  %560 = vmatpush.bf16.msra.mxu0 %v499
  %561 = vmatpush.bf16.msra.mxu0 %v496
  %562 = vmatpush.bf16.msra.mxu0 %v493
  %563 = vmatpush.bf16.msra.mxu0 %v490
  %564 = vmatpush.bf16.msra.mxu0 %v487
  %565 = vmatpush.bf16.msra.mxu0 %v484
  %566 = vmatmul.bf16.gmra.mxu0 %v400
  %v567 = vpop.f32.mrf.mxu0
  %v568 = vadd.f32 0.0, %v567
  %v569 = vpop.f32.mrf.mxu0
  %v570 = vadd.f32 0.0, %v569
  %571 = vdwg.mxu0
  %v572 = vadd.f32 %v358, %v540
  %v573 = vadd.f32 %v361, %v542
  %v574 = vxor.u32 %v572, 2147483648
  %v575 = vxor.u32 %v573, 2147483648
  %v576 = vmul.f32 %v574, 1.442695
  %v577 = vpow.pop %v576
  %v578 = vmul.f32 %v575, 1.442695
  %v579 = vpow.pop %v578
  %v580 = vadd.f32 %v577, 1.0
  %v581 = vadd.f32 %v579, 1.0
  %v582 = vrcp.pop %v580
  %v583 = vmul.f32 %v580, %v582
  %v584 = vsub.f32 1.0, %v583
  %v585 = vmul.f32 %v582, %v584
  %v586 = vadd.f32 %v582, %v585
  %vm587 = vweird.f32 %v580
  %vm588 = vweird.f32 %v582
  %vm589 = vmor %vm587, %vm588
  %v590 = vsel %vm589, %v582, %v586
  %v591 = vand.u32 2147483647, %v580
  %vm592 = vcmp.eq.f32.partialorder %v591, 8.507059e+37
  %v593 = vand.u32 %v580, 2147483648
  %v594 = vor.u32 1.1754944e-38, %v593
  %v595 = vsel %vm592, %v594, %v590
  %v596 = vmul.f32 1.0, %v595
  %v597 = vrcp.pop %v581
  %v598 = vmul.f32 %v581, %v597
  %v599 = vsub.f32 1.0, %v598
  %v600 = vmul.f32 %v597, %v599
  %v601 = vadd.f32 %v597, %v600
  %vm602 = vweird.f32 %v581
  %vm603 = vweird.f32 %v597
  %vm604 = vmor %vm602, %vm603
  %v605 = vsel %vm604, %v597, %v601
  %v606 = vand.u32 2147483647, %v581
  %vm607 = vcmp.eq.f32.partialorder %v606, 8.507059e+37
  %v608 = vand.u32 %v581, 2147483648
  %v609 = vor.u32 1.1754944e-38, %v608
  %v610 = vsel %vm607, %v609, %v605
  %v611 = vmul.f32 1.0, %v610
  %v612 = vadd.f32 %v359, %v554
  %v613 = vadd.f32 %v362, %v556
  %v614 = vxor.u32 %v612, 2147483648
  %v615 = vxor.u32 %v613, 2147483648
  %v616 = vmul.f32 %v614, 1.442695
  %v617 = vpow.pop %v616
  %v618 = vmul.f32 %v615, 1.442695
  %v619 = vpow.pop %v618
  %v620 = vadd.f32 %v617, 1.0
  %v621 = vadd.f32 %v619, 1.0
  %v622 = vrcp.pop %v620
  %v623 = vmul.f32 %v620, %v622
  %v624 = vsub.f32 1.0, %v623
  %v625 = vmul.f32 %v622, %v624
  %v626 = vadd.f32 %v622, %v625
  %vm627 = vweird.f32 %v620
  %vm628 = vweird.f32 %v622
  %vm629 = vmor %vm627, %vm628
  %v630 = vsel %vm629, %v622, %v626
  %v631 = vand.u32 2147483647, %v620
  %vm632 = vcmp.eq.f32.partialorder %v631, 8.507059e+37
  %v633 = vand.u32 %v620, 2147483648
  %v634 = vor.u32 1.1754944e-38, %v633
  %v635 = vsel %vm632, %v634, %v630
  %v636 = vmul.f32 1.0, %v635
  %v637 = vrcp.pop %v621
  %v638 = vmul.f32 %v621, %v637
  %v639 = vsub.f32 1.0, %v638
  %v640 = vmul.f32 %v637, %v639
  %v641 = vadd.f32 %v637, %v640
  %vm642 = vweird.f32 %v621
  %vm643 = vweird.f32 %v637
  %vm644 = vmor %vm642, %vm643
  %v645 = vsel %vm644, %v637, %v641
  %v646 = vand.u32 2147483647, %v621
  %vm647 = vcmp.eq.f32.partialorder %v646, 8.507059e+37
  %v648 = vand.u32 %v621, 2147483648
  %v649 = vor.u32 1.1754944e-38, %v648
  %v650 = vsel %vm647, %v649, %v645
  %v651 = vmul.f32 1.0, %v650
  %v652 = vld [vmem:[%s3] sm:$0x1]
  %v654 = vperm.slane %v652, 0
  %v656 = vadd.f32 %v568, %v654
  %v657 = vadd.f32 %v570, %v654
  %v658 = vmul.f32 %v596, %v656
  %v659 = vmul.f32 %v611, %v657
  %v660 = vadd.f32 %v360, %v658
  %v661 = vadd.f32 %v363, %v659
  %v662 = vtanh.pop %v660
  %v663 = vtanh.pop %v661
  %v664 = vsub.f32 1.0, %v636
  %v665 = vsub.f32 1.0, %v651
  %v666 = vmul.f32 %v664, %v662
  %v667 = vmul.f32 %v665, %v663
  %v668 = vmul.f32 %v636, %v347
  %v669 = vmul.f32 %v651, %v348
  %v670 = vadd.f32 %v666, %v668
  %v671 = vadd.f32 %v667, %v669
  %s672 = sadd.s32 %s27, 1
  %p673 = scmp.lt.s32.totalorder %s672, 6
  %s674 = scalar_select %p673, 1, 0
  %v675 = vstv %s674
  %vm676 = vcmp.eq.s32.totalorder %v675, 1
  %v677 = vsel %vm676, %v670, %v347
  %v678 = vsel %vm676, %v671, %v348
  %v679 = vpack.c.bf16 %v677, %v677
  %v680 = vpack.c.bf16 %v678, %v678
  %s681 = scalar_lea.vmem %s4, 8
  %682 = vst [vmem:[%s681] sm:$0xf] %v679
  %683 = vst [vmem:[%s681 + $0x4] sm:$0xf] %v680
  %s684 = scalar_lea.vmem %s0, 48
  %v685 = vld [vmem:[%s684] sm:$0xff]
  %v686 = vld [vmem:[%s684 + $0x8] sm:$0xf]
  %v687 = vld [vmem:[%s684 + $0xc] sm:$0xff]
  %v688 = vld [vmem:[%s684 + $0x14] sm:$0xf]
  %v689 = vunpack.c.l.bf16 %v685
  %v690 = vunpack.c.h.bf16 %v685
  %v691 = vunpack.c.l.bf16 %v686
  %v692 = vunpack.c.l.bf16 %v687
  %v693 = vunpack.c.h.bf16 %v687
  %v694 = vunpack.c.l.bf16 %v688
  %v695 = vld [vmem:[%s2] sm:$0xff]
  %v696 = vld [vmem:[%s2 + $0x8] sm:$0xf]
  %v697 = vld [vmem:[%s2 + $0xc] sm:$0xff]
  %v698 = vld [vmem:[%s2 + $0x14] sm:$0xf]
  %v699 = vld [vmem:[%s2 + $0x18] sm:$0xff]
  %v700 = vld [vmem:[%s2 + $0x20] sm:$0xf]
  %v701 = vld [vmem:[%s2 + $0x24] sm:$0xff]
  %v702 = vld [vmem:[%s2 + $0x2c] sm:$0xf]
  %v703 = vld [vmem:[%s2 + $0x30] sm:$0xff]
  %v704 = vld [vmem:[%s2 + $0x38] sm:$0xf]
  %v705 = vld [vmem:[%s2 + $0x3c] sm:$0xff]
  %v706 = vld [vmem:[%s2 + $0x44] sm:$0xf]
  %v707 = vld [vmem:[%s2 + $0x48] sm:$0xff]
  %v708 = vld [vmem:[%s2 + $0x50] sm:$0xf]
  %v709 = vld [vmem:[%s2 + $0x54] sm:$0xff]
  %v710 = vld [vmem:[%s2 + $0x5c] sm:$0xf]
  %v711 = vld [vmem:[%s2 + $0x60] sm:$0xff]
  %v712 = vld [vmem:[%s2 + $0x68] sm:$0xf]
  %v713 = vld [vmem:[%s2 + $0x6c] sm:$0xff]
  %v714 = vld [vmem:[%s2 + $0x74] sm:$0xf]
  %v715 = vld [vmem:[%s2 + $0x78] sm:$0xff]
  %v716 = vld [vmem:[%s2 + $0x80] sm:$0xf]
  %v717 = vld [vmem:[%s2 + $0x84] sm:$0xff]
  %v718 = vld [vmem:[%s2 + $0x8c] sm:$0xf]
  %v719 = vld [vmem:[%s2 + $0x90] sm:$0xff]
  %v720 = vld [vmem:[%s2 + $0x98] sm:$0xf]
  %v721 = vld [vmem:[%s2 + $0x9c] sm:$0xff]
  %v722 = vld [vmem:[%s2 + $0xa4] sm:$0xf]
  %v723 = vld [vmem:[%s2 + $0xa8] sm:$0xff]
  %v724 = vld [vmem:[%s2 + $0xb0] sm:$0xf]
  %v725 = vld [vmem:[%s2 + $0xb4] sm:$0xff]
  %v726 = vld [vmem:[%s2 + $0xbc] sm:$0xf]
  %v729 = vunpack.c.l.b16 %v679
  %v730 = vunpack.c.l.b16 %v680
  %v731 = vpack.c.b16 %v730, %v729
  %v765 = vunpack.c.l.b16 %v695
  %v766 = vunpack.c.h.b16 %v695
  %v767 = vunpack.c.l.b16 %v696
  %v768 = vunpack.c.l.b16 %v697
  %v769 = vunpack.c.h.b16 %v697
  %v770 = vunpack.c.l.b16 %v698
  %v771 = vunpack.c.l.b16 %v699
  %v772 = vunpack.c.h.b16 %v699
  %v773 = vunpack.c.l.b16 %v700
  %v774 = vunpack.c.l.b16 %v701
  %v775 = vunpack.c.h.b16 %v701
  %v776 = vunpack.c.l.b16 %v702
  %v777 = vunpack.c.l.b16 %v703
  %v778 = vunpack.c.h.b16 %v703
  %v779 = vunpack.c.l.b16 %v704
  %v780 = vunpack.c.l.b16 %v705
  %v781 = vunpack.c.h.b16 %v705
  %v782 = vunpack.c.l.b16 %v706
  %v783 = vunpack.c.l.b16 %v707
  %v784 = vunpack.c.h.b16 %v707
  %v785 = vunpack.c.l.b16 %v708
  %v786 = vunpack.c.l.b16 %v709
  %v787 = vunpack.c.h.b16 %v709
  %v788 = vunpack.c.l.b16 %v710
  %v789 = vunpack.c.l.b16 %v711
  %v790 = vunpack.c.h.b16 %v711
  %v791 = vunpack.c.l.b16 %v712
  %v792 = vunpack.c.l.b16 %v713
  %v793 = vunpack.c.h.b16 %v713
  %v794 = vunpack.c.l.b16 %v714
  %v795 = vunpack.c.l.b16 %v715
  %v796 = vunpack.c.h.b16 %v715
  %v797 = vunpack.c.l.b16 %v716
  %v798 = vunpack.c.l.b16 %v717
  %v799 = vunpack.c.h.b16 %v717
  %v800 = vunpack.c.l.b16 %v718
  %v801 = vunpack.c.l.b16 %v719
  %v802 = vunpack.c.h.b16 %v719
  %v803 = vunpack.c.l.b16 %v720
  %v804 = vunpack.c.l.b16 %v721
  %v805 = vunpack.c.h.b16 %v721
  %v806 = vunpack.c.l.b16 %v722
  %v807 = vunpack.c.l.b16 %v723
  %v808 = vunpack.c.h.b16 %v723
  %v809 = vunpack.c.l.b16 %v724
  %v810 = vunpack.c.l.b16 %v725
  %v811 = vunpack.c.h.b16 %v725
  %v812 = vunpack.c.l.b16 %v726
  %v813 = vpack.c.b16 %v768, %v765
  %v814 = vpack.c.b16 %v769, %v766
  %v815 = vpack.c.b16 %v770, %v767
  %v816 = vpack.c.b16 %v774, %v771
  %v817 = vpack.c.b16 %v775, %v772
  %v818 = vpack.c.b16 %v776, %v773
  %v819 = vpack.c.b16 %v780, %v777
  %v820 = vpack.c.b16 %v781, %v778
  %v821 = vpack.c.b16 %v782, %v779
  %v822 = vpack.c.b16 %v786, %v783
  %v823 = vpack.c.b16 %v787, %v784
  %v824 = vpack.c.b16 %v788, %v785
  %v825 = vpack.c.b16 %v792, %v789
  %v826 = vpack.c.b16 %v793, %v790
  %v827 = vpack.c.b16 %v794, %v791
  %v828 = vpack.c.b16 %v798, %v795
  %v829 = vpack.c.b16 %v799, %v796
  %v830 = vpack.c.b16 %v800, %v797
  %v831 = vpack.c.b16 %v804, %v801
  %v832 = vpack.c.b16 %v805, %v802
  %v833 = vpack.c.b16 %v806, %v803
  %v834 = vpack.c.b16 %v810, %v807
  %v835 = vpack.c.b16 %v811, %v808
  %v836 = vpack.c.b16 %v812, %v809
  %861 = vmatpush.bf16.msra.mxu0 %v834
  %862 = vmatpush.bf16.msra.mxu0 %v831
  %863 = vmatpush.bf16.msra.mxu0 %v828
  %864 = vmatpush.bf16.msra.mxu0 %v825
  %865 = vmatpush.bf16.msra.mxu0 %v822
  %866 = vmatpush.bf16.msra.mxu0 %v819
  %867 = vmatpush.bf16.msra.mxu0 %v816
  %868 = vmatpush.bf16.msra.mxu0 %v813
  %869 = vmatmul.bf16.gmra.mxu0 %v731
  %v870 = vpop.f32.mrf.mxu0
  %v871 = vadd.f32 0.0, %v870
  %v872 = vpop.f32.mrf.mxu0
  %v873 = vadd.f32 0.0, %v872
  %874 = vdwg.mxu0
  %875 = vmatpush.bf16.msra.mxu0 %v835
  %876 = vmatpush.bf16.msra.mxu0 %v832
  %877 = vmatpush.bf16.msra.mxu0 %v829
  %878 = vmatpush.bf16.msra.mxu0 %v826
  %879 = vmatpush.bf16.msra.mxu0 %v823
  %880 = vmatpush.bf16.msra.mxu0 %v820
  %881 = vmatpush.bf16.msra.mxu0 %v817
  %882 = vmatpush.bf16.msra.mxu0 %v814
  %883 = vmatmul.bf16.gmra.mxu0 %v731
  %v884 = vpop.f32.mrf.mxu0
  %v885 = vadd.f32 0.0, %v884
  %v886 = vpop.f32.mrf.mxu0
  %v887 = vadd.f32 0.0, %v886
  %888 = vdwg.mxu0
  %889 = vmatpush.bf16.msra.mxu0 %v836
  %890 = vmatpush.bf16.msra.mxu0 %v833
  %891 = vmatpush.bf16.msra.mxu0 %v830
  %892 = vmatpush.bf16.msra.mxu0 %v827
  %893 = vmatpush.bf16.msra.mxu0 %v824
  %894 = vmatpush.bf16.msra.mxu0 %v821
  %895 = vmatpush.bf16.msra.mxu0 %v818
  %896 = vmatpush.bf16.msra.mxu0 %v815
  %897 = vmatmul.bf16.gmra.mxu0 %v731
  %v898 = vpop.f32.mrf.mxu0
  %v899 = vadd.f32 0.0, %v898
  %v900 = vpop.f32.mrf.mxu0
  %v901 = vadd.f32 0.0, %v900
  %902 = vdwg.mxu0
  %v903 = vadd.f32 %v689, %v871
  %v904 = vadd.f32 %v692, %v873
  %v905 = vxor.u32 %v903, 2147483648
  %v906 = vxor.u32 %v904, 2147483648
  %v907 = vmul.f32 %v905, 1.442695
  %v908 = vpow.pop %v907
  %v909 = vmul.f32 %v906, 1.442695
  %v910 = vpow.pop %v909
  %v911 = vadd.f32 %v908, 1.0
  %v912 = vadd.f32 %v910, 1.0
  %v913 = vrcp.pop %v911
  %v914 = vmul.f32 %v911, %v913
  %v915 = vsub.f32 1.0, %v914
  %v916 = vmul.f32 %v913, %v915
  %v917 = vadd.f32 %v913, %v916
  %vm918 = vweird.f32 %v911
  %vm919 = vweird.f32 %v913
  %vm920 = vmor %vm918, %vm919
  %v921 = vsel %vm920, %v913, %v917
  %v922 = vand.u32 2147483647, %v911
  %vm923 = vcmp.eq.f32.partialorder %v922, 8.507059e+37
  %v924 = vand.u32 %v911, 2147483648
  %v925 = vor.u32 1.1754944e-38, %v924
  %v926 = vsel %vm923, %v925, %v921
  %v927 = vmul.f32 1.0, %v926
  %v928 = vrcp.pop %v912
  %v929 = vmul.f32 %v912, %v928
  %v930 = vsub.f32 1.0, %v929
  %v931 = vmul.f32 %v928, %v930
  %v932 = vadd.f32 %v928, %v931
  %vm933 = vweird.f32 %v912
  %vm934 = vweird.f32 %v928
  %vm935 = vmor %vm933, %vm934
  %v936 = vsel %vm935, %v928, %v932
  %v937 = vand.u32 2147483647, %v912
  %vm938 = vcmp.eq.f32.partialorder %v937, 8.507059e+37
  %v939 = vand.u32 %v912, 2147483648
  %v940 = vor.u32 1.1754944e-38, %v939
  %v941 = vsel %vm938, %v940, %v936
  %v942 = vmul.f32 1.0, %v941
  %v943 = vadd.f32 %v690, %v885
  %v944 = vadd.f32 %v693, %v887
  %v945 = vxor.u32 %v943, 2147483648
  %v946 = vxor.u32 %v944, 2147483648
  %v947 = vmul.f32 %v945, 1.442695
  %v948 = vpow.pop %v947
  %v949 = vmul.f32 %v946, 1.442695
  %v950 = vpow.pop %v949
  %v951 = vadd.f32 %v948, 1.0
  %v952 = vadd.f32 %v950, 1.0
  %v953 = vrcp.pop %v951
  %v954 = vmul.f32 %v951, %v953
  %v955 = vsub.f32 1.0, %v954
  %v956 = vmul.f32 %v953, %v955
  %v957 = vadd.f32 %v953, %v956
  %vm958 = vweird.f32 %v951
  %vm959 = vweird.f32 %v953
  %vm960 = vmor %vm958, %vm959
  %v961 = vsel %vm960, %v953, %v957
  %v962 = vand.u32 2147483647, %v951
  %vm963 = vcmp.eq.f32.partialorder %v962, 8.507059e+37
  %v964 = vand.u32 %v951, 2147483648
  %v965 = vor.u32 1.1754944e-38, %v964
  %v966 = vsel %vm963, %v965, %v961
  %v967 = vmul.f32 1.0, %v966
  %v968 = vrcp.pop %v952
  %v969 = vmul.f32 %v952, %v968
  %v970 = vsub.f32 1.0, %v969
  %v971 = vmul.f32 %v968, %v970
  %v972 = vadd.f32 %v968, %v971
  %vm973 = vweird.f32 %v952
  %vm974 = vweird.f32 %v968
  %vm975 = vmor %vm973, %vm974
  %v976 = vsel %vm975, %v968, %v972
  %v977 = vand.u32 2147483647, %v952
  %vm978 = vcmp.eq.f32.partialorder %v977, 8.507059e+37
  %v979 = vand.u32 %v952, 2147483648
  %v980 = vor.u32 1.1754944e-38, %v979
  %v981 = vsel %vm978, %v980, %v976
  %v982 = vmul.f32 1.0, %v981
  %v983 = vld [vmem:[%s3] sm:$0x1]
  %v985 = vperm.slane %v983, 0
  %v987 = vadd.f32 %v899, %v985
  %v988 = vadd.f32 %v901, %v985
  %v989 = vmul.f32 %v927, %v987
  %v990 = vmul.f32 %v942, %v988
  %v991 = vadd.f32 %v691, %v989
  %v992 = vadd.f32 %v694, %v990
  %v993 = vtanh.pop %v991
  %v994 = vtanh.pop %v992
  %v995 = vsub.f32 1.0, %v967
  %v996 = vsub.f32 1.0, %v982
  %v997 = vmul.f32 %v995, %v993
  %v998 = vmul.f32 %v996, %v994
  %v999 = vmul.f32 %v967, %v677
  %v1000 = vmul.f32 %v982, %v678
  %v1001 = vadd.f32 %v997, %v999
  %v1002 = vadd.f32 %v998, %v1000
  %s1003 = sadd.s32 %s27, 2
  %p1004 = scmp.lt.s32.totalorder %s1003, 6
  %s1005 = scalar_select %p1004, 1, 0
  %v1006 = vstv %s1005
  %vm1007 = vcmp.eq.s32.totalorder %v1006, 1
  %v1008 = vsel %vm1007, %v1001, %v677
  %v1009 = vsel %vm1007, %v1002, %v678
  %v1010 = vpack.c.bf16 %v1008, %v1008
  %v1011 = vpack.c.bf16 %v1009, %v1009
  %s1012 = scalar_lea.vmem %s4, 16
  %1013 = vst [vmem:[%s1012] sm:$0xf] %v1010
  %1014 = vst [vmem:[%s1012 + $0x4] sm:$0xf] %v1011
  %s1015 = scalar_lea.vmem %s0, 72
  %v1016 = vld [vmem:[%s1015] sm:$0xff]
  %v1017 = vld [vmem:[%s1015 + $0x8] sm:$0xf]
  %v1018 = vld [vmem:[%s1015 + $0xc] sm:$0xff]
  %v1019 = vld [vmem:[%s1015 + $0x14] sm:$0xf]
  %v1020 = vunpack.c.l.bf16 %v1016
  %v1021 = vunpack.c.h.bf16 %v1016
  %v1022 = vunpack.c.l.bf16 %v1017
  %v1023 = vunpack.c.l.bf16 %v1018
  %v1024 = vunpack.c.h.bf16 %v1018
  %v1025 = vunpack.c.l.bf16 %v1019
  %v1026 = vld [vmem:[%s2] sm:$0xff]
  %v1027 = vld [vmem:[%s2 + $0x8] sm:$0xf]
  %v1028 = vld [vmem:[%s2 + $0xc] sm:$0xff]
  %v1029 = vld [vmem:[%s2 + $0x14] sm:$0xf]
  %v1030 = vld [vmem:[%s2 + $0x18] sm:$0xff]
  %v1031 = vld [vmem:[%s2 + $0x20] sm:$0xf]
  %v1032 = vld [vmem:[%s2 + $0x24] sm:$0xff]
  %v1033 = vld [vmem:[%s2 + $0x2c] sm:$0xf]
  %v1034 = vld [vmem:[%s2 + $0x30] sm:$0xff]
  %v1035 = vld [vmem:[%s2 + $0x38] sm:$0xf]
  %v1036 = vld [vmem:[%s2 + $0x3c] sm:$0xff]
  %v1037 = vld [vmem:[%s2 + $0x44] sm:$0xf]
  %v1038 = vld [vmem:[%s2 + $0x48] sm:$0xff]
  %v1039 = vld [vmem:[%s2 + $0x50] sm:$0xf]
  %v1040 = vld [vmem:[%s2 + $0x54] sm:$0xff]
  %v1041 = vld [vmem:[%s2 + $0x5c] sm:$0xf]
  %v1042 = vld [vmem:[%s2 + $0x60] sm:$0xff]
  %v1043 = vld [vmem:[%s2 + $0x68] sm:$0xf]
  %v1044 = vld [vmem:[%s2 + $0x6c] sm:$0xff]
  %v1045 = vld [vmem:[%s2 + $0x74] sm:$0xf]
  %v1046 = vld [vmem:[%s2 + $0x78] sm:$0xff]
  %v1047 = vld [vmem:[%s2 + $0x80] sm:$0xf]
  %v1048 = vld [vmem:[%s2 + $0x84] sm:$0xff]
  %v1049 = vld [vmem:[%s2 + $0x8c] sm:$0xf]
  %v1050 = vld [vmem:[%s2 + $0x90] sm:$0xff]
  %v1051 = vld [vmem:[%s2 + $0x98] sm:$0xf]
  %v1052 = vld [vmem:[%s2 + $0x9c] sm:$0xff]
  %v1053 = vld [vmem:[%s2 + $0xa4] sm:$0xf]
  %v1054 = vld [vmem:[%s2 + $0xa8] sm:$0xff]
  %v1055 = vld [vmem:[%s2 + $0xb0] sm:$0xf]
  %v1056 = vld [vmem:[%s2 + $0xb4] sm:$0xff]
  %v1057 = vld [vmem:[%s2 + $0xbc] sm:$0xf]
  %v1060 = vunpack.c.l.b16 %v1010
  %v1061 = vunpack.c.l.b16 %v1011
  %v1062 = vpack.c.b16 %v1061, %v1060
  %v1096 = vunpack.c.l.b16 %v1026
  %v1097 = vunpack.c.h.b16 %v1026
  %v1098 = vunpack.c.l.b16 %v1027
  %v1099 = vunpack.c.l.b16 %v1028
  %v1100 = vunpack.c.h.b16 %v1028
  %v1101 = vunpack.c.l.b16 %v1029
  %v1102 = vunpack.c.l.b16 %v1030
  %v1103 = vunpack.c.h.b16 %v1030
  %v1104 = vunpack.c.l.b16 %v1031
  %v1105 = vunpack.c.l.b16 %v1032
  %v1106 = vunpack.c.h.b16 %v1032
  %v1107 = vunpack.c.l.b16 %v1033
  %v1108 = vunpack.c.l.b16 %v1034
  %v1109 = vunpack.c.h.b16 %v1034
  %v1110 = vunpack.c.l.b16 %v1035
  %v1111 = vunpack.c.l.b16 %v1036
  %v1112 = vunpack.c.h.b16 %v1036
  %v1113 = vunpack.c.l.b16 %v1037
  %v1114 = vunpack.c.l.b16 %v1038
  %v1115 = vunpack.c.h.b16 %v1038
  %v1116 = vunpack.c.l.b16 %v1039
  %v1117 = vunpack.c.l.b16 %v1040
  %v1118 = vunpack.c.h.b16 %v1040
  %v1119 = vunpack.c.l.b16 %v1041
  %v1120 = vunpack.c.l.b16 %v1042
  %v1121 = vunpack.c.h.b16 %v1042
  %v1122 = vunpack.c.l.b16 %v1043
  %v1123 = vunpack.c.l.b16 %v1044
  %v1124 = vunpack.c.h.b16 %v1044
  %v1125 = vunpack.c.l.b16 %v1045
  %v1126 = vunpack.c.l.b16 %v1046
  %v1127 = vunpack.c.h.b16 %v1046
  %v1128 = vunpack.c.l.b16 %v1047
  %v1129 = vunpack.c.l.b16 %v1048
  %v1130 = vunpack.c.h.b16 %v1048
  %v1131 = vunpack.c.l.b16 %v1049
  %v1132 = vunpack.c.l.b16 %v1050
  %v1133 = vunpack.c.h.b16 %v1050
  %v1134 = vunpack.c.l.b16 %v1051
  %v1135 = vunpack.c.l.b16 %v1052
  %v1136 = vunpack.c.h.b16 %v1052
  %v1137 = vunpack.c.l.b16 %v1053
  %v1138 = vunpack.c.l.b16 %v1054
  %v1139 = vunpack.c.h.b16 %v1054
  %v1140 = vunpack.c.l.b16 %v1055
  %v1141 = vunpack.c.l.b16 %v1056
  %v1142 = vunpack.c.h.b16 %v1056
  %v1143 = vunpack.c.l.b16 %v1057
  %v1144 = vpack.c.b16 %v1099, %v1096
  %v1145 = vpack.c.b16 %v1100, %v1097
  %v1146 = vpack.c.b16 %v1101, %v1098
  %v1147 = vpack.c.b16 %v1105, %v1102
  %v1148 = vpack.c.b16 %v1106, %v1103
  %v1149 = vpack.c.b16 %v1107, %v1104
  %v1150 = vpack.c.b16 %v1111, %v1108
  %v1151 = vpack.c.b16 %v1112, %v1109
  %v1152 = vpack.c.b16 %v1113, %v1110
  %v1153 = vpack.c.b16 %v1117, %v1114
  %v1154 = vpack.c.b16 %v1118, %v1115
  %v1155 = vpack.c.b16 %v1119, %v1116
  %v1156 = vpack.c.b16 %v1123, %v1120
  %v1157 = vpack.c.b16 %v1124, %v1121
  %v1158 = vpack.c.b16 %v1125, %v1122
  %v1159 = vpack.c.b16 %v1129, %v1126
  %v1160 = vpack.c.b16 %v1130, %v1127
  %v1161 = vpack.c.b16 %v1131, %v1128
  %v1162 = vpack.c.b16 %v1135, %v1132
  %v1163 = vpack.c.b16 %v1136, %v1133
  %v1164 = vpack.c.b16 %v1137, %v1134
  %v1165 = vpack.c.b16 %v1141, %v1138
  %v1166 = vpack.c.b16 %v1142, %v1139
  %v1167 = vpack.c.b16 %v1143, %v1140
  %1192 = vmatpush.bf16.msra.mxu0 %v1165
  %1193 = vmatpush.bf16.msra.mxu0 %v1162
  %1194 = vmatpush.bf16.msra.mxu0 %v1159
  %1195 = vmatpush.bf16.msra.mxu0 %v1156
  %1196 = vmatpush.bf16.msra.mxu0 %v1153
  %1197 = vmatpush.bf16.msra.mxu0 %v1150
  %1198 = vmatpush.bf16.msra.mxu0 %v1147
  %1199 = vmatpush.bf16.msra.mxu0 %v1144
  %1200 = vmatmul.bf16.gmra.mxu0 %v1062
  %v1201 = vpop.f32.mrf.mxu0
  %v1202 = vadd.f32 0.0, %v1201
  %v1203 = vpop.f32.mrf.mxu0
  %v1204 = vadd.f32 0.0, %v1203
  %1205 = vdwg.mxu0
  %1206 = vmatpush.bf16.msra.mxu0 %v1166
  %1207 = vmatpush.bf16.msra.mxu0 %v1163
  %1208 = vmatpush.bf16.msra.mxu0 %v1160
  %1209 = vmatpush.bf16.msra.mxu0 %v1157
  %1210 = vmatpush.bf16.msra.mxu0 %v1154
  %1211 = vmatpush.bf16.msra.mxu0 %v1151
  %1212 = vmatpush.bf16.msra.mxu0 %v1148
  %1213 = vmatpush.bf16.msra.mxu0 %v1145
  %1214 = vmatmul.bf16.gmra.mxu0 %v1062
  %v1215 = vpop.f32.mrf.mxu0
  %v1216 = vadd.f32 0.0, %v1215
  %v1217 = vpop.f32.mrf.mxu0
  %v1218 = vadd.f32 0.0, %v1217
  %1219 = vdwg.mxu0
  %1220 = vmatpush.bf16.msra.mxu0 %v1167
  %1221 = vmatpush.bf16.msra.mxu0 %v1164
  %1222 = vmatpush.bf16.msra.mxu0 %v1161
  %1223 = vmatpush.bf16.msra.mxu0 %v1158
  %1224 = vmatpush.bf16.msra.mxu0 %v1155
  %1225 = vmatpush.bf16.msra.mxu0 %v1152
  %1226 = vmatpush.bf16.msra.mxu0 %v1149
  %1227 = vmatpush.bf16.msra.mxu0 %v1146
  %1228 = vmatmul.bf16.gmra.mxu0 %v1062
  %v1229 = vpop.f32.mrf.mxu0
  %v1230 = vadd.f32 0.0, %v1229
  %v1231 = vpop.f32.mrf.mxu0
  %v1232 = vadd.f32 0.0, %v1231
  %1233 = vdwg.mxu0
  %v1234 = vadd.f32 %v1020, %v1202
  %v1235 = vadd.f32 %v1023, %v1204
  %v1236 = vxor.u32 %v1234, 2147483648
  %v1237 = vxor.u32 %v1235, 2147483648
  %v1238 = vmul.f32 %v1236, 1.442695
  %v1239 = vpow.pop %v1238
  %v1240 = vmul.f32 %v1237, 1.442695
  %v1241 = vpow.pop %v1240
  %v1242 = vadd.f32 %v1239, 1.0
  %v1243 = vadd.f32 %v1241, 1.0
  %v1244 = vrcp.pop %v1242
  %v1245 = vmul.f32 %v1242, %v1244
  %v1246 = vsub.f32 1.0, %v1245
  %v1247 = vmul.f32 %v1244, %v1246
  %v1248 = vadd.f32 %v1244, %v1247
  %vm1249 = vweird.f32 %v1242
  %vm1250 = vweird.f32 %v1244
  %vm1251 = vmor %vm1249, %vm1250
  %v1252 = vsel %vm1251, %v1244, %v1248
  %v1253 = vand.u32 2147483647, %v1242
  %vm1254 = vcmp.eq.f32.partialorder %v1253, 8.507059e+37
  %v1255 = vand.u32 %v1242, 2147483648
  %v1256 = vor.u32 1.1754944e-38, %v1255
  %v1257 = vsel %vm1254, %v1256, %v1252
  %v1258 = vmul.f32 1.0, %v1257
  %v1259 = vrcp.pop %v1243
  %v1260 = vmul.f32 %v1243, %v1259
  %v1261 = vsub.f32 1.0, %v1260
  %v1262 = vmul.f32 %v1259, %v1261
  %v1263 = vadd.f32 %v1259, %v1262
  %vm1264 = vweird.f32 %v1243
  %vm1265 = vweird.f32 %v1259
  %vm1266 = vmor %vm1264, %vm1265
  %v1267 = vsel %vm1266, %v1259, %v1263
  %v1268 = vand.u32 2147483647, %v1243
  %vm1269 = vcmp.eq.f32.partialorder %v1268, 8.507059e+37
  %v1270 = vand.u32 %v1243, 2147483648
  %v1271 = vor.u32 1.1754944e-38, %v1270
  %v1272 = vsel %vm1269, %v1271, %v1267
  %v1273 = vmul.f32 1.0, %v1272
  %v1274 = vadd.f32 %v1021, %v1216
  %v1275 = vadd.f32 %v1024, %v1218
  %v1276 = vxor.u32 %v1274, 2147483648
  %v1277 = vxor.u32 %v1275, 2147483648
  %v1278 = vmul.f32 %v1276, 1.442695
  %v1279 = vpow.pop %v1278
  %v1280 = vmul.f32 %v1277, 1.442695
  %v1281 = vpow.pop %v1280
  %v1282 = vadd.f32 %v1279, 1.0
  %v1283 = vadd.f32 %v1281, 1.0
  %v1284 = vrcp.pop %v1282
  %v1285 = vmul.f32 %v1282, %v1284
  %v1286 = vsub.f32 1.0, %v1285
  %v1287 = vmul.f32 %v1284, %v1286
  %v1288 = vadd.f32 %v1284, %v1287
  %vm1289 = vweird.f32 %v1282
  %vm1290 = vweird.f32 %v1284
  %vm1291 = vmor %vm1289, %vm1290
  %v1292 = vsel %vm1291, %v1284, %v1288
  %v1293 = vand.u32 2147483647, %v1282
  %vm1294 = vcmp.eq.f32.partialorder %v1293, 8.507059e+37
  %v1295 = vand.u32 %v1282, 2147483648
  %v1296 = vor.u32 1.1754944e-38, %v1295
  %v1297 = vsel %vm1294, %v1296, %v1292
  %v1298 = vmul.f32 1.0, %v1297
  %v1299 = vrcp.pop %v1283
  %v1300 = vmul.f32 %v1283, %v1299
  %v1301 = vsub.f32 1.0, %v1300
  %v1302 = vmul.f32 %v1299, %v1301
  %v1303 = vadd.f32 %v1299, %v1302
  %vm1304 = vweird.f32 %v1283
  %vm1305 = vweird.f32 %v1299
  %vm1306 = vmor %vm1304, %vm1305
  %v1307 = vsel %vm1306, %v1299, %v1303
  %v1308 = vand.u32 2147483647, %v1283
  %vm1309 = vcmp.eq.f32.partialorder %v1308, 8.507059e+37
  %v1310 = vand.u32 %v1283, 2147483648
  %v1311 = vor.u32 1.1754944e-38, %v1310
  %v1312 = vsel %vm1309, %v1311, %v1307
  %v1313 = vmul.f32 1.0, %v1312
  %v1314 = vld [vmem:[%s3] sm:$0x1]
  %v1316 = vperm.slane %v1314, 0
  %v1318 = vadd.f32 %v1230, %v1316
  %v1319 = vadd.f32 %v1232, %v1316
  %v1320 = vmul.f32 %v1258, %v1318
  %v1321 = vmul.f32 %v1273, %v1319
  %v1322 = vadd.f32 %v1022, %v1320
  %v1323 = vadd.f32 %v1025, %v1321
  %v1324 = vtanh.pop %v1322
  %v1325 = vtanh.pop %v1323
  %v1326 = vsub.f32 1.0, %v1298
  %v1327 = vsub.f32 1.0, %v1313
  %v1328 = vmul.f32 %v1326, %v1324
  %v1329 = vmul.f32 %v1327, %v1325
  %v1330 = vmul.f32 %v1298, %v1008
  %v1331 = vmul.f32 %v1313, %v1009
  %v1332 = vadd.f32 %v1328, %v1330
  %v1333 = vadd.f32 %v1329, %v1331
  %s1334 = sadd.s32 %s27, 3
  %p1335 = scmp.lt.s32.totalorder %s1334, 6
  %s1336 = scalar_select %p1335, 1, 0
  %v1337 = vstv %s1336
  %vm1338 = vcmp.eq.s32.totalorder %v1337, 1
  %v1339 = vsel %vm1338, %v1332, %v1008
  %v1340 = vsel %vm1338, %v1333, %v1009
  %v1341 = vpack.c.bf16 %v1339, %v1339
  %v1342 = vpack.c.bf16 %v1340, %v1340
  %s1343 = scalar_lea.vmem %s4, 24
  %1344 = vst [vmem:[%s1343] sm:$0xf] %v1341
  %1345 = vst [vmem:[%s1343 + $0x4] sm:$0xf] %v1342
  %s1346 = scalar_lea.vmem %s0, 96
  %v1347 = vld [vmem:[%s1346] sm:$0xff]
  %v1348 = vld [vmem:[%s1346 + $0x8] sm:$0xf]
  %v1349 = vld [vmem:[%s1346 + $0xc] sm:$0xff]
  %v1350 = vld [vmem:[%s1346 + $0x14] sm:$0xf]
  %v1351 = vunpack.c.l.bf16 %v1347
  %v1352 = vunpack.c.h.bf16 %v1347
  %v1353 = vunpack.c.l.bf16 %v1348
  %v1354 = vunpack.c.l.bf16 %v1349
  %v1355 = vunpack.c.h.bf16 %v1349
  %v1356 = vunpack.c.l.bf16 %v1350
  %v1357 = vld [vmem:[%s2] sm:$0xff]
  %v1358 = vld [vmem:[%s2 + $0x8] sm:$0xf]
  %v1359 = vld [vmem:[%s2 + $0xc] sm:$0xff]
  %v1360 = vld [vmem:[%s2 + $0x14] sm:$0xf]
  %v1361 = vld [vmem:[%s2 + $0x18] sm:$0xff]
  %v1362 = vld [vmem:[%s2 + $0x20] sm:$0xf]
  %v1363 = vld [vmem:[%s2 + $0x24] sm:$0xff]
  %v1364 = vld [vmem:[%s2 + $0x2c] sm:$0xf]
  %v1365 = vld [vmem:[%s2 + $0x30] sm:$0xff]
  %v1366 = vld [vmem:[%s2 + $0x38] sm:$0xf]
  %v1367 = vld [vmem:[%s2 + $0x3c] sm:$0xff]
  %v1368 = vld [vmem:[%s2 + $0x44] sm:$0xf]
  %v1369 = vld [vmem:[%s2 + $0x48] sm:$0xff]
  %v1370 = vld [vmem:[%s2 + $0x50] sm:$0xf]
  %v1371 = vld [vmem:[%s2 + $0x54] sm:$0xff]
  %v1372 = vld [vmem:[%s2 + $0x5c] sm:$0xf]
  %v1373 = vld [vmem:[%s2 + $0x60] sm:$0xff]
  %v1374 = vld [vmem:[%s2 + $0x68] sm:$0xf]
  %v1375 = vld [vmem:[%s2 + $0x6c] sm:$0xff]
  %v1376 = vld [vmem:[%s2 + $0x74] sm:$0xf]
  %v1377 = vld [vmem:[%s2 + $0x78] sm:$0xff]
  %v1378 = vld [vmem:[%s2 + $0x80] sm:$0xf]
  %v1379 = vld [vmem:[%s2 + $0x84] sm:$0xff]
  %v1380 = vld [vmem:[%s2 + $0x8c] sm:$0xf]
  %v1381 = vld [vmem:[%s2 + $0x90] sm:$0xff]
  %v1382 = vld [vmem:[%s2 + $0x98] sm:$0xf]
  %v1383 = vld [vmem:[%s2 + $0x9c] sm:$0xff]
  %v1384 = vld [vmem:[%s2 + $0xa4] sm:$0xf]
  %v1385 = vld [vmem:[%s2 + $0xa8] sm:$0xff]
  %v1386 = vld [vmem:[%s2 + $0xb0] sm:$0xf]
  %v1387 = vld [vmem:[%s2 + $0xb4] sm:$0xff]
  %v1388 = vld [vmem:[%s2 + $0xbc] sm:$0xf]
  %v1391 = vunpack.c.l.b16 %v1341
  %v1392 = vunpack.c.l.b16 %v1342
  %v1393 = vpack.c.b16 %v1392, %v1391
  %v1427 = vunpack.c.l.b16 %v1357
  %v1428 = vunpack.c.h.b16 %v1357
  %v1429 = vunpack.c.l.b16 %v1358
  %v1430 = vunpack.c.l.b16 %v1359
  %v1431 = vunpack.c.h.b16 %v1359
  %v1432 = vunpack.c.l.b16 %v1360
  %v1433 = vunpack.c.l.b16 %v1361
  %v1434 = vunpack.c.h.b16 %v1361
  %v1435 = vunpack.c.l.b16 %v1362
  %v1436 = vunpack.c.l.b16 %v1363
  %v1437 = vunpack.c.h.b16 %v1363
  %v1438 = vunpack.c.l.b16 %v1364
  %v1439 = vunpack.c.l.b16 %v1365
  %v1440 = vunpack.c.h.b16 %v1365
  %v1441 = vunpack.c.l.b16 %v1366
  %v1442 = vunpack.c.l.b16 %v1367
  %v1443 = vunpack.c.h.b16 %v1367
  %v1444 = vunpack.c.l.b16 %v1368
  %v1445 = vunpack.c.l.b16 %v1369
  %v1446 = vunpack.c.h.b16 %v1369
  %v1447 = vunpack.c.l.b16 %v1370
  %v1448 = vunpack.c.l.b16 %v1371
  %v1449 = vunpack.c.h.b16 %v1371
  %v1450 = vunpack.c.l.b16 %v1372
  %v1451 = vunpack.c.l.b16 %v1373
  %v1452 = vunpack.c.h.b16 %v1373
  %v1453 = vunpack.c.l.b16 %v1374
  %v1454 = vunpack.c.l.b16 %v1375
  %v1455 = vunpack.c.h.b16 %v1375
  %v1456 = vunpack.c.l.b16 %v1376
  %v1457 = vunpack.c.l.b16 %v1377
  %v1458 = vunpack.c.h.b16 %v1377
  %v1459 = vunpack.c.l.b16 %v1378
  %v1460 = vunpack.c.l.b16 %v1379
  %v1461 = vunpack.c.h.b16 %v1379
  %v1462 = vunpack.c.l.b16 %v1380
  %v1463 = vunpack.c.l.b16 %v1381
  %v1464 = vunpack.c.h.b16 %v1381
  %v1465 = vunpack.c.l.b16 %v1382
  %v1466 = vunpack.c.l.b16 %v1383
  %v1467 = vunpack.c.h.b16 %v1383
  %v1468 = vunpack.c.l.b16 %v1384
  %v1469 = vunpack.c.l.b16 %v1385
  %v1470 = vunpack.c.h.b16 %v1385
  %v1471 = vunpack.c.l.b16 %v1386
  %v1472 = vunpack.c.l.b16 %v1387
  %v1473 = vunpack.c.h.b16 %v1387
  %v1474 = vunpack.c.l.b16 %v1388
  %v1475 = vpack.c.b16 %v1430, %v1427
  %v1476 = vpack.c.b16 %v1431, %v1428
  %v1477 = vpack.c.b16 %v1432, %v1429
  %v1478 = vpack.c.b16 %v1436, %v1433
  %v1479 = vpack.c.b16 %v1437, %v1434
  %v1480 = vpack.c.b16 %v1438, %v1435
  %v1481 = vpack.c.b16 %v1442, %v1439
  %v1482 = vpack.c.b16 %v1443, %v1440
  %v1483 = vpack.c.b16 %v1444, %v1441
  %v1484 = vpack.c.b16 %v1448, %v1445
  %v1485 = vpack.c.b16 %v1449, %v1446
  %v1486 = vpack.c.b16 %v1450, %v1447
  %v1487 = vpack.c.b16 %v1454, %v1451
  %v1488 = vpack.c.b16 %v1455, %v1452
  %v1489 = vpack.c.b16 %v1456, %v1453
  %v1490 = vpack.c.b16 %v1460, %v1457
  %v1491 = vpack.c.b16 %v1461, %v1458
  %v1492 = vpack.c.b16 %v1462, %v1459
  %v1493 = vpack.c.b16 %v1466, %v1463
  %v1494 = vpack.c.b16 %v1467, %v1464
  %v1495 = vpack.c.b16 %v1468, %v1465
  %v1496 = vpack.c.b16 %v1472, %v1469
  %v1497 = vpack.c.b16 %v1473, %v1470
  %v1498 = vpack.c.b16 %v1474, %v1471
  %1523 = vmatpush.bf16.msra.mxu0 %v1496
  %1524 = vmatpush.bf16.msra.mxu0 %v1493
  %1525 = vmatpush.bf16.msra.mxu0 %v1490
  %1526 = vmatpush.bf16.msra.mxu0 %v1487
  %1527 = vmatpush.bf16.msra.mxu0 %v1484
  %1528 = vmatpush.bf16.msra.mxu0 %v1481
  %1529 = vmatpush.bf16.msra.mxu0 %v1478
  %1530 = vmatpush.bf16.msra.mxu0 %v1475
  %1531 = vmatmul.bf16.gmra.mxu0 %v1393
  %v1532 = vpop.f32.mrf.mxu0
  %v1533 = vadd.f32 0.0, %v1532
  %v1534 = vpop.f32.mrf.mxu0
  %v1535 = vadd.f32 0.0, %v1534
  %1536 = vdwg.mxu0
  %1537 = vmatpush.bf16.msra.mxu0 %v1497
  %1538 = vmatpush.bf16.msra.mxu0 %v1494
  %1539 = vmatpush.bf16.msra.mxu0 %v1491
  %1540 = vmatpush.bf16.msra.mxu0 %v1488
  %1541 = vmatpush.bf16.msra.mxu0 %v1485
  %1542 = vmatpush.bf16.msra.mxu0 %v1482
  %1543 = vmatpush.bf16.msra.mxu0 %v1479
  %1544 = vmatpush.bf16.msra.mxu0 %v1476
  %1545 = vmatmul.bf16.gmra.mxu0 %v1393
  %v1546 = vpop.f32.mrf.mxu0
  %v1547 = vadd.f32 0.0, %v1546
  %v1548 = vpop.f32.mrf.mxu0
  %v1549 = vadd.f32 0.0, %v1548
  %1550 = vdwg.mxu0
  %1551 = vmatpush.bf16.msra.mxu0 %v1498
  %1552 = vmatpush.bf16.msra.mxu0 %v1495
  %1553 = vmatpush.bf16.msra.mxu0 %v1492
  %1554 = vmatpush.bf16.msra.mxu0 %v1489
  %1555 = vmatpush.bf16.msra.mxu0 %v1486
  %1556 = vmatpush.bf16.msra.mxu0 %v1483
  %1557 = vmatpush.bf16.msra.mxu0 %v1480
  %1558 = vmatpush.bf16.msra.mxu0 %v1477
  %1559 = vmatmul.bf16.gmra.mxu0 %v1393
  %v1560 = vpop.f32.mrf.mxu0
  %v1561 = vadd.f32 0.0, %v1560
  %v1562 = vpop.f32.mrf.mxu0
  %v1563 = vadd.f32 0.0, %v1562
  %1564 = vdwg.mxu0
  %v1565 = vadd.f32 %v1351, %v1533
  %v1566 = vadd.f32 %v1354, %v1535
  %v1567 = vxor.u32 %v1565, 2147483648
  %v1568 = vxor.u32 %v1566, 2147483648
  %v1569 = vmul.f32 %v1567, 1.442695
  %v1570 = vpow.pop %v1569
  %v1571 = vmul.f32 %v1568, 1.442695
  %v1572 = vpow.pop %v1571
  %v1573 = vadd.f32 %v1570, 1.0
  %v1574 = vadd.f32 %v1572, 1.0
  %v1575 = vrcp.pop %v1573
  %v1576 = vmul.f32 %v1573, %v1575
  %v1577 = vsub.f32 1.0, %v1576
  %v1578 = vmul.f32 %v1575, %v1577
  %v1579 = vadd.f32 %v1575, %v1578
  %vm1580 = vweird.f32 %v1573
  %vm1581 = vweird.f32 %v1575
  %vm1582 = vmor %vm1580, %vm1581
  %v1583 = vsel %vm1582, %v1575, %v1579
  %v1584 = vand.u32 2147483647, %v1573
  %vm1585 = vcmp.eq.f32.partialorder %v1584, 8.507059e+37
  %v1586 = vand.u32 %v1573, 2147483648
  %v1587 = vor.u32 1.1754944e-38, %v1586
  %v1588 = vsel %vm1585, %v1587, %v1583
  %v1589 = vmul.f32 1.0, %v1588
  %v1590 = vrcp.pop %v1574
  %v1591 = vmul.f32 %v1574, %v1590
  %v1592 = vsub.f32 1.0, %v1591
  %v1593 = vmul.f32 %v1590, %v1592
  %v1594 = vadd.f32 %v1590, %v1593
  %vm1595 = vweird.f32 %v1574
  %vm1596 = vweird.f32 %v1590
  %vm1597 = vmor %vm1595, %vm1596
  %v1598 = vsel %vm1597, %v1590, %v1594
  %v1599 = vand.u32 2147483647, %v1574
  %vm1600 = vcmp.eq.f32.partialorder %v1599, 8.507059e+37
  %v1601 = vand.u32 %v1574, 2147483648
  %v1602 = vor.u32 1.1754944e-38, %v1601
  %v1603 = vsel %vm1600, %v1602, %v1598
  %v1604 = vmul.f32 1.0, %v1603
  %v1605 = vadd.f32 %v1352, %v1547
  %v1606 = vadd.f32 %v1355, %v1549
  %v1607 = vxor.u32 %v1605, 2147483648
  %v1608 = vxor.u32 %v1606, 2147483648
  %v1609 = vmul.f32 %v1607, 1.442695
  %v1610 = vpow.pop %v1609
  %v1611 = vmul.f32 %v1608, 1.442695
  %v1612 = vpow.pop %v1611
  %v1613 = vadd.f32 %v1610, 1.0
  %v1614 = vadd.f32 %v1612, 1.0
  %v1615 = vrcp.pop %v1613
  %v1616 = vmul.f32 %v1613, %v1615
  %v1617 = vsub.f32 1.0, %v1616
  %v1618 = vmul.f32 %v1615, %v1617
  %v1619 = vadd.f32 %v1615, %v1618
  %vm1620 = vweird.f32 %v1613
  %vm1621 = vweird.f32 %v1615
  %vm1622 = vmor %vm1620, %vm1621
  %v1623 = vsel %vm1622, %v1615, %v1619
  %v1624 = vand.u32 2147483647, %v1613
  %vm1625 = vcmp.eq.f32.partialorder %v1624, 8.507059e+37
  %v1626 = vand.u32 %v1613, 2147483648
  %v1627 = vor.u32 1.1754944e-38, %v1626
  %v1628 = vsel %vm1625, %v1627, %v1623
  %v1629 = vmul.f32 1.0, %v1628
  %v1630 = vrcp.pop %v1614
  %v1631 = vmul.f32 %v1614, %v1630
  %v1632 = vsub.f32 1.0, %v1631
  %v1633 = vmul.f32 %v1630, %v1632
  %v1634 = vadd.f32 %v1630, %v1633
  %vm1635 = vweird.f32 %v1614
  %vm1636 = vweird.f32 %v1630
  %vm1637 = vmor %vm1635, %vm1636
  %v1638 = vsel %vm1637, %v1630, %v1634
  %v1639 = vand.u32 2147483647, %v1614
  %vm1640 = vcmp.eq.f32.partialorder %v1639, 8.507059e+37
  %v1641 = vand.u32 %v1614, 2147483648
  %v1642 = vor.u32 1.1754944e-38, %v1641
  %v1643 = vsel %vm1640, %v1642, %v1638
  %v1644 = vmul.f32 1.0, %v1643
  %v1645 = vld [vmem:[%s3] sm:$0x1]
  %v1647 = vperm.slane %v1645, 0
  %v1649 = vadd.f32 %v1561, %v1647
  %v1650 = vadd.f32 %v1563, %v1647
  %v1651 = vmul.f32 %v1589, %v1649
  %v1652 = vmul.f32 %v1604, %v1650
  %v1653 = vadd.f32 %v1353, %v1651
  %v1654 = vadd.f32 %v1356, %v1652
  %v1655 = vtanh.pop %v1653
  %v1656 = vtanh.pop %v1654
  %v1657 = vsub.f32 1.0, %v1629
  %v1658 = vsub.f32 1.0, %v1644
  %v1659 = vmul.f32 %v1657, %v1655
  %v1660 = vmul.f32 %v1658, %v1656
  %v1661 = vmul.f32 %v1629, %v1339
  %v1662 = vmul.f32 %v1644, %v1340
  %v1663 = vadd.f32 %v1659, %v1661
  %v1664 = vadd.f32 %v1660, %v1662
  %s1665 = sadd.s32 %s27, 4
  %p1666 = scmp.lt.s32.totalorder %s1665, 6
  %s1667 = scalar_select %p1666, 1, 0
  %v1668 = vstv %s1667
  %vm1669 = vcmp.eq.s32.totalorder %v1668, 1
  %v1670 = vsel %vm1669, %v1663, %v1339
  %v1671 = vsel %vm1669, %v1664, %v1340
  %v1672 = vpack.c.bf16 %v1670, %v1670
  %v1673 = vpack.c.bf16 %v1671, %v1671
  %s1674 = scalar_lea.vmem %s4, 32
  %1675 = vst [vmem:[%s1674] sm:$0xf] %v1672
  %1676 = vst [vmem:[%s1674 + $0x4] sm:$0xf] %v1673
  %s1677 = scalar_lea.vmem %s0, 120
  %v1678 = vld [vmem:[%s1677] sm:$0xff]
  %v1679 = vld [vmem:[%s1677 + $0x8] sm:$0xf]
  %v1680 = vld [vmem:[%s1677 + $0xc] sm:$0xff]
  %v1681 = vld [vmem:[%s1677 + $0x14] sm:$0xf]
  %v1682 = vunpack.c.l.bf16 %v1678
  %v1683 = vunpack.c.h.bf16 %v1678
  %v1684 = vunpack.c.l.bf16 %v1679
  %v1685 = vunpack.c.l.bf16 %v1680
  %v1686 = vunpack.c.h.bf16 %v1680
  %v1687 = vunpack.c.l.bf16 %v1681
  %v1688 = vld [vmem:[%s2] sm:$0xff]
  %v1689 = vld [vmem:[%s2 + $0x8] sm:$0xf]
  %v1690 = vld [vmem:[%s2 + $0xc] sm:$0xff]
  %v1691 = vld [vmem:[%s2 + $0x14] sm:$0xf]
  %v1692 = vld [vmem:[%s2 + $0x18] sm:$0xff]
  %v1693 = vld [vmem:[%s2 + $0x20] sm:$0xf]
  %v1694 = vld [vmem:[%s2 + $0x24] sm:$0xff]
  %v1695 = vld [vmem:[%s2 + $0x2c] sm:$0xf]
  %v1696 = vld [vmem:[%s2 + $0x30] sm:$0xff]
  %v1697 = vld [vmem:[%s2 + $0x38] sm:$0xf]
  %v1698 = vld [vmem:[%s2 + $0x3c] sm:$0xff]
  %v1699 = vld [vmem:[%s2 + $0x44] sm:$0xf]
  %v1700 = vld [vmem:[%s2 + $0x48] sm:$0xff]
  %v1701 = vld [vmem:[%s2 + $0x50] sm:$0xf]
  %v1702 = vld [vmem:[%s2 + $0x54] sm:$0xff]
  %v1703 = vld [vmem:[%s2 + $0x5c] sm:$0xf]
  %v1704 = vld [vmem:[%s2 + $0x60] sm:$0xff]
  %v1705 = vld [vmem:[%s2 + $0x68] sm:$0xf]
  %v1706 = vld [vmem:[%s2 + $0x6c] sm:$0xff]
  %v1707 = vld [vmem:[%s2 + $0x74] sm:$0xf]
  %v1708 = vld [vmem:[%s2 + $0x78] sm:$0xff]
  %v1709 = vld [vmem:[%s2 + $0x80] sm:$0xf]
  %v1710 = vld [vmem:[%s2 + $0x84] sm:$0xff]
  %v1711 = vld [vmem:[%s2 + $0x8c] sm:$0xf]
  %v1712 = vld [vmem:[%s2 + $0x90] sm:$0xff]
  %v1713 = vld [vmem:[%s2 + $0x98] sm:$0xf]
  %v1714 = vld [vmem:[%s2 + $0x9c] sm:$0xff]
  %v1715 = vld [vmem:[%s2 + $0xa4] sm:$0xf]
  %v1716 = vld [vmem:[%s2 + $0xa8] sm:$0xff]
  %v1717 = vld [vmem:[%s2 + $0xb0] sm:$0xf]
  %v1718 = vld [vmem:[%s2 + $0xb4] sm:$0xff]
  %v1719 = vld [vmem:[%s2 + $0xbc] sm:$0xf]
  %v1722 = vunpack.c.l.b16 %v1672
  %v1723 = vunpack.c.l.b16 %v1673
  %v1724 = vpack.c.b16 %v1723, %v1722
  %v1758 = vunpack.c.l.b16 %v1688
  %v1759 = vunpack.c.h.b16 %v1688
  %v1760 = vunpack.c.l.b16 %v1689
  %v1761 = vunpack.c.l.b16 %v1690
  %v1762 = vunpack.c.h.b16 %v1690
  %v1763 = vunpack.c.l.b16 %v1691
  %v1764 = vunpack.c.l.b16 %v1692
  %v1765 = vunpack.c.h.b16 %v1692
  %v1766 = vunpack.c.l.b16 %v1693
  %v1767 = vunpack.c.l.b16 %v1694
  %v1768 = vunpack.c.h.b16 %v1694
  %v1769 = vunpack.c.l.b16 %v1695
  %v1770 = vunpack.c.l.b16 %v1696
  %v1771 = vunpack.c.h.b16 %v1696
  %v1772 = vunpack.c.l.b16 %v1697
  %v1773 = vunpack.c.l.b16 %v1698
  %v1774 = vunpack.c.h.b16 %v1698
  %v1775 = vunpack.c.l.b16 %v1699
  %v1776 = vunpack.c.l.b16 %v1700
  %v1777 = vunpack.c.h.b16 %v1700
  %v1778 = vunpack.c.l.b16 %v1701
  %v1779 = vunpack.c.l.b16 %v1702
  %v1780 = vunpack.c.h.b16 %v1702
  %v1781 = vunpack.c.l.b16 %v1703
  %v1782 = vunpack.c.l.b16 %v1704
  %v1783 = vunpack.c.h.b16 %v1704
  %v1784 = vunpack.c.l.b16 %v1705
  %v1785 = vunpack.c.l.b16 %v1706
  %v1786 = vunpack.c.h.b16 %v1706
  %v1787 = vunpack.c.l.b16 %v1707
  %v1788 = vunpack.c.l.b16 %v1708
  %v1789 = vunpack.c.h.b16 %v1708
  %v1790 = vunpack.c.l.b16 %v1709
  %v1791 = vunpack.c.l.b16 %v1710
  %v1792 = vunpack.c.h.b16 %v1710
  %v1793 = vunpack.c.l.b16 %v1711
  %v1794 = vunpack.c.l.b16 %v1712
  %v1795 = vunpack.c.h.b16 %v1712
  %v1796 = vunpack.c.l.b16 %v1713
  %v1797 = vunpack.c.l.b16 %v1714
  %v1798 = vunpack.c.h.b16 %v1714
  %v1799 = vunpack.c.l.b16 %v1715
  %v1800 = vunpack.c.l.b16 %v1716
  %v1801 = vunpack.c.h.b16 %v1716
  %v1802 = vunpack.c.l.b16 %v1717
  %v1803 = vunpack.c.l.b16 %v1718
  %v1804 = vunpack.c.h.b16 %v1718
  %v1805 = vunpack.c.l.b16 %v1719
  %v1806 = vpack.c.b16 %v1761, %v1758
  %v1807 = vpack.c.b16 %v1762, %v1759
  %v1808 = vpack.c.b16 %v1763, %v1760
  %v1809 = vpack.c.b16 %v1767, %v1764
  %v1810 = vpack.c.b16 %v1768, %v1765
  %v1811 = vpack.c.b16 %v1769, %v1766
  %v1812 = vpack.c.b16 %v1773, %v1770
  %v1813 = vpack.c.b16 %v1774, %v1771
  %v1814 = vpack.c.b16 %v1775, %v1772
  %v1815 = vpack.c.b16 %v1779, %v1776
  %v1816 = vpack.c.b16 %v1780, %v1777
  %v1817 = vpack.c.b16 %v1781, %v1778
  %v1818 = vpack.c.b16 %v1785, %v1782
  %v1819 = vpack.c.b16 %v1786, %v1783
  %v1820 = vpack.c.b16 %v1787, %v1784
  %v1821 = vpack.c.b16 %v1791, %v1788
  %v1822 = vpack.c.b16 %v1792, %v1789
  %v1823 = vpack.c.b16 %v1793, %v1790
  %v1824 = vpack.c.b16 %v1797, %v1794
  %v1825 = vpack.c.b16 %v1798, %v1795
  %v1826 = vpack.c.b16 %v1799, %v1796
  %v1827 = vpack.c.b16 %v1803, %v1800
  %v1828 = vpack.c.b16 %v1804, %v1801
  %v1829 = vpack.c.b16 %v1805, %v1802
  %1854 = vmatpush.bf16.msra.mxu0 %v1827
  %1855 = vmatpush.bf16.msra.mxu0 %v1824
  %1856 = vmatpush.bf16.msra.mxu0 %v1821
  %1857 = vmatpush.bf16.msra.mxu0 %v1818
  %1858 = vmatpush.bf16.msra.mxu0 %v1815
  %1859 = vmatpush.bf16.msra.mxu0 %v1812
  %1860 = vmatpush.bf16.msra.mxu0 %v1809
  %1861 = vmatpush.bf16.msra.mxu0 %v1806
  %1862 = vmatmul.bf16.gmra.mxu0 %v1724
  %v1863 = vpop.f32.mrf.mxu0
  %v1864 = vadd.f32 0.0, %v1863
  %v1865 = vpop.f32.mrf.mxu0
  %v1866 = vadd.f32 0.0, %v1865
  %1867 = vdwg.mxu0
  %1868 = vmatpush.bf16.msra.mxu0 %v1828
  %1869 = vmatpush.bf16.msra.mxu0 %v1825
  %1870 = vmatpush.bf16.msra.mxu0 %v1822
  %1871 = vmatpush.bf16.msra.mxu0 %v1819
  %1872 = vmatpush.bf16.msra.mxu0 %v1816
  %1873 = vmatpush.bf16.msra.mxu0 %v1813
  %1874 = vmatpush.bf16.msra.mxu0 %v1810
  %1875 = vmatpush.bf16.msra.mxu0 %v1807
  %1876 = vmatmul.bf16.gmra.mxu0 %v1724
  %v1877 = vpop.f32.mrf.mxu0
  %v1878 = vadd.f32 0.0, %v1877
  %v1879 = vpop.f32.mrf.mxu0
  %v1880 = vadd.f32 0.0, %v1879
  %1881 = vdwg.mxu0
  %1882 = vmatpush.bf16.msra.mxu0 %v1829
  %1883 = vmatpush.bf16.msra.mxu0 %v1826
  %1884 = vmatpush.bf16.msra.mxu0 %v1823
  %1885 = vmatpush.bf16.msra.mxu0 %v1820
  %1886 = vmatpush.bf16.msra.mxu0 %v1817
  %1887 = vmatpush.bf16.msra.mxu0 %v1814
  %1888 = vmatpush.bf16.msra.mxu0 %v1811
  %1889 = vmatpush.bf16.msra.mxu0 %v1808
  %1890 = vmatmul.bf16.gmra.mxu0 %v1724
  %v1891 = vpop.f32.mrf.mxu0
  %v1892 = vadd.f32 0.0, %v1891
  %v1893 = vpop.f32.mrf.mxu0
  %v1894 = vadd.f32 0.0, %v1893
  %1895 = vdwg.mxu0
  %v1896 = vadd.f32 %v1682, %v1864
  %v1897 = vadd.f32 %v1685, %v1866
  %v1898 = vxor.u32 %v1896, 2147483648
  %v1899 = vxor.u32 %v1897, 2147483648
  %v1900 = vmul.f32 %v1898, 1.442695
  %v1901 = vpow.pop %v1900
  %v1902 = vmul.f32 %v1899, 1.442695
  %v1903 = vpow.pop %v1902
  %v1904 = vadd.f32 %v1901, 1.0
  %v1905 = vadd.f32 %v1903, 1.0
  %v1906 = vrcp.pop %v1904
  %v1907 = vmul.f32 %v1904, %v1906
  %v1908 = vsub.f32 1.0, %v1907
  %v1909 = vmul.f32 %v1906, %v1908
  %v1910 = vadd.f32 %v1906, %v1909
  %vm1911 = vweird.f32 %v1904
  %vm1912 = vweird.f32 %v1906
  %vm1913 = vmor %vm1911, %vm1912
  %v1914 = vsel %vm1913, %v1906, %v1910
  %v1915 = vand.u32 2147483647, %v1904
  %vm1916 = vcmp.eq.f32.partialorder %v1915, 8.507059e+37
  %v1917 = vand.u32 %v1904, 2147483648
  %v1918 = vor.u32 1.1754944e-38, %v1917
  %v1919 = vsel %vm1916, %v1918, %v1914
  %v1920 = vmul.f32 1.0, %v1919
  %v1921 = vrcp.pop %v1905
  %v1922 = vmul.f32 %v1905, %v1921
  %v1923 = vsub.f32 1.0, %v1922
  %v1924 = vmul.f32 %v1921, %v1923
  %v1925 = vadd.f32 %v1921, %v1924
  %vm1926 = vweird.f32 %v1905
  %vm1927 = vweird.f32 %v1921
  %vm1928 = vmor %vm1926, %vm1927
  %v1929 = vsel %vm1928, %v1921, %v1925
  %v1930 = vand.u32 2147483647, %v1905
  %vm1931 = vcmp.eq.f32.partialorder %v1930, 8.507059e+37
  %v1932 = vand.u32 %v1905, 2147483648
  %v1933 = vor.u32 1.1754944e-38, %v1932
  %v1934 = vsel %vm1931, %v1933, %v1929
  %v1935 = vmul.f32 1.0, %v1934
  %v1936 = vadd.f32 %v1683, %v1878
  %v1937 = vadd.f32 %v1686, %v1880
  %v1938 = vxor.u32 %v1936, 2147483648
  %v1939 = vxor.u32 %v1937, 2147483648
  %v1940 = vmul.f32 %v1938, 1.442695
  %v1941 = vpow.pop %v1940
  %v1942 = vmul.f32 %v1939, 1.442695
  %v1943 = vpow.pop %v1942
  %v1944 = vadd.f32 %v1941, 1.0
  %v1945 = vadd.f32 %v1943, 1.0
  %v1946 = vrcp.pop %v1944
  %v1947 = vmul.f32 %v1944, %v1946
  %v1948 = vsub.f32 1.0, %v1947
  %v1949 = vmul.f32 %v1946, %v1948
  %v1950 = vadd.f32 %v1946, %v1949
  %vm1951 = vweird.f32 %v1944
  %vm1952 = vweird.f32 %v1946
  %vm1953 = vmor %vm1951, %vm1952
  %v1954 = vsel %vm1953, %v1946, %v1950
  %v1955 = vand.u32 2147483647, %v1944
  %vm1956 = vcmp.eq.f32.partialorder %v1955, 8.507059e+37
  %v1957 = vand.u32 %v1944, 2147483648
  %v1958 = vor.u32 1.1754944e-38, %v1957
  %v1959 = vsel %vm1956, %v1958, %v1954
  %v1960 = vmul.f32 1.0, %v1959
  %v1961 = vrcp.pop %v1945
  %v1962 = vmul.f32 %v1945, %v1961
  %v1963 = vsub.f32 1.0, %v1962
  %v1964 = vmul.f32 %v1961, %v1963
  %v1965 = vadd.f32 %v1961, %v1964
  %vm1966 = vweird.f32 %v1945
  %vm1967 = vweird.f32 %v1961
  %vm1968 = vmor %vm1966, %vm1967
  %v1969 = vsel %vm1968, %v1961, %v1965
  %v1970 = vand.u32 2147483647, %v1945
  %vm1971 = vcmp.eq.f32.partialorder %v1970, 8.507059e+37
  %v1972 = vand.u32 %v1945, 2147483648
  %v1973 = vor.u32 1.1754944e-38, %v1972
  %v1974 = vsel %vm1971, %v1973, %v1969
  %v1975 = vmul.f32 1.0, %v1974
  %v1976 = vld [vmem:[%s3] sm:$0x1]
  %v1978 = vperm.slane %v1976, 0
  %v1980 = vadd.f32 %v1892, %v1978
  %v1981 = vadd.f32 %v1894, %v1978
  %v1982 = vmul.f32 %v1920, %v1980
  %v1983 = vmul.f32 %v1935, %v1981
  %v1984 = vadd.f32 %v1684, %v1982
  %v1985 = vadd.f32 %v1687, %v1983
  %v1986 = vtanh.pop %v1984
  %v1987 = vtanh.pop %v1985
  %v1988 = vsub.f32 1.0, %v1960
  %v1989 = vsub.f32 1.0, %v1975
  %v1990 = vmul.f32 %v1988, %v1986
  %v1991 = vmul.f32 %v1989, %v1987
  %v1992 = vmul.f32 %v1960, %v1670
  %v1993 = vmul.f32 %v1975, %v1671
  %v1994 = vadd.f32 %v1990, %v1992
  %v1995 = vadd.f32 %v1991, %v1993
  %s1996 = sadd.s32 %s27, 5
  %p1997 = scmp.lt.s32.totalorder %s1996, 6
  %s1998 = scalar_select %p1997, 1, 0
  %v1999 = vstv %s1998
  %vm2000 = vcmp.eq.s32.totalorder %v1999, 1
  %v2001 = vsel %vm2000, %v1994, %v1670
  %v2002 = vsel %vm2000, %v1995, %v1671
  %v2003 = vpack.c.bf16 %v2001, %v2001
  %v2004 = vpack.c.bf16 %v2002, %v2002
  %s2005 = scalar_lea.vmem %s4, 40
  %2006 = vst [vmem:[%s2005] sm:$0xf] %v2003
  %2007 = vst [vmem:[%s2005 + $0x4] sm:$0xf] %v2004
  %2008 = vst [vmem:[%s5] sm:$0xff] %v2001
  %2009 = vst [vmem:[%s5 + $0x8] sm:$0xff] %v2002
  // Predicated region
  $region22: #{seq2seq_forward.8} parent=0 // pred_check
    _
  $region23: #{seq2seq_forward.8} parent=0 // pred_check_branch
    %2011 = sbr.rel (0) target = $region25
  $region24: #{seq2seq_forward.8} parent=0 // pred_region
    _
  $region25: #{seq2seq_forward.8} parent=0 // pred_fallthru
    _
  // Predicated region
  $region26: #{seq2seq_forward.8} parent=0 // pred_check
    _
  $region27: #{seq2seq_forward.8} parent=0 // pred_check_branch
    %2013 = sbr.rel (0) target = $region29
  $region28: #{seq2seq_forward.8} parent=0 // pred_region
    _
  $region29: #{seq2seq_forward.8} parent=0 // pred_fallthru
    _
  // Predicated region
  $region30: #{seq2seq_forward.8} parent=0 // pred_check
    _
  $region31: #{seq2seq_forward.8} parent=0 // pred_check_branch
    %2015 = sbr.rel (0) target = $region33
  $region32: #{seq2seq_forward.8} parent=0 // pred_region
    _
  $region33: #{seq2seq_forward.8} parent=0 // pred_fallthru
    _
  // Predicated region
  $region34: #{seq2seq_forward.8} parent=0 // pred_check
    _
  $region35: #{seq2seq_forward.8} parent=0 // pred_check_branch
    %2017 = sbr.rel (0) target = $region37
  $region36: #{seq2seq_forward.8} parent=0 // pred_region
    _
  $region37: #{seq2seq_forward.8} parent=0 // pred_fallthru
    _

</llo_original>
